<compile_context>
chip_gen: v7x
topology: tpu7x:2x2x1
jax: 0.10.0
libtpu: 0.0.40
codegen_flags: <defaults>
</compile_context>

<pallas_src>
import functools

import jax
import jax.numpy as jnp
from jax import lax
from jax.experimental import pallas as pl
from jax.experimental.pallas import tpu as pltpu

# ---- model hyper-parameters (mirroring the PyTorch module) ------------------
DROPOUT_PROB = 0.35          # unused at inference
HIDDEN_UNITS1 = 512
HIDDEN_UNITS2 = 256
KERNEL_SIZE = 4
NUM_FILTERS1 = 64
NUM_FILTERS2 = 128
NUM_FILTERS3 = 256
POOL_SIZE = 2
PAD = 1
LEAKY_SLOPE = 0.01


def _round_up(x, m):
    return (x + m - 1) // m * m


# -----------------------------------------------------------------------------
# Pallas kernels
# -----------------------------------------------------------------------------
def _mm_bias_act_kernel(x_ref, w_ref, b_ref, o_ref, *, act):
    """One (tm, K)x(K, N) tile: bf16 matmul (f32 acc) + bias + activation."""
    acc = jnp.dot(x_ref[...], w_ref[...], preferred_element_type=jnp.float32)
    acc = acc + b_ref[...]                       # (1, N) broadcast over rows
    if act == "relu":
        acc = jnp.maximum(acc, 0.0)
    elif act == "leaky_relu":
        acc = jnp.where(acc >= 0.0, acc, LEAKY_SLOPE * acc)
    o_ref[...] = acc.astype(o_ref.dtype)


def matmul_bias_act(x, wp, bp, n_out, act="none", out_dtype=jnp.float32):
    """y = act(x @ W + b) with pre-packed, pre-padded bf16 weights.

    wp: (Kp, Np) bf16, zero-padded.  bp: (1, Np) f32, zero-padded.
    Returns the (M, n_out) un-padded result in `out_dtype`.
    """
    M, K = x.shape
    Kp, Np = wp.shape
    assert K <= Kp

    tm = min(128, _round_up(max(M, 1), 16))      # bf16 sublane packing: 16
    Mp = _round_up(M, tm)

    xb = x.astype(jnp.bfloat16)
    if (Mp, Kp) != (M, K):
        xb = jnp.pad(xb, ((0, Mp - M), (0, Kp - K)))

    out = pl.pallas_call(
        functools.partial(_mm_bias_act_kernel, act=act),
        out_shape=jax.ShapeDtypeStruct((Mp, Np), out_dtype),
        grid=(Mp // tm,),
        in_specs=[
            pl.BlockSpec((tm, Kp), lambda i: (i, 0)),
            pl.BlockSpec((Kp, Np), lambda i: (0, 0)),   # weight stays resident
            pl.BlockSpec((1, Np), lambda i: (0, 0)),
        ],
        out_specs=pl.BlockSpec((tm, Np), lambda i: (i, 0)),
        compiler_params=pltpu.CompilerParams(
            dimension_semantics=("parallel",)),
    )(xb, wp, bp)
    if Mp != M or Np != n_out:
        out = out[:M, :n_out]
    return out


def _maxpool_kernel(a_ref, b_ref, c_ref, d_ref, o_ref):
    """Elementwise max of the four 2x2-window corners, (tm, C) lane-dense."""
    o_ref[...] = jnp.maximum(jnp.maximum(a_ref[...], b_ref[...]),
                             jnp.maximum(c_ref[...], d_ref[...]))


def maxpool2x2(x):
    """nn.MaxPool2d(2, 2) (floor mode) on NHWC input (bf16 or f32)."""
    N, H, W, C = x.shape
    ph, pw = H // POOL_SIZE, W // POOL_SIZE
    M = N * ph * pw

    def corner(i, j):
        return x[:, i:POOL_SIZE * ph:POOL_SIZE,
                 j:POOL_SIZE * pw:POOL_SIZE, :].reshape(M, C)

    a, b, c, d = corner(0, 0), corner(0, 1), corner(1, 0), corner(1, 1)

    tm = min(512, _round_up(M, 16))
    Mp = _round_up(M, tm)
    if Mp != M:
        pad = ((0, Mp - M), (0, 0))
        a, b, c, d = (jnp.pad(t, pad) for t in (a, b, c, d))

    out = pl.pallas_call(
        _maxpool_kernel,
        out_shape=jax.ShapeDtypeStruct((Mp, C), x.dtype),
        grid=(Mp // tm,),
        in_specs=[pl.BlockSpec((tm, C), lambda i: (i, 0))] * 4,
        out_specs=pl.BlockSpec((tm, C), lambda i: (i, 0)),
        compiler_params=pltpu.CompilerParams(
            dimension_semantics=("parallel",)),
    )(a, b, c, d)
    return out[:M].reshape(N, ph, pw, C)


def _mlp_kernel(x_ref, w1_ref, b1_ref, w2_ref, b2_ref, w3_ref, b3_ref, o_ref):
    """Fused fc1 -> leaky_relu -> fc2 -> leaky_relu -> fc3 (one VMEM pass)."""
    h = jnp.dot(x_ref[...], w1_ref[...], preferred_element_type=jnp.float32)
    h = h + b1_ref[...]
    h = jnp.where(h >= 0.0, h, LEAKY_SLOPE * h)
    # dropout -> identity (inference)
    h = jnp.dot(h.astype(jnp.bfloat16), w2_ref[...],
                preferred_element_type=jnp.float32)
    h = h + b2_ref[...]
    h = jnp.where(h >= 0.0, h, LEAKY_SLOPE * h)
    # dropout -> identity (inference)
    h = jnp.dot(h.astype(jnp.bfloat16), w3_ref[...],
                preferred_element_type=jnp.float32)
    o_ref[...] = (h + b3_ref[...]).astype(o_ref.dtype)


def mlp_forward(x, packed, meta):
    """Fused 3-layer MLP on flattened features. Returns (M, num_classes) f32."""
    M, K = x.shape
    w1, b1 = packed["fw1"], packed["fb1"]
    w2, b2 = packed["fw2"], packed["fb2"]
    w3, b3 = packed["fw3"], packed["fb3"]
    K1p, H1 = w1.shape
    _, H2 = w2.shape
    _, N3p = w3.shape

    Mp = _round_up(max(M, 1), 16)
    xb = x.astype(jnp.bfloat16)
    if (Mp, K1p) != (M, K):
        xb = jnp.pad(xb, ((0, Mp - M), (0, K1p - K)))

    out = pl.pallas_call(
        _mlp_kernel,
        out_shape=jax.ShapeDtypeStruct((Mp, N3p), jnp.float32),
        grid=(1,),
        in_specs=[
            pl.BlockSpec((Mp, K1p), lambda i: (0, 0)),
            pl.BlockSpec((K1p, H1), lambda i: (0, 0)),
            pl.BlockSpec((1, H1), lambda i: (0, 0)),
            pl.BlockSpec((H1, H2), lambda i: (0, 0)),
            pl.BlockSpec((1, H2), lambda i: (0, 0)),
            pl.BlockSpec((H2, N3p), lambda i: (0, 0)),
            pl.BlockSpec((1, N3p), lambda i: (0, 0)),
        ],
        out_specs=pl.BlockSpec((Mp, N3p), lambda i: (0, 0)),
        compiler_params=pltpu.CompilerParams(
            dimension_semantics=("arbitrary",)),
    )(xb, w1, b1, w2, b2, w3, b3)
    return out[:M, :meta["fn3"]]


# -----------------------------------------------------------------------------
# Conv via im2col + fused Pallas matmul
# -----------------------------------------------------------------------------
def _im2col(x, kh, kw, pad):
    """x: (N, H, W, C) -> patches (N*OH*OW, kh*kw*C) in (kh, kw, c) order."""
    N, H, W, C = x.shape
    xp = jnp.pad(x, ((0, 0), (pad, pad), (pad, pad), (0, 0)))
    OH = H + 2 * pad - kh + 1
    OW = W + 2 * pad - kw + 1
    slabs = []
    for i in range(kh):
        for j in range(kw):
            slabs.append(xp[:, i:i + OH, j:j + OW, :])
    p = jnp.stack(slabs, axis=3)                 # (N, OH, OW, kh*kw, C)
    return p.reshape(N * OH * OW, kh * kw * C), OH, OW


def conv_relu(x, wp, bp, n_out):
    """Conv(pad=1, k=4) + ReLU on NHWC input using pre-packed bf16 weights."""
    N = x.shape[0]
    patches, OH, OW = _im2col(x, KERNEL_SIZE, KERNEL_SIZE, PAD)
    y = matmul_bias_act(patches, wp, bp, n_out, act="relu",
                        out_dtype=jnp.bfloat16)
    return y.reshape(N, OH, OW, n_out)


# -----------------------------------------------------------------------------
# Weight packing (done once, outside the jitted forward)
# -----------------------------------------------------------------------------
def _pack_matrix(wm):
    K, N = wm.shape
    Kp, Np = _round_up(K, 128), _round_up(N, 128)
    return jnp.zeros((Kp, Np), jnp.bfloat16).at[:K, :N].set(
        wm.astype(jnp.bfloat16))


def _pack_bias(b):
    N = b.shape[0]
    Np = _round_up(N, 128)
    return jnp.zeros((1, Np), jnp.float32).at[0, :N].set(b.astype(jnp.float32))


def pack_params(params):
    """Pre-transpose / pre-pad all weights to MXU-friendly bf16 matrices."""
    packed = {}
    meta = {}
    for idx in (1, 2, 3):
        w = params[f"w{idx}"]
        b = params[f"b{idx}"]
        f_out, c_in, kh, kw = w.shape
        wm = jnp.transpose(w, (2, 3, 1, 0)).reshape(kh * kw * c_in, f_out)
        packed[f"cw{idx}"] = _pack_matrix(wm)
        packed[f"cb{idx}"] = _pack_bias(b)
        meta[f"cn{idx}"] = int(f_out)
    for idx in (1, 2, 3):
        w = params[f"fw{idx}"]
        b = params[f"fb{idx}"]
        packed[f"fw{idx}"] = _pack_matrix(w)
        packed[f"fb{idx}"] = _pack_bias(b)
        meta[f"fn{idx}"] = int(w.shape[1])
    return packed, meta


# -----------------------------------------------------------------------------
# Full forward pass
# -----------------------------------------------------------------------------
def forward(packed, x_nchw, meta):
    x = jnp.transpose(x_nchw, (0, 2, 3, 1)).astype(jnp.bfloat16)   # NCHW->NHWC
    x = maxpool2x2(conv_relu(x, packed["cw1"], packed["cb1"], meta["cn1"]))
    x = maxpool2x2(conv_relu(x, packed["cw2"], packed["cb2"], meta["cn2"]))
    x = maxpool2x2(conv_relu(x, packed["cw3"], packed["cb3"], meta["cn3"]))
    N = x.shape[0]
    # PyTorch flattens NCHW -> (N, C*H*W); match that ordering exactly.
    x = jnp.transpose(x, (0, 3, 1, 2)).reshape(N, -1)
    return mlp_forward(x, packed, meta)


def conv_out_spatial(h, w):
    """Track spatial dims through one conv(pad=1, k=4) + pool(2)."""
    h = h + 2 * PAD - KERNEL_SIZE + 1
    w = w + 2 * PAD - KERNEL_SIZE + 1
    return h // POOL_SIZE, w // POOL_SIZE


def init_params(key, input_size, num_classes):
    c, h, w = input_size
    for _ in range(3):
        h, w = conv_out_spatial(h, w)
    num_features = NUM_FILTERS3 * h * w

    ks = jax.random.split(key, 12)

    def conv_init(kw_, kb_, fout, fin):
        fan_in = fin * KERNEL_SIZE * KERNEL_SIZE
        scale = 1.0 / jnp.sqrt(fan_in)
        w_ = jax.random.uniform(kw_, (fout, fin, KERNEL_SIZE, KERNEL_SIZE),
                                jnp.float32, -scale, scale)
        b_ = jax.random.uniform(kb_, (fout,), jnp.float32, -scale, scale)
        return w_, b_

    def fc_init(kw_, kb_, fin, fout):
        scale = 1.0 / jnp.sqrt(fin)
        w_ = jax.random.uniform(kw_, (fin, fout), jnp.float32, -scale, scale)
        b_ = jax.random.uniform(kb_, (fout,), jnp.float32, -scale, scale)
        return w_, b_

    w1, b1 = conv_init(ks[0], ks[1], NUM_FILTERS1, c)
    w2, b2 = conv_init(ks[2], ks[3], NUM_FILTERS2, NUM_FILTERS1)
    w3, b3 = conv_init(ks[4], ks[5], NUM_FILTERS3, NUM_FILTERS2)
    fw1, fb1 = fc_init(ks[6], ks[7], num_features, HIDDEN_UNITS1)
    fw2, fb2 = fc_init(ks[8], ks[9], HIDDEN_UNITS1, HIDDEN_UNITS2)
    fw3, fb3 = fc_init(ks[10], ks[11], HIDDEN_UNITS2, num_classes)
    return dict(w1=w1, b1=b1, w2=w2, b2=b2, w3=w3, b3=b3,
                fw1=fw1, fb1=fb1, fw2=fw2, fb2=fb2, fw3=fw3, fb3=fb3)


# -----------------------------------------------------------------------------
# Pure-JAX f32 reference (correctness guard for the Pallas path)
# -----------------------------------------------------------------------------
def reference_forward(params, x_nchw):
    x = jnp.transpose(x_nchw, (0, 2, 3, 1)).astype(jnp.float32)    # NHWC
    dn = lax.conv_dimension_numbers(x.shape,
                                    (KERNEL_SIZE, KERNEL_SIZE, 1, 1),
                                    ("NHWC", "HWIO", "NHWC"))

    def conv_block(x, w, b):
        w_hwio = jnp.transpose(w, (2, 3, 1, 0)).astype(jnp.float32)
        y = lax.conv_general_dilated(x, w_hwio, (1, 1),
                                     [(PAD, PAD), (PAD, PAD)],
                                     dimension_numbers=dn)
        y = jnp.maximum(y + b[None, None, None, :], 0.0)
        y = lax.reduce_window(y, -jnp.inf, lax.max,
                              (1, POOL_SIZE, POOL_SIZE, 1),
                              (1, POOL_SIZE, POOL_SIZE, 1), "VALID")
        return y

    x = conv_block(x, params["w1"], params["b1"])
    x = conv_block(x, params["w2"], params["b2"])
    x = conv_block(x, params["w3"], params["b3"])
    N = x.shape[0]
    x = jnp.transpose(x, (0, 3, 1, 2)).reshape(N, -1)               # NCHW flat
    h = x @ params["fw1"] + params["fb1"]
    h = jnp.where(h >= 0.0, h, LEAKY_SLOPE * h)
    h = h @ params["fw2"] + params["fb2"]
    h = jnp.where(h >= 0.0, h, LEAKY_SLOPE * h)
    return h @ params["fw3"] + params["fb3"]


if __name__ == "__main__":
    key = jax.random.PRNGKey(0)
    k_param, k_x = jax.random.split(key)

    input_size = (3, 16, 16)   # (C, H, W): 16 -> 7 -> 3 -> 1, features = 256
    num_classes = 10
    batch = 2

    params = init_params(k_param, input_size, num_classes)
    packed, meta = pack_params(params)           # one-time weight repack/pad
    x = jax.random.normal(k_x, (batch,) + input_size, jnp.float32)

    fwd = jax.jit(functools.partial(forward, meta=meta))
    out = fwd(packed, x)
    out = jax.block_until_ready(out)
    assert out.shape == (batch, num_classes), out.shape

    ref = jax.block_until_ready(jax.jit(reference_forward)(params, x))
    max_err = float(jnp.max(jnp.abs(out - ref)))
    # bf16 matmul operands -> loose absolute tolerance on small logits.
    assert max_err < 0.1, f"max abs error vs reference: {max_err}"

    print("KERNEL_OK")
</pallas_src>

<mosaic_0001>
module attributes {stable_mosaic.version = 11 : i64} {
  func.func @_mm_bias_act_kernel(%arg0: i32, %arg1: memref<128x128xbf16, #tpu.memory_space<vmem>>, %arg2: memref<128x128xbf16, #tpu.memory_space<vmem>>, %arg3: memref<1x128xf32, #tpu.memory_space<vmem>>, %arg4: memref<128x128xbf16, #tpu.memory_space<vmem>>) attributes {dimension_semantics = [#tpu.dimension_semantics<parallel>], iteration_bounds = array<i64: 4>, scalar_prefetch = 0 : i64, scratch_operands = 0 : i64, tpu.core_type = #tpu.core_type<tc>, window_params = [{transform_indices = @transform_0, window_bounds = array<i64: 128, 128>}, {pipeline_mode = #tpu.pipeline_mode<synchronous>, transform_indices = @transform_1, window_bounds = array<i64: 128, 128>}, {pipeline_mode = #tpu.pipeline_mode<synchronous>, transform_indices = @transform_2, window_bounds = array<i64: 1, 128>}, {transform_indices = @transform_3, window_bounds = array<i64: 128, 128>}]} {
    %c0 = arith.constant 0 : index
    %c0_0 = arith.constant 0 : index
    %0 = vector.load %arg1[%c0, %c0_0] : memref<128x128xbf16, #tpu.memory_space<vmem>>, vector<128x128xbf16>
    %c0_1 = arith.constant 0 : index
    %c0_2 = arith.constant 0 : index
    %1 = vector.load %arg2[%c0_1, %c0_2] : memref<128x128xbf16, #tpu.memory_space<vmem>>, vector<128x128xbf16>
    %cst = arith.constant dense<0.000000e+00> : vector<128x128xf32>
    %2 = tpu.matmul %0, %1, %cst {dimension_numbers = #tpu.dot_dimension_numbers<[1], [0], [0], [1], [0, 0, 1, 1], [], []>} : vector<128x128xbf16>, vector<128x128xbf16>, vector<128x128xf32> -> vector<128x128xf32>
    %c0_3 = arith.constant 0 : index
    %c0_4 = arith.constant 0 : index
    %3 = vector.load %arg3[%c0_3, %c0_4] : memref<1x128xf32, #tpu.memory_space<vmem>>, vector<1x128xf32>
    %4 = vector.broadcast %3 : vector<1x128xf32> to vector<128x128xf32>
    %5 = arith.addf %2, %4 : vector<128x128xf32>
    %cst_5 = arith.constant 0.000000e+00 : f32
    %6 = vector.broadcast %cst_5 : f32 to vector<128x128xf32>
    %7 = arith.maximumf %5, %6 : vector<128x128xf32>
    %8 = arith.truncf %7 : vector<128x128xf32> to vector<128x128xbf16>
    %c0_6 = arith.constant 0 : index
    %c0_7 = arith.constant 0 : index
    %9 = vector.load %arg4[%c0_6, %c0_7] : memref<128x128xbf16, #tpu.memory_space<vmem>>, vector<128x128xbf16>
    tpu.vector_store %arg4[%c0_6, %c0_7], %8 {strides = array<i32>} : memref<128x128xbf16, #tpu.memory_space<vmem>>, vector<128x128xbf16>,
    return
  }
  func.func @transform_0(%arg0: i32) -> (i32, i32) {
    %c0_i32 = arith.constant 0 : i32
    %c0_i32_0 = arith.constant 0 : i32
    return %arg0, %c0_i32 : i32, i32
  }
  func.func @transform_1(%arg0: i32) -> (i32, i32) {
    %c0_i32 = arith.constant 0 : i32
    %c0_i32_0 = arith.constant 0 : i32
    %c0_i32_1 = arith.constant 0 : i32
    return %c0_i32, %c0_i32_0 : i32, i32
  }
  func.func @transform_2(%arg0: i32) -> (i32, i32) {
    %c0_i32 = arith.constant 0 : i32
    %c0_i32_0 = arith.constant 0 : i32
    %c0_i32_1 = arith.constant 0 : i32
    return %c0_i32, %c0_i32_0 : i32, i32
  }
  func.func @transform_3(%arg0: i32) -> (i32, i32) {
    %c0_i32 = arith.constant 0 : i32
    %c0_i32_0 = arith.constant 0 : i32
    return %arg0, %c0_i32 : i32, i32
  }
}

module attributes {stable_mosaic.version = 11 : i64} {
  func.func @_maxpool_kernel(%arg0: i32, %arg1: memref<112x64xbf16, #tpu.memory_space<vmem>>, %arg2: memref<112x64xbf16, #tpu.memory_space<vmem>>, %arg3: memref<112x64xbf16, #tpu.memory_space<vmem>>, %arg4: memref<112x64xbf16, #tpu.memory_space<vmem>>, %arg5: memref<112x64xbf16, #tpu.memory_space<vmem>>) attributes {dimension_semantics = [#tpu.dimension_semantics<parallel>], iteration_bounds = array<i64: 1>, scalar_prefetch = 0 : i64, scratch_operands = 0 : i64, tpu.core_type = #tpu.core_type<tc>, window_params = [{transform_indices = @transform_0, window_bounds = array<i64: 112, 64>}, {transform_indices = @transform_1, window_bounds = array<i64: 112, 64>}, {transform_indices = @transform_2, window_bounds = array<i64: 112, 64>}, {transform_indices = @transform_3, window_bounds = array<i64: 112, 64>}, {transform_indices = @transform_4, window_bounds = array<i64: 112, 64>}]} {
    %c0 = arith.constant 0 : index
    %c0_0 = arith.constant 0 : index
    %0 = vector.load %arg1[%c0, %c0_0] : memref<112x64xbf16, #tpu.memory_space<vmem>>, vector<112x64xbf16>
    %c0_1 = arith.constant 0 : index
    %c0_2 = arith.constant 0 : index
    %1 = vector.load %arg2[%c0_1, %c0_2] : memref<112x64xbf16, #tpu.memory_space<vmem>>, vector<112x64xbf16>
    %2 = arith.maximumf %0, %1 : vector<112x64xbf16>
    %c0_3 = arith.constant 0 : index
    %c0_4 = arith.constant 0 : index
    %3 = vector.load %arg3[%c0_3, %c0_4] : memref<112x64xbf16, #tpu.memory_space<vmem>>, vector<112x64xbf16>
    %c0_5 = arith.constant 0 : index
    %c0_6 = arith.constant 0 : index
    %4 = vector.load %arg4[%c0_5, %c0_6] : memref<112x64xbf16, #tpu.memory_space<vmem>>, vector<112x64xbf16>
    %5 = arith.maximumf %3, %4 : vector<112x64xbf16>
    %6 = arith.maximumf %2, %5 : vector<112x64xbf16>
    %c0_7 = arith.constant 0 : index
    %c0_8 = arith.constant 0 : index
    %7 = vector.load %arg5[%c0_7, %c0_8] : memref<112x64xbf16, #tpu.memory_space<vmem>>, vector<112x64xbf16>
    tpu.vector_store %arg5[%c0_7, %c0_8], %6 {strides = array<i32>} : memref<112x64xbf16, #tpu.memory_space<vmem>>, vector<112x64xbf16>,
    return
  }
  func.func @transform_0(%arg0: i32) -> (i32, i32) {
    %c0_i32 = arith.constant 0 : i32
    %c0_i32_0 = arith.constant 0 : i32
    return %arg0, %c0_i32 : i32, i32
  }
  func.func @transform_1(%arg0: i32) -> (i32, i32) {
    %c0_i32 = arith.constant 0 : i32
    %c0_i32_0 = arith.constant 0 : i32
    return %arg0, %c0_i32 : i32, i32
  }
  func.func @transform_2(%arg0: i32) -> (i32, i32) {
    %c0_i32 = arith.constant 0 : i32
    %c0_i32_0 = arith.constant 0 : i32
    return %arg0, %c0_i32 : i32, i32
  }
  func.func @transform_3(%arg0: i32) -> (i32, i32) {
    %c0_i32 = arith.constant 0 : i32
    %c0_i32_0 = arith.constant 0 : i32
    return %arg0, %c0_i32 : i32, i32
  }
  func.func @transform_4(%arg0: i32) -> (i32, i32) {
    %c0_i32 = arith.constant 0 : i32
    %c0_i32_0 = arith.constant 0 : i32
    return %arg0, %c0_i32 : i32, i32
  }
}

module attributes {stable_mosaic.version = 11 : i64} {
  func.func @_mm_bias_act_kernel(%arg0: i32, %arg1: memref<80x1024xbf16, #tpu.memory_space<vmem>>, %arg2: memref<1024x128xbf16, #tpu.memory_space<vmem>>, %arg3: memref<1x128xf32, #tpu.memory_space<vmem>>, %arg4: memref<80x128xbf16, #tpu.memory_space<vmem>>) attributes {dimension_semantics = [#tpu.dimension_semantics<parallel>], iteration_bounds = array<i64: 1>, scalar_prefetch = 0 : i64, scratch_operands = 0 : i64, tpu.core_type = #tpu.core_type<tc>, window_params = [{transform_indices = @transform_0, window_bounds = array<i64: 80, 1024>}, {pipeline_mode = #tpu.pipeline_mode<synchronous>, transform_indices = @transform_1, window_bounds = array<i64: 1024, 128>}, {pipeline_mode = #tpu.pipeline_mode<synchronous>, transform_indices = @transform_2, window_bounds = array<i64: 1, 128>}, {transform_indices = @transform_3, window_bounds = array<i64: 80, 128>}]} {
    %c0 = arith.constant 0 : index
    %c0_0 = arith.constant 0 : index
    %0 = vector.load %arg1[%c0, %c0_0] : memref<80x1024xbf16, #tpu.memory_space<vmem>>, vector<80x1024xbf16>
    %c0_1 = arith.constant 0 : index
    %c0_2 = arith.constant 0 : index
    %1 = vector.load %arg2[%c0_1, %c0_2] : memref<1024x128xbf16, #tpu.memory_space<vmem>>, vector<1024x128xbf16>
    %cst = arith.constant dense<0.000000e+00> : vector<80x128xf32>
    %2 = tpu.matmul %0, %1, %cst {dimension_numbers = #tpu.dot_dimension_numbers<[1], [0], [0], [1], [0, 0, 1, 1], [], []>} : vector<80x1024xbf16>, vector<1024x128xbf16>, vector<80x128xf32> -> vector<80x128xf32>
    %c0_3 = arith.constant 0 : index
    %c0_4 = arith.constant 0 : index
    %3 = vector.load %arg3[%c0_3, %c0_4] : memref<1x128xf32, #tpu.memory_space<vmem>>, vector<1x128xf32>
    %4 = vector.broadcast %3 : vector<1x128xf32> to vector<80x128xf32>
    %5 = arith.addf %2, %4 : vector<80x128xf32>
    %cst_5 = arith.constant 0.000000e+00 : f32
    %6 = vector.broadcast %cst_5 : f32 to vector<80x128xf32>
    %7 = arith.maximumf %5, %6 : vector<80x128xf32>
    %8 = arith.truncf %7 : vector<80x128xf32> to vector<80x128xbf16>
    %c0_6 = arith.constant 0 : index
    %c0_7 = arith.constant 0 : index
    %9 = vector.load %arg4[%c0_6, %c0_7] : memref<80x128xbf16, #tpu.memory_space<vmem>>, vector<80x128xbf16>
    tpu.vector_store %arg4[%c0_6, %c0_7], %8 {strides = array<i32>} : memref<80x128xbf16, #tpu.memory_space<vmem>>, vector<80x128xbf16>,
    return
  }
  func.func @transform_0(%arg0: i32) -> (i32, i32) {
    %c0_i32 = arith.constant 0 : i32
    %c0_i32_0 = arith.constant 0 : i32
    return %arg0, %c0_i32 : i32, i32
  }
  func.func @transform_1(%arg0: i32) -> (i32, i32) {
    %c0_i32 = arith.constant 0 : i32
    %c0_i32_0 = arith.constant 0 : i32
    %c0_i32_1 = arith.constant 0 : i32
    return %c0_i32, %c0_i32_0 : i32, i32
  }
  func.func @transform_2(%arg0: i32) -> (i32, i32) {
    %c0_i32 = arith.constant 0 : i32
    %c0_i32_0 = arith.constant 0 : i32
    %c0_i32_1 = arith.constant 0 : i32
    return %c0_i32, %c0_i32_0 : i32, i32
  }
  func.func @transform_3(%arg0: i32) -> (i32, i32) {
    %c0_i32 = arith.constant 0 : i32
    %c0_i32_0 = arith.constant 0 : i32
    return %arg0, %c0_i32 : i32, i32
  }
}

module attributes {stable_mosaic.version = 11 : i64} {
  func.func @_maxpool_kernel(%arg0: i32, %arg1: memref<32x128xbf16, #tpu.memory_space<vmem>>, %arg2: memref<32x128xbf16, #tpu.memory_space<vmem>>, %arg3: memref<32x128xbf16, #tpu.memory_space<vmem>>, %arg4: memref<32x128xbf16, #tpu.memory_space<vmem>>, %arg5: memref<32x128xbf16, #tpu.memory_space<vmem>>) attributes {dimension_semantics = [#tpu.dimension_semantics<parallel>], iteration_bounds = array<i64: 1>, scalar_prefetch = 0 : i64, scratch_operands = 0 : i64, tpu.core_type = #tpu.core_type<tc>, window_params = [{transform_indices = @transform_0, window_bounds = array<i64: 32, 128>}, {transform_indices = @transform_1, window_bounds = array<i64: 32, 128>}, {transform_indices = @transform_2, window_bounds = array<i64: 32, 128>}, {transform_indices = @transform_3, window_bounds = array<i64: 32, 128>}, {transform_indices = @transform_4, window_bounds = array<i64: 32, 128>}]} {
    %c0 = arith.constant 0 : index
    %c0_0 = arith.constant 0 : index
    %0 = vector.load %arg1[%c0, %c0_0] : memref<32x128xbf16, #tpu.memory_space<vmem>>, vector<32x128xbf16>
    %c0_1 = arith.constant 0 : index
    %c0_2 = arith.constant 0 : index
    %1 = vector.load %arg2[%c0_1, %c0_2] : memref<32x128xbf16, #tpu.memory_space<vmem>>, vector<32x128xbf16>
    %2 = arith.maximumf %0, %1 : vector<32x128xbf16>
    %c0_3 = arith.constant 0 : index
    %c0_4 = arith.constant 0 : index
    %3 = vector.load %arg3[%c0_3, %c0_4] : memref<32x128xbf16, #tpu.memory_space<vmem>>, vector<32x128xbf16>
    %c0_5 = arith.constant 0 : index
    %c0_6 = arith.constant 0 : index
    %4 = vector.load %arg4[%c0_5, %c0_6] : memref<32x128xbf16, #tpu.memory_space<vmem>>, vector<32x128xbf16>
    %5 = arith.maximumf %3, %4 : vector<32x128xbf16>
    %6 = arith.maximumf %2, %5 : vector<32x128xbf16>
    %c0_7 = arith.constant 0 : index
    %c0_8 = arith.constant 0 : index
    %7 = vector.load %arg5[%c0_7, %c0_8] : memref<32x128xbf16, #tpu.memory_space<vmem>>, vector<32x128xbf16>
    tpu.vector_store %arg5[%c0_7, %c0_8], %6 {strides = array<i32>} : memref<32x128xbf16, #tpu.memory_space<vmem>>, vector<32x128xbf16>,
    return
  }
  func.func @transform_0(%arg0: i32) -> (i32, i32) {
    %c0_i32 = arith.constant 0 : i32
    %c0_i32_0 = arith.constant 0 : i32
    return %arg0, %c0_i32 : i32, i32
  }
  func.func @transform_1(%arg0: i32) -> (i32, i32) {
    %c0_i32 = arith.constant 0 : i32
    %c0_i32_0 = arith.constant 0 : i32
    return %arg0, %c0_i32 : i32, i32
  }
  func.func @transform_2(%arg0: i32) -> (i32, i32) {
    %c0_i32 = arith.constant 0 : i32
    %c0_i32_0 = arith.constant 0 : i32
    return %arg0, %c0_i32 : i32, i32
  }
  func.func @transform_3(%arg0: i32) -> (i32, i32) {
    %c0_i32 = arith.constant 0 : i32
    %c0_i32_0 = arith.constant 0 : i32
    return %arg0, %c0_i32 : i32, i32
  }
  func.func @transform_4(%arg0: i32) -> (i32, i32) {
    %c0_i32 = arith.constant 0 : i32
    %c0_i32_0 = arith.constant 0 : i32
    return %arg0, %c0_i32 : i32, i32
  }
}

module attributes {stable_mosaic.version = 11 : i64} {
  func.func @_mm_bias_act_kernel(%arg0: i32, %arg1: memref<16x2048xbf16, #tpu.memory_space<vmem>>, %arg2: memref<2048x256xbf16, #tpu.memory_space<vmem>>, %arg3: memref<1x256xf32, #tpu.memory_space<vmem>>, %arg4: memref<16x256xbf16, #tpu.memory_space<vmem>>) attributes {dimension_semantics = [#tpu.dimension_semantics<parallel>], iteration_bounds = array<i64: 1>, scalar_prefetch = 0 : i64, scratch_operands = 0 : i64, tpu.core_type = #tpu.core_type<tc>, window_params = [{transform_indices = @transform_0, window_bounds = array<i64: 16, 2048>}, {pipeline_mode = #tpu.pipeline_mode<synchronous>, transform_indices = @transform_1, window_bounds = array<i64: 2048, 256>}, {pipeline_mode = #tpu.pipeline_mode<synchronous>, transform_indices = @transform_2, window_bounds = array<i64: 1, 256>}, {transform_indices = @transform_3, window_bounds = array<i64: 16, 256>}]} {
    %c0 = arith.constant 0 : index
    %c0_0 = arith.constant 0 : index
    %0 = vector.load %arg1[%c0, %c0_0] : memref<16x2048xbf16, #tpu.memory_space<vmem>>, vector<16x2048xbf16>
    %c0_1 = arith.constant 0 : index
    %c0_2 = arith.constant 0 : index
    %1 = vector.load %arg2[%c0_1, %c0_2] : memref<2048x256xbf16, #tpu.memory_space<vmem>>, vector<2048x256xbf16>
    %cst = arith.constant dense<0.000000e+00> : vector<16x256xf32>
    %2 = tpu.matmul %0, %1, %cst {dimension_numbers = #tpu.dot_dimension_numbers<[1], [0], [0], [1], [0, 0, 1, 1], [], []>} : vector<16x2048xbf16>, vector<2048x256xbf16>, vector<16x256xf32> -> vector<16x256xf32>
    %c0_3 = arith.constant 0 : index
    %c0_4 = arith.constant 0 : index
    %3 = vector.load %arg3[%c0_3, %c0_4] : memref<1x256xf32, #tpu.memory_space<vmem>>, vector<1x256xf32>
    %4 = vector.broadcast %3 : vector<1x256xf32> to vector<16x256xf32>
    %5 = arith.addf %2, %4 : vector<16x256xf32>
    %cst_5 = arith.constant 0.000000e+00 : f32
    %6 = vector.broadcast %cst_5 : f32 to vector<16x256xf32>
    %7 = arith.maximumf %5, %6 : vector<16x256xf32>
    %8 = arith.truncf %7 : vector<16x256xf32> to vector<16x256xbf16>
    %c0_6 = arith.constant 0 : index
    %c0_7 = arith.constant 0 : index
    %9 = vector.load %arg4[%c0_6, %c0_7] : memref<16x256xbf16, #tpu.memory_space<vmem>>, vector<16x256xbf16>
    tpu.vector_store %arg4[%c0_6, %c0_7], %8 {strides = array<i32>} : memref<16x256xbf16, #tpu.memory_space<vmem>>, vector<16x256xbf16>,
    return
  }
  func.func @transform_0(%arg0: i32) -> (i32, i32) {
    %c0_i32 = arith.constant 0 : i32
    %c0_i32_0 = arith.constant 0 : i32
    return %arg0, %c0_i32 : i32, i32
  }
  func.func @transform_1(%arg0: i32) -> (i32, i32) {
    %c0_i32 = arith.constant 0 : i32
    %c0_i32_0 = arith.constant 0 : i32
    %c0_i32_1 = arith.constant 0 : i32
    return %c0_i32, %c0_i32_0 : i32, i32
  }
  func.func @transform_2(%arg0: i32) -> (i32, i32) {
    %c0_i32 = arith.constant 0 : i32
    %c0_i32_0 = arith.constant 0 : i32
    %c0_i32_1 = arith.constant 0 : i32
    return %c0_i32, %c0_i32_0 : i32, i32
  }
  func.func @transform_3(%arg0: i32) -> (i32, i32) {
    %c0_i32 = arith.constant 0 : i32
    %c0_i32_0 = arith.constant 0 : i32
    return %arg0, %c0_i32 : i32, i32
  }
}

module attributes {stable_mosaic.version = 11 : i64} {
  func.func @_maxpool_kernel(%arg0: i32, %arg1: memref<16x256xbf16, #tpu.memory_space<vmem>>, %arg2: memref<16x256xbf16, #tpu.memory_space<vmem>>, %arg3: memref<16x256xbf16, #tpu.memory_space<vmem>>, %arg4: memref<16x256xbf16, #tpu.memory_space<vmem>>, %arg5: memref<16x256xbf16, #tpu.memory_space<vmem>>) attributes {dimension_semantics = [#tpu.dimension_semantics<parallel>], iteration_bounds = array<i64: 1>, scalar_prefetch = 0 : i64, scratch_operands = 0 : i64, tpu.core_type = #tpu.core_type<tc>, window_params = [{transform_indices = @transform_0, window_bounds = array<i64: 16, 256>}, {transform_indices = @transform_1, window_bounds = array<i64: 16, 256>}, {transform_indices = @transform_2, window_bounds = array<i64: 16, 256>}, {transform_indices = @transform_3, window_bounds = array<i64: 16, 256>}, {transform_indices = @transform_4, window_bounds = array<i64: 16, 256>}]} {
    %c0 = arith.constant 0 : index
    %c0_0 = arith.constant 0 : index
    %0 = vector.load %arg1[%c0, %c0_0] : memref<16x256xbf16, #tpu.memory_space<vmem>>, vector<16x256xbf16>
    %c0_1 = arith.constant 0 : index
    %c0_2 = arith.constant 0 : index
    %1 = vector.load %arg2[%c0_1, %c0_2] : memref<16x256xbf16, #tpu.memory_space<vmem>>, vector<16x256xbf16>
    %2 = arith.maximumf %0, %1 : vector<16x256xbf16>
    %c0_3 = arith.constant 0 : index
    %c0_4 = arith.constant 0 : index
    %3 = vector.load %arg3[%c0_3, %c0_4] : memref<16x256xbf16, #tpu.memory_space<vmem>>, vector<16x256xbf16>
    %c0_5 = arith.constant 0 : index
    %c0_6 = arith.constant 0 : index
    %4 = vector.load %arg4[%c0_5, %c0_6] : memref<16x256xbf16, #tpu.memory_space<vmem>>, vector<16x256xbf16>
    %5 = arith.maximumf %3, %4 : vector<16x256xbf16>
    %6 = arith.maximumf %2, %5 : vector<16x256xbf16>
    %c0_7 = arith.constant 0 : index
    %c0_8 = arith.constant 0 : index
    %7 = vector.load %arg5[%c0_7, %c0_8] : memref<16x256xbf16, #tpu.memory_space<vmem>>, vector<16x256xbf16>
    tpu.vector_store %arg5[%c0_7, %c0_8], %6 {strides = array<i32>} : memref<16x256xbf16, #tpu.memory_space<vmem>>, vector<16x256xbf16>,
    return
  }
  func.func @transform_0(%arg0: i32) -> (i32, i32) {
    %c0_i32 = arith.constant 0 : i32
    %c0_i32_0 = arith.constant 0 : i32
    return %arg0, %c0_i32 : i32, i32
  }
  func.func @transform_1(%arg0: i32) -> (i32, i32) {
    %c0_i32 = arith.constant 0 : i32
    %c0_i32_0 = arith.constant 0 : i32
    return %arg0, %c0_i32 : i32, i32
  }
  func.func @transform_2(%arg0: i32) -> (i32, i32) {
    %c0_i32 = arith.constant 0 : i32
    %c0_i32_0 = arith.constant 0 : i32
    return %arg0, %c0_i32 : i32, i32
  }
  func.func @transform_3(%arg0: i32) -> (i32, i32) {
    %c0_i32 = arith.constant 0 : i32
    %c0_i32_0 = arith.constant 0 : i32
    return %arg0, %c0_i32 : i32, i32
  }
  func.func @transform_4(%arg0: i32) -> (i32, i32) {
    %c0_i32 = arith.constant 0 : i32
    %c0_i32_0 = arith.constant 0 : i32
    return %arg0, %c0_i32 : i32, i32
  }
}

module attributes {stable_mosaic.version = 11 : i64} {
  func.func @_mlp_kernel(%arg0: i32, %arg1: memref<16x256xbf16, #tpu.memory_space<vmem>>, %arg2: memref<256x512xbf16, #tpu.memory_space<vmem>>, %arg3: memref<1x512xf32, #tpu.memory_space<vmem>>, %arg4: memref<512x256xbf16, #tpu.memory_space<vmem>>, %arg5: memref<1x256xf32, #tpu.memory_space<vmem>>, %arg6: memref<256x128xbf16, #tpu.memory_space<vmem>>, %arg7: memref<1x128xf32, #tpu.memory_space<vmem>>, %arg8: memref<16x128xf32, #tpu.memory_space<vmem>>) attributes {dimension_semantics = [#tpu.dimension_semantics<arbitrary>], iteration_bounds = array<i64: 1>, scalar_prefetch = 0 : i64, scratch_operands = 0 : i64, tpu.core_type = #tpu.core_type<tc>, window_params = [{pipeline_mode = #tpu.pipeline_mode<synchronous>, transform_indices = @transform_0, window_bounds = array<i64: 16, 256>}, {pipeline_mode = #tpu.pipeline_mode<synchronous>, transform_indices = @transform_1, window_bounds = array<i64: 256, 512>}, {pipeline_mode = #tpu.pipeline_mode<synchronous>, transform_indices = @transform_2, window_bounds = array<i64: 1, 512>}, {pipeline_mode = #tpu.pipeline_mode<synchronous>, transform_indices = @transform_3, window_bounds = array<i64: 512, 256>}, {pipeline_mode = #tpu.pipeline_mode<synchronous>, transform_indices = @transform_4, window_bounds = array<i64: 1, 256>}, {pipeline_mode = #tpu.pipeline_mode<synchronous>, transform_indices = @transform_5, window_bounds = array<i64: 256, 128>}, {pipeline_mode = #tpu.pipeline_mode<synchronous>, transform_indices = @transform_6, window_bounds = array<i64: 1, 128>}, {pipeline_mode = #tpu.pipeline_mode<synchronous>, transform_indices = @transform_7, window_bounds = array<i64: 16, 128>}]} {
    %c0 = arith.constant 0 : index
    %c0_0 = arith.constant 0 : index
    %0 = vector.load %arg1[%c0, %c0_0] : memref<16x256xbf16, #tpu.memory_space<vmem>>, vector<16x256xbf16>
    %c0_1 = arith.constant 0 : index
    %c0_2 = arith.constant 0 : index
    %1 = vector.load %arg2[%c0_1, %c0_2] : memref<256x512xbf16, #tpu.memory_space<vmem>>, vector<256x512xbf16>
    %cst = arith.constant dense<0.000000e+00> : vector<16x512xf32>
    %2 = tpu.matmul %0, %1, %cst {dimension_numbers = #tpu.dot_dimension_numbers<[1], [0], [0], [1], [0, 0, 1, 1], [], []>} : vector<16x256xbf16>, vector<256x512xbf16>, vector<16x512xf32> -> vector<16x512xf32>
    %c0_3 = arith.constant 0 : index
    %c0_4 = arith.constant 0 : index
    %3 = vector.load %arg3[%c0_3, %c0_4] : memref<1x512xf32, #tpu.memory_space<vmem>>, vector<1x512xf32>
    %4 = vector.broadcast %3 : vector<1x512xf32> to vector<16x512xf32>
    %5 = arith.addf %2, %4 : vector<16x512xf32>
    %cst_5 = arith.constant 0.000000e+00 : f32
    %6 = vector.broadcast %cst_5 : f32 to vector<16x512xf32>
    %7 = arith.cmpf oge, %5, %6 : vector<16x512xf32>
    %cst_6 = arith.constant 0.00999999977 : f32
    %8 = vector.broadcast %cst_6 : f32 to vector<16x512xf32>
    %9 = arith.mulf %8, %5 : vector<16x512xf32>
    %10 = arith.select %7, %5, %9 : vector<16x512xi1>, vector<16x512xf32>
    %11 = arith.truncf %10 : vector<16x512xf32> to vector<16x512xbf16>
    %c0_7 = arith.constant 0 : index
    %c0_8 = arith.constant 0 : index
    %12 = vector.load %arg4[%c0_7, %c0_8] : memref<512x256xbf16, #tpu.memory_space<vmem>>, vector<512x256xbf16>
    %cst_9 = arith.constant dense<0.000000e+00> : vector<16x256xf32>
    %13 = tpu.matmul %11, %12, %cst_9 {dimension_numbers = #tpu.dot_dimension_numbers<[1], [0], [0], [1], [0, 0, 1, 1], [], []>} : vector<16x512xbf16>, vector<512x256xbf16>, vector<16x256xf32> -> vector<16x256xf32>
    %c0_10 = arith.constant 0 : index
    %c0_11 = arith.constant 0 : index
    %14 = vector.load %arg5[%c0_10, %c0_11] : memref<1x256xf32, #tpu.memory_space<vmem>>, vector<1x256xf32>
    %15 = vector.broadcast %14 : vector<1x256xf32> to vector<16x256xf32>
    %16 = arith.addf %13, %15 : vector<16x256xf32>
    %cst_12 = arith.constant 0.000000e+00 : f32
    %17 = vector.broadcast %cst_12 : f32 to vector<16x256xf32>
    %18 = arith.cmpf oge, %16, %17 : vector<16x256xf32>
    %cst_13 = arith.constant 0.00999999977 : f32
    %19 = vector.broadcast %cst_13 : f32 to vector<16x256xf32>
    %20 = arith.mulf %19, %16 : vector<16x256xf32>
    %21 = arith.select %18, %16, %20 : vector<16x256xi1>, vector<16x256xf32>
    %22 = arith.truncf %21 : vector<16x256xf32> to vector<16x256xbf16>
    %c0_14 = arith.constant 0 : index
    %c0_15 = arith.constant 0 : index
    %23 = vector.load %arg6[%c0_14, %c0_15] : memref<256x128xbf16, #tpu.memory_space<vmem>>, vector<256x128xbf16>
    %cst_16 = arith.constant dense<0.000000e+00> : vector<16x128xf32>
    %24 = tpu.matmul %22, %23, %cst_16 {dimension_numbers = #tpu.dot_dimension_numbers<[1], [0], [0], [1], [0, 0, 1, 1], [], []>} : vector<16x256xbf16>, vector<256x128xbf16>, vector<16x128xf32> -> vector<16x128xf32>
    %c0_17 = arith.constant 0 : index
    %c0_18 = arith.constant 0 : index
    %25 = vector.load %arg7[%c0_17, %c0_18] : memref<1x128xf32, #tpu.memory_space<vmem>>, vector<1x128xf32>
    %26 = vector.broadcast %25 : vector<1x128xf32> to vector<16x128xf32>
    %27 = arith.addf %24, %26 : vector<16x128xf32>
    %c0_19 = arith.constant 0 : index
    %c0_20 = arith.constant 0 : index
    %28 = vector.load %arg8[%c0_19, %c0_20] : memref<16x128xf32, #tpu.memory_space<vmem>>, vector<16x128xf32>
    tpu.vector_store %arg8[%c0_19, %c0_20], %27 {strides = array<i32>} : memref<16x128xf32, #tpu.memory_space<vmem>>, vector<16x128xf32>,
    return
  }
  func.func @transform_0(%arg0: i32) -> (i32, i32) {
    %c0_i32 = arith.constant 0 : i32
    %c0_i32_0 = arith.constant 0 : i32
    %c0_i32_1 = arith.constant 0 : i32
    return %c0_i32, %c0_i32_0 : i32, i32
  }
  func.func @transform_1(%arg0: i32) -> (i32, i32) {
    %c0_i32 = arith.constant 0 : i32
    %c0_i32_0 = arith.constant 0 : i32
    %c0_i32_1 = arith.constant 0 : i32
    return %c0_i32, %c0_i32_0 : i32, i32
  }
  func.func @transform_2(%arg0: i32) -> (i32, i32) {
    %c0_i32 = arith.constant 0 : i32
    %c0_i32_0 = arith.constant 0 : i32
    %c0_i32_1 = arith.constant 0 : i32
    return %c0_i32, %c0_i32_0 : i32, i32
  }
  func.func @transform_3(%arg0: i32) -> (i32, i32) {
    %c0_i32 = arith.constant 0 : i32
    %c0_i32_0 = arith.constant 0 : i32
    %c0_i32_1 = arith.constant 0 : i32
    return %c0_i32, %c0_i32_0 : i32, i32
  }
  func.func @transform_4(%arg0: i32) -> (i32, i32) {
    %c0_i32 = arith.constant 0 : i32
    %c0_i32_0 = arith.constant 0 : i32
    %c0_i32_1 = arith.constant 0 : i32
    return %c0_i32, %c0_i32_0 : i32, i32
  }
  func.func @transform_5(%arg0: i32) -> (i32, i32) {
    %c0_i32 = arith.constant 0 : i32
    %c0_i32_0 = arith.constant 0 : i32
    %c0_i32_1 = arith.constant 0 : i32
    return %c0_i32, %c0_i32_0 : i32, i32
  }
  func.func @transform_6(%arg0: i32) -> (i32, i32) {
    %c0_i32 = arith.constant 0 : i32
    %c0_i32_0 = arith.constant 0 : i32
    %c0_i32_1 = arith.constant 0 : i32
    return %c0_i32, %c0_i32_0 : i32, i32
  }
  func.func @transform_7(%arg0: i32) -> (i32, i32) {
    %c0_i32 = arith.constant 0 : i32
    %c0_i32_0 = arith.constant 0 : i32
    %c0_i32_1 = arith.constant 0 : i32
    return %c0_i32, %c0_i32_0 : i32, i32
  }
}

</mosaic_0001>

<llo_original>
// kernel: forward.8
$region0: #{forward.8}
  #allocation0 [shape = 'u32[]', space=smem, size = 0x4, offset = 0x4, fixed_abs, tag = 'smem constant byte address 0x4 - core index']
  #allocation1 [shape = 'u32[144,128]{1,0:T(1,128)}', space=vmem, size = 0x12000, scoped, tag = 'internal scratch']
  %s0 = inlined_call_operand.vmem [shape: bf16[112,64], index: 0, kind: input, shape index: {}]
  %s1 = inlined_call_operand.vmem [shape: bf16[112,64], index: 1, kind: input, shape index: {}]
  %s2 = inlined_call_operand.vmem [shape: bf16[112,64], index: 2, kind: input, shape index: {}]
  %s3 = inlined_call_operand.vmem [shape: bf16[112,64], index: 3, kind: input, shape index: {}]
  %s4 = inlined_call_operand.vmem [shape: bf16[112,64], index: 4, kind: output, shape index: {}]
  %s5 = sld [smem:[#allocation0]]
  $region26: #{forward.8} parent=0
    _
  %s7 = ssub.s32 1, %s5
  %s8 = scalar_select 0, %s7, %s5
  // Predicated region
  $region2: #{forward.8} parent=0 // pred_check
    _
  $region3: #{forward.8} parent=0 // pred_check_branch
    %10 = sbr.rel (0) target = $region5
  $region4: #{forward.8} parent=0 // pred_region
    _
  $region5: #{forward.8} parent=0 // pred_fallthru
    _
  // Predicated region
  $region6: #{forward.8} parent=0 // pred_check
    _
  $region7: #{forward.8} parent=0 // pred_check_branch
    %12 = sbr.rel (0) target = $region9
  $region8: #{forward.8} parent=0 // pred_region
    _
  $region9: #{forward.8} parent=0 // pred_fallthru
    _
  // Predicated region
  $region10: #{forward.8} parent=0 // pred_check
    _
  $region11: #{forward.8} parent=0 // pred_check_branch
    %14 = sbr.rel (0) target = $region13
  $region12: #{forward.8} parent=0 // pred_region
    _
  $region13: #{forward.8} parent=0 // pred_fallthru
    _
  // Predicated region
  $region14: #{forward.8} parent=0 // pred_check
    _
  $region15: #{forward.8} parent=0 // pred_check_branch
    %16 = sbr.rel (0) target = $region17
  $region16: #{forward.8} parent=0 // pred_region
    _
  $region17: #{forward.8} parent=0 // pred_fallthru
    _
  %v17 = vld [vmem:[%s0] sm:$0xf]
  %v18 = vld [vmem:[%s0 + $0x4] sm:$0xf]
  %v19 = vld [vmem:[%s0 + $0x8] sm:$0xf]
  %v20 = vld [vmem:[%s0 + $0xc] sm:$0xf]
  %v21 = vld [vmem:[%s0 + $0x10] sm:$0xf]
  %v22 = vld [vmem:[%s0 + $0x14] sm:$0xf]
  %v23 = vld [vmem:[%s0 + $0x18] sm:$0xf]
  %v24 = vld [vmem:[%s0 + $0x1c] sm:$0xf]
  %v25 = vld [vmem:[%s0 + $0x20] sm:$0xf]
  %v26 = vld [vmem:[%s0 + $0x24] sm:$0xf]
  %v27 = vld [vmem:[%s0 + $0x28] sm:$0xf]
  %v28 = vld [vmem:[%s0 + $0x2c] sm:$0xf]
  %v29 = vld [vmem:[%s0 + $0x30] sm:$0xf]
  %v30 = vld [vmem:[%s0 + $0x34] sm:$0xf]
  %v31 = vld [vmem:[%s1] sm:$0xf]
  %v32 = vld [vmem:[%s1 + $0x4] sm:$0xf]
  %v33 = vld [vmem:[%s1 + $0x8] sm:$0xf]
  %v34 = vld [vmem:[%s1 + $0xc] sm:$0xf]
  %v35 = vld [vmem:[%s1 + $0x10] sm:$0xf]
  %v36 = vld [vmem:[%s1 + $0x14] sm:$0xf]
  %v37 = vld [vmem:[%s1 + $0x18] sm:$0xf]
  %v38 = vld [vmem:[%s1 + $0x1c] sm:$0xf]
  %v39 = vld [vmem:[%s1 + $0x20] sm:$0xf]
  %v40 = vld [vmem:[%s1 + $0x24] sm:$0xf]
  %v41 = vld [vmem:[%s1 + $0x28] sm:$0xf]
  %v42 = vld [vmem:[%s1 + $0x2c] sm:$0xf]
  %v43 = vld [vmem:[%s1 + $0x30] sm:$0xf]
  %v44 = vld [vmem:[%s1 + $0x34] sm:$0xf]
  %v45 = vmax.bf16 %v17, %v31
  %v46 = vmax.bf16 %v18, %v32
  %v47 = vmax.bf16 %v19, %v33
  %v48 = vmax.bf16 %v20, %v34
  %v49 = vmax.bf16 %v21, %v35
  %v50 = vmax.bf16 %v22, %v36
  %v51 = vmax.bf16 %v23, %v37
  %v52 = vmax.bf16 %v24, %v38
  %v53 = vmax.bf16 %v25, %v39
  %v54 = vmax.bf16 %v26, %v40
  %v55 = vmax.bf16 %v27, %v41
  %v56 = vmax.bf16 %v28, %v42
  %v57 = vmax.bf16 %v29, %v43
  %v58 = vmax.bf16 %v30, %v44
  %v59 = vld [vmem:[%s2] sm:$0xf]
  %v60 = vld [vmem:[%s2 + $0x4] sm:$0xf]
  %v61 = vld [vmem:[%s2 + $0x8] sm:$0xf]
  %v62 = vld [vmem:[%s2 + $0xc] sm:$0xf]
  %v63 = vld [vmem:[%s2 + $0x10] sm:$0xf]
  %v64 = vld [vmem:[%s2 + $0x14] sm:$0xf]
  %v65 = vld [vmem:[%s2 + $0x18] sm:$0xf]
  %v66 = vld [vmem:[%s2 + $0x1c] sm:$0xf]
  %v67 = vld [vmem:[%s2 + $0x20] sm:$0xf]
  %v68 = vld [vmem:[%s2 + $0x24] sm:$0xf]
  %v69 = vld [vmem:[%s2 + $0x28] sm:$0xf]
  %v70 = vld [vmem:[%s2 + $0x2c] sm:$0xf]
  %v71 = vld [vmem:[%s2 + $0x30] sm:$0xf]
  %v72 = vld [vmem:[%s2 + $0x34] sm:$0xf]
  %v73 = vld [vmem:[%s3] sm:$0xf]
  %v74 = vld [vmem:[%s3 + $0x4] sm:$0xf]
  %v75 = vld [vmem:[%s3 + $0x8] sm:$0xf]
  %v76 = vld [vmem:[%s3 + $0xc] sm:$0xf]
  %v77 = vld [vmem:[%s3 + $0x10] sm:$0xf]
  %v78 = vld [vmem:[%s3 + $0x14] sm:$0xf]
  %v79 = vld [vmem:[%s3 + $0x18] sm:$0xf]
  %v80 = vld [vmem:[%s3 + $0x1c] sm:$0xf]
  %v81 = vld [vmem:[%s3 + $0x20] sm:$0xf]
  %v82 = vld [vmem:[%s3 + $0x24] sm:$0xf]
  %v83 = vld [vmem:[%s3 + $0x28] sm:$0xf]
  %v84 = vld [vmem:[%s3 + $0x2c] sm:$0xf]
  %v85 = vld [vmem:[%s3 + $0x30] sm:$0xf]
  %v86 = vld [vmem:[%s3 + $0x34] sm:$0xf]
  %v87 = vmax.bf16 %v59, %v73
  %v88 = vmax.bf16 %v60, %v74
  %v89 = vmax.bf16 %v61, %v75
  %v90 = vmax.bf16 %v62, %v76
  %v91 = vmax.bf16 %v63, %v77
  %v92 = vmax.bf16 %v64, %v78
  %v93 = vmax.bf16 %v65, %v79
  %v94 = vmax.bf16 %v66, %v80
  %v95 = vmax.bf16 %v67, %v81
  %v96 = vmax.bf16 %v68, %v82
  %v97 = vmax.bf16 %v69, %v83
  %v98 = vmax.bf16 %v70, %v84
  %v99 = vmax.bf16 %v71, %v85
  %v100 = vmax.bf16 %v72, %v86
  %v101 = vmax.bf16 %v45, %v87
  %v102 = vmax.bf16 %v46, %v88
  %v103 = vmax.bf16 %v47, %v89
  %v104 = vmax.bf16 %v48, %v90
  %v105 = vmax.bf16 %v49, %v91
  %v106 = vmax.bf16 %v50, %v92
  %v107 = vmax.bf16 %v51, %v93
  %v108 = vmax.bf16 %v52, %v94
  %v109 = vmax.bf16 %v53, %v95
  %v110 = vmax.bf16 %v54, %v96
  %v111 = vmax.bf16 %v55, %v97
  %v112 = vmax.bf16 %v56, %v98
  %v113 = vmax.bf16 %v57, %v99
  %v114 = vmax.bf16 %v58, %v100
  %vm115 = vcmask 519168
  %116 = vst.msk [vmem:[%s4] sm:$0xf] %vm115, %v101
  %117 = vst.msk [vmem:[%s4 + $0x4] sm:$0xf] %vm115, %v102
  %118 = vst.msk [vmem:[%s4 + $0x8] sm:$0xf] %vm115, %v103
  %119 = vst.msk [vmem:[%s4 + $0xc] sm:$0xf] %vm115, %v104
  %120 = vst.msk [vmem:[%s4 + $0x10] sm:$0xf] %vm115, %v105
  %121 = vst.msk [vmem:[%s4 + $0x14] sm:$0xf] %vm115, %v106
  %122 = vst.msk [vmem:[%s4 + $0x18] sm:$0xf] %vm115, %v107
  %123 = vst.msk [vmem:[%s4 + $0x1c] sm:$0xf] %vm115, %v108
  %124 = vst.msk [vmem:[%s4 + $0x20] sm:$0xf] %vm115, %v109
  %125 = vst.msk [vmem:[%s4 + $0x24] sm:$0xf] %vm115, %v110
  %126 = vst.msk [vmem:[%s4 + $0x28] sm:$0xf] %vm115, %v111
  %127 = vst.msk [vmem:[%s4 + $0x2c] sm:$0xf] %vm115, %v112
  %128 = vst.msk [vmem:[%s4 + $0x30] sm:$0xf] %vm115, %v113
  %129 = vst.msk [vmem:[%s4 + $0x34] sm:$0xf] %vm115, %v114
  // Predicated region
  $region18: #{forward.8} parent=0 // pred_check
    _
  $region19: #{forward.8} parent=0 // pred_check_branch
    %131 = sbr.rel (0) target = $region21
  $region20: #{forward.8} parent=0 // pred_region
    _
  $region21: #{forward.8} parent=0 // pred_fallthru
    _
  // Predicated region
  $region22: #{forward.8} parent=0 // pred_check
    _
  $region23: #{forward.8} parent=0 // pred_check_branch
    %133 = sbr.rel (0) target = $region25
  $region24: #{forward.8} parent=0 // pred_region
    _
  $region25: #{forward.8} parent=0 // pred_fallthru
    _

// kernel: forward.7
$region0: #{forward.7}
  #allocation0 [shape = 'u32[]', space=smem, size = 0x4, offset = 0x4, fixed_abs, tag = 'smem constant byte address 0x4 - core index']
  #allocation1 [shape = 'u32[144,128]{1,0:T(1,128)}', space=vmem, size = 0x12000, scoped, tag = 'internal scratch']
  %s0 = inlined_call_operand.vmem [shape: bf16[512,128], index: 0, kind: input, shape index: {}]
  %s1 = inlined_call_operand.vmem [shape: bf16[128,128], index: 1, kind: input, shape index: {}]
  %s2 = inlined_call_operand.vmem [shape: f32[1,128], index: 2, kind: input, shape index: {}]
  %s3 = inlined_call_operand.vmem [shape: bf16[512,128], index: 3, kind: output, shape index: {}]
  %s4 = sld [smem:[#allocation0]]
  $region45: #{forward.7} parent=0
    _
  %s6 = ssub.s32 1, %s4
  %s7 = scalar_select 0, %s6, %s4
  loop: start=0, step=1, limit=6
  $region2: #{forward.7} parent=0 // loop_pre_header
    _
  $region3: #{forward.7} parent=0 // loop_header
    %s9 = sphi 0, %s13
    %p10 = scmp.ge.s32.totalorder %s9, 6
    %s19 = sphi 0, %s21
    %s22 = sphi 0, %s19
    %s23 = sphi 0, %s22
    %s39 = sphi 0, %s23
    %s43 = sphi 0, %s43
    %s45 = sphi 0, %s43
    %s46 = sphi 0, %s45
    %s60 = sphi 0, %s46
    %s64 = sphi 0, %s64
    %s66 = sphi 0, %s64
    %s67 = sphi 0, %s66
    %s81 = sphi 0, %s67
    %s87 = sphi 0, %s89
    %s90 = sphi 0, %s87
    %s91 = sphi 0, %s90
    %s107 = sphi 0, %s91
  $region4: #{forward.7} parent=0 // loop_header_branch
    %12 = sbr.rel (%p10) target = $region8
  $region5: #{forward.7} parent=0 // loop_body
    %s14 = ssub.s32 %s9, 1
    %s15 = ssub.s32 %s9, 2
    %s16 = sadd.s32 %s9, 1
    %s17 = ssub.s32 %s9, %s16
    %p18 = scmp.eq.s32.totalorder %s17, 0
    %s20 = sadd.s32 %s19, 1
    %s21 = scalar_select %p18, %s19, %s20
    %p24 = pneg %p18
    %p25 = scmp.eq.s32.totalorder %s9, 3
    %p26 = por %p24, %p25
    %p27 = scmp.ne.s32.totalorder %s19, %s22
    %p28 = scmp.eq.s32.totalorder %s9, 0
    %p29 = por %p27, %p28
    %p30 = scmp.ne.s32.totalorder %s19, %s22
    %p31 = scmp.eq.s32.totalorder %s14, 3
    %p32 = por %p30, %p31
    %p33 = scmp.ne.s32.totalorder %s22, %s23
    %p34 = scmp.eq.s32.totalorder %s14, 0
    %p35 = por %p33, %p34
    %p36 = scmp.ne.s32.totalorder %s22, %s23
    %p37 = scmp.eq.s32.totalorder %s15, 3
    %p38 = por %p36, %p37
    %p40 = scmp.ne.s32.totalorder %s23, %s39
    %p41 = scmp.eq.s32.totalorder %s15, 0
    %p42 = por %p40, %p41
    %s44 = sadd.s32 %s43, 1
    %p47 = scmp.eq.s32.totalorder %s9, 3
    %p48 = scmp.ne.s32.totalorder %s43, %s45
    %p49 = scmp.eq.s32.totalorder %s9, 0
    %p50 = por %p48, %p49
    %p51 = scmp.ne.s32.totalorder %s43, %s45
    %p52 = scmp.eq.s32.totalorder %s14, 3
    %p53 = por %p51, %p52
    %p54 = scmp.ne.s32.totalorder %s45, %s46
    %p55 = scmp.eq.s32.totalorder %s14, 0
    %p56 = por %p54, %p55
    %p57 = scmp.ne.s32.totalorder %s45, %s46
    %p58 = scmp.eq.s32.totalorder %s15, 3
    %p59 = por %p57, %p58
    %p61 = scmp.ne.s32.totalorder %s46, %s60
    %p62 = scmp.eq.s32.totalorder %s15, 0
    %p63 = por %p61, %p62
    %s65 = sadd.s32 %s64, 1
    %p68 = scmp.eq.s32.totalorder %s9, 3
    %p69 = scmp.ne.s32.totalorder %s64, %s66
    %p70 = scmp.eq.s32.totalorder %s9, 0
    %p71 = por %p69, %p70
    %p72 = scmp.ne.s32.totalorder %s64, %s66
    %p73 = scmp.eq.s32.totalorder %s14, 3
    %p74 = por %p72, %p73
    %p75 = scmp.ne.s32.totalorder %s66, %s67
    %p76 = scmp.eq.s32.totalorder %s14, 0
    %p77 = por %p75, %p76
    %p78 = scmp.ne.s32.totalorder %s66, %s67
    %p79 = scmp.eq.s32.totalorder %s15, 3
    %p80 = por %p78, %p79
    %p82 = scmp.ne.s32.totalorder %s67, %s81
    %p83 = scmp.eq.s32.totalorder %s15, 0
    %p84 = por %p82, %p83
    %s85 = ssub.s32 %s9, %s16
    %p86 = scmp.eq.s32.totalorder %s85, 0
    %s88 = sadd.s32 %s87, 1
    %s89 = scalar_select %p86, %s87, %s88
    %p92 = pneg %p86
    %p93 = scmp.eq.s32.totalorder %s9, 3
    %p94 = por %p92, %p93
    %p95 = scmp.ne.s32.totalorder %s87, %s90
    %p96 = scmp.eq.s32.totalorder %s9, 0
    %p97 = por %p95, %p96
    %p98 = scmp.ne.s32.totalorder %s87, %s90
    %p99 = scmp.eq.s32.totalorder %s14, 3
    %p100 = por %p98, %p99
    %p101 = scmp.ne.s32.totalorder %s90, %s91
    %p102 = scmp.eq.s32.totalorder %s14, 0
    %p103 = por %p101, %p102
    %p104 = scmp.ne.s32.totalorder %s90, %s91
    %p105 = scmp.eq.s32.totalorder %s15, 3
    %p106 = por %p104, %p105
    %p108 = scmp.ne.s32.totalorder %s91, %s107
    %p109 = scmp.eq.s32.totalorder %s15, 0
    %p110 = por %p108, %p109
    %p111 = scmp.le.s32.totalorder 1, %s9
    %p112 = scmp.lt.s32.totalorder %s9, 5
    %p113 = pnand %p111, %p112
    %p114 = pneg %p113
    // Predicated region
    $region9: #{forward.7} parent=5 // pred_check
      _
    $region10: #{forward.7} parent=5 // pred_check_branch
      %116 = sbr.rel (%p113) target = $region12
    $region11: #{forward.7} parent=5 // pred_region
      %s117 = ssub.s32 %s9, 1
      // Predicated region
      $region13: #{forward.7} parent=11 // pred_check
        %p118 = pneg %p56
      $region14: #{forward.7} parent=11 // pred_check_branch
        %120 = sbr.rel (%p118) target = $region16
      $region15: #{forward.7} parent=11 // pred_region
        _
      $region16: #{forward.7} parent=11 // pred_fallthru
        _
      // Predicated region
      $region17: #{forward.7} parent=11 // pred_check
        %p121 = pneg %p77
      $region18: #{forward.7} parent=11 // pred_check_branch
        %123 = sbr.rel (%p121) target = $region20
      $region19: #{forward.7} parent=11 // pred_region
        _
      $region20: #{forward.7} parent=11 // pred_fallthru
        _
    $region12: #{forward.7} parent=5 // pred_fallthru
      _
    %p124 = scmp.lt.s32.totalorder %s9, 4
    // Predicated region
    $region21: #{forward.7} parent=5 // pred_check
      %p125 = pneg %p124
    $region22: #{forward.7} parent=5 // pred_check_branch
      %127 = sbr.rel (%p125) target = $region24
    $region23: #{forward.7} parent=5 // pred_region
      // Predicated region
      $region25: #{forward.7} parent=23 // pred_check
        %p128 = pneg %p29
      $region26: #{forward.7} parent=23 // pred_check_branch
        %130 = sbr.rel (%p128) target = $region28
      $region27: #{forward.7} parent=23 // pred_region
        %s131 = smul.u32 16, %s9
        %p132 = scmp.lt.s32.totalorder %s131, 63
        %s133 = scalar_select %p132, %s131, 63
        %s134 = smul.addr %s133, 4
        %s135 = scalar_lea.vmem %s0, %s134
        %s136 = smul.u32 16, %s9
      $region28: #{forward.7} parent=23 // pred_fallthru
        _
    $region24: #{forward.7} parent=5 // pred_fallthru
      _
    %p137 = scmp.le.s32.totalorder 1, %s9
    %p138 = scmp.lt.s32.totalorder %s9, 5
    %p139 = pnand %p137, %p138
    %p140 = pneg %p139
    // Predicated region
    $region29: #{forward.7} parent=5 // pred_check
      _
    $region30: #{forward.7} parent=5 // pred_check_branch
      %142 = sbr.rel (%p139) target = $region32
    $region31: #{forward.7} parent=5 // pred_region
      %s143 = ssub.s32 %s9, 1
      %s144 = smul.u32 16, %s14
      %p145 = scmp.lt.s32.totalorder %s144, 63
      %s146 = scalar_select %p145, %s144, 63
      %s147 = smul.addr %s146, 4
      %s148 = scalar_lea.vmem %s0, %s147
      %p149 = pneg %p35
      %p150 = pneg %p32
      %p151 = pneg %p56
      %p152 = pneg %p53
      %p153 = pneg %p77
      %p154 = pneg %p74
      %p155 = pneg %p103
      %p156 = pneg %p100
      %s157 = smul.u32 16, %s14
      %p158 = scmp.lt.s32.totalorder %s157, 63
      %s159 = scalar_select %p158, %s157, 63
      %s160 = smul.addr %s159, 4
      %s161 = scalar_lea.vmem %s3, %s160
      %s162 = smul.u32 16, %s14
      %p163 = scmp.lt.s32.totalorder %s162, 63
      %s164 = scalar_select %p163, %s162, 63
      %s165 = smul.addr %s164, 4
      %s166 = scalar_lea.vmem %s0, %s165
      %s167 = smul.u32 16, %s14
      %s168 = smul.u32 16, %s14
      %p169 = scmp.lt.s32.totalorder %s168, 63
      %s170 = scalar_select %p169, %s168, 63
      %s171 = smul.addr %s170, 4
      %s172 = scalar_lea.vmem %s3, %s171
      %s173 = smul.u32 16, %s14
      %v175 = vld [vmem:[%s166] sm:$0xf]
      %v176 = vld [vmem:[%s166 + $0x4] sm:$0xf]
      %v177 = vld [vmem:[%s166 + $0x8] sm:$0xf]
      %v178 = vld [vmem:[%s166 + $0xc] sm:$0xf]
      %v179 = vld [vmem:[%s166 + $0x10] sm:$0xf]
      %v180 = vld [vmem:[%s166 + $0x14] sm:$0xf]
      %v181 = vld [vmem:[%s166 + $0x18] sm:$0xf]
      %v182 = vld [vmem:[%s166 + $0x1c] sm:$0xf]
      %v183 = vld [vmem:[%s166 + $0x20] sm:$0xf]
      %v184 = vld [vmem:[%s166 + $0x24] sm:$0xf]
      %v185 = vld [vmem:[%s166 + $0x28] sm:$0xf]
      %v186 = vld [vmem:[%s166 + $0x2c] sm:$0xf]
      %v187 = vld [vmem:[%s166 + $0x30] sm:$0xf]
      %v188 = vld [vmem:[%s166 + $0x34] sm:$0xf]
      %v189 = vld [vmem:[%s166 + $0x38] sm:$0xf]
      %v190 = vld [vmem:[%s166 + $0x3c] sm:$0xf]
      %v191 = vld [vmem:[%s1] sm:$0xf]
      %v192 = vld [vmem:[%s1 + $0x4] sm:$0xf]
      %v193 = vld [vmem:[%s1 + $0x8] sm:$0xf]
      %v194 = vld [vmem:[%s1 + $0xc] sm:$0xf]
      %v195 = vld [vmem:[%s1 + $0x10] sm:$0xf]
      %v196 = vld [vmem:[%s1 + $0x14] sm:$0xf]
      %v197 = vld [vmem:[%s1 + $0x18] sm:$0xf]
      %v198 = vld [vmem:[%s1 + $0x1c] sm:$0xf]
      %v199 = vld [vmem:[%s1 + $0x20] sm:$0xf]
      %v200 = vld [vmem:[%s1 + $0x24] sm:$0xf]
      %v201 = vld [vmem:[%s1 + $0x28] sm:$0xf]
      %v202 = vld [vmem:[%s1 + $0x2c] sm:$0xf]
      %v203 = vld [vmem:[%s1 + $0x30] sm:$0xf]
      %v204 = vld [vmem:[%s1 + $0x34] sm:$0xf]
      %v205 = vld [vmem:[%s1 + $0x38] sm:$0xf]
      %v206 = vld [vmem:[%s1 + $0x3c] sm:$0xf]
      %v207 = vld [vmem:[%s2] sm:$0x1]
      %v209 = vlaneseq
      %v210 = vshrl.u32 %v209, 7
      %v211 = vsub.s32 0, %v210
      %v212 = vrot.slane %v207, %v211
      %v230 = vunpack.c.l.b16 %v175
      %v231 = vunpack.c.l.b16 %v176
      %v232 = vunpack.c.l.b16 %v177
      %v233 = vunpack.c.l.b16 %v178
      %v234 = vunpack.c.l.b16 %v179
      %v235 = vunpack.c.l.b16 %v180
      %v236 = vunpack.c.l.b16 %v181
      %v237 = vunpack.c.l.b16 %v182
      %v238 = vunpack.c.l.b16 %v183
      %v239 = vunpack.c.l.b16 %v184
      %v240 = vunpack.c.l.b16 %v185
      %v241 = vunpack.c.l.b16 %v186
      %v242 = vunpack.c.l.b16 %v187
      %v243 = vunpack.c.l.b16 %v188
      %v244 = vunpack.c.l.b16 %v189
      %v245 = vunpack.c.l.b16 %v190
      %v246 = vpack.c.b16 %v231, %v230
      %v247 = vpack.c.b16 %v233, %v232
      %v248 = vpack.c.b16 %v235, %v234
      %v249 = vpack.c.b16 %v237, %v236
      %v250 = vpack.c.b16 %v239, %v238
      %v251 = vpack.c.b16 %v241, %v240
      %v252 = vpack.c.b16 %v243, %v242
      %v253 = vpack.c.b16 %v245, %v244
      %v278 = vunpack.c.l.b16 %v191
      %v279 = vunpack.c.l.b16 %v192
      %v280 = vunpack.c.l.b16 %v193
      %v281 = vunpack.c.l.b16 %v194
      %v282 = vunpack.c.l.b16 %v195
      %v283 = vunpack.c.l.b16 %v196
      %v284 = vunpack.c.l.b16 %v197
      %v285 = vunpack.c.l.b16 %v198
      %v286 = vunpack.c.l.b16 %v199
      %v287 = vunpack.c.l.b16 %v200
      %v288 = vunpack.c.l.b16 %v201
      %v289 = vunpack.c.l.b16 %v202
      %v290 = vunpack.c.l.b16 %v203
      %v291 = vunpack.c.l.b16 %v204
      %v292 = vunpack.c.l.b16 %v205
      %v293 = vunpack.c.l.b16 %v206
      %v294 = vpack.c.b16 %v279, %v278
      %v295 = vpack.c.b16 %v281, %v280
      %v296 = vpack.c.b16 %v283, %v282
      %v297 = vpack.c.b16 %v285, %v284
      %v298 = vpack.c.b16 %v287, %v286
      %v299 = vpack.c.b16 %v289, %v288
      %v300 = vpack.c.b16 %v291, %v290
      %v301 = vpack.c.b16 %v293, %v292
      %310 = vmatprep.subr.bf16.mxu0 0
      %311 = vmatpush1.bf16.msra.mxu0 %v294
      %312 = vmatprep.subr.bf16.mxu0 0
      %313 = vmatpush1.bf16.msra.mxu0 %v295
      %314 = vmatprep.subr.bf16.mxu0 0
      %315 = vmatpush1.bf16.msra.mxu0 %v296
      %316 = vmatprep.subr.bf16.mxu0 0
      %317 = vmatpush1.bf16.msra.mxu0 %v297
      %318 = vmatprep.subr.bf16.mxu0 0
      %319 = vmatpush1.bf16.msra.mxu0 %v298
      %320 = vmatprep.subr.bf16.mxu0 0
      %321 = vmatpush1.bf16.msra.mxu0 %v299
      %322 = vmatprep.subr.bf16.mxu0 0
      %323 = vmatpush1.bf16.msra.mxu0 %v300
      %324 = vmatprep.subr.bf16.mxu0 0
      %325 = vmatpush1.bf16.msra.mxu0 %v301
      %326 = vmatprep.subr.bf16.mxu0 0
      %327 = vmatpush1.bf16.msra.mxu0 0
      %328 = vmatprep.subr.bf16.mxu0 0
      %329 = vmatpush1.bf16.msra.mxu0 0
      %330 = vmatprep.subr.bf16.mxu0 0
      %331 = vmatpush1.bf16.msra.mxu0 0
      %332 = vmatprep.subr.bf16.mxu0 0
      %333 = vmatpush1.bf16.msra.mxu0 0
      %334 = vmatprep.subr.bf16.mxu0 0
      %335 = vmatpush1.bf16.msra.mxu0 0
      %336 = vmatprep.subr.bf16.mxu0 0
      %337 = vmatpush1.bf16.msra.mxu0 0
      %338 = vmatprep.subr.bf16.mxu0 0
      %339 = vmatpush1.bf16.msra.mxu0 0
      %340 = vmatprep.subr.bf16.mxu0 0
      %341 = vmatpush1.bf16.msra.mxu0 0
      %342 = vmatprep.mubr.bf16.mxu0 0
      %343 = vmatmul.mubr.bf16.gmra.mrb[0].mxu0 %v246
      %v344 = vpop.f32.mrb[0].mxu0
      %v345 = vadd.f32 %v212, %v344
      %v346 = vpop.f32.mrb[0].mxu0
      %v347 = vpop.f32.mrb[0].mxu0
      %v348 = vadd.f32 %v212, %v347
      %v349 = vpop.f32.mrb[0].mxu0
      %350 = vmatprep.mubr.bf16.mxu0 0
      %351 = vmatmul.mubr.bf16.gmra.mrb[0].mxu0 %v247
      %v352 = vpop.f32.mrb[0].mxu0
      %v353 = vadd.f32 %v212, %v352
      %v354 = vpop.f32.mrb[0].mxu0
      %v355 = vpop.f32.mrb[0].mxu0
      %v356 = vadd.f32 %v212, %v355
      %v357 = vpop.f32.mrb[0].mxu0
      %358 = vmatprep.mubr.bf16.mxu0 0
      %359 = vmatmul.mubr.bf16.gmra.mrb[0].mxu0 %v248
      %v360 = vpop.f32.mrb[0].mxu0
      %v361 = vadd.f32 %v212, %v360
      %v362 = vpop.f32.mrb[0].mxu0
      %v363 = vpop.f32.mrb[0].mxu0
      %v364 = vadd.f32 %v212, %v363
      %v365 = vpop.f32.mrb[0].mxu0
      %366 = vmatprep.mubr.bf16.mxu0 0
      %367 = vmatmul.mubr.bf16.gmra.mrb[0].mxu0 %v249
      %v368 = vpop.f32.mrb[0].mxu0
      %v369 = vadd.f32 %v212, %v368
      %v370 = vpop.f32.mrb[0].mxu0
      %v371 = vpop.f32.mrb[0].mxu0
      %v372 = vadd.f32 %v212, %v371
      %v373 = vpop.f32.mrb[0].mxu0
      %374 = vmatprep.mubr.bf16.mxu0 0
      %375 = vmatmul.mubr.bf16.gmra.mrb[0].mxu0 %v250
      %v376 = vpop.f32.mrb[0].mxu0
      %v377 = vadd.f32 %v212, %v376
      %v378 = vpop.f32.mrb[0].mxu0
      %v379 = vpop.f32.mrb[0].mxu0
      %v380 = vadd.f32 %v212, %v379
      %v381 = vpop.f32.mrb[0].mxu0
      %382 = vmatprep.mubr.bf16.mxu0 0
      %383 = vmatmul.mubr.bf16.gmra.mrb[0].mxu0 %v251
      %v384 = vpop.f32.mrb[0].mxu0
      %v385 = vadd.f32 %v212, %v384
      %v386 = vpop.f32.mrb[0].mxu0
      %v387 = vpop.f32.mrb[0].mxu0
      %v388 = vadd.f32 %v212, %v387
      %v389 = vpop.f32.mrb[0].mxu0
      %390 = vmatprep.mubr.bf16.mxu0 0
      %391 = vmatmul.mubr.bf16.gmra.mrb[0].mxu0 %v252
      %v392 = vpop.f32.mrb[0].mxu0
      %v393 = vadd.f32 %v212, %v392
      %v394 = vpop.f32.mrb[0].mxu0
      %v395 = vpop.f32.mrb[0].mxu0
      %v396 = vadd.f32 %v212, %v395
      %v397 = vpop.f32.mrb[0].mxu0
      %398 = vmatprep.mubr.bf16.mxu0 0
      %399 = vmatmul.mubr.bf16.gmra.mrb[0].mxu0 %v253
      %v400 = vpop.f32.mrb[0].mxu0
      %v401 = vadd.f32 %v212, %v400
      %v402 = vpop.f32.mrb[0].mxu0
      %v403 = vpop.f32.mrb[0].mxu0
      %v404 = vadd.f32 %v212, %v403
      %v405 = vpop.f32.mrb[0].mxu0
      %406 = vdwg.mxu0
      %v407 = vmax.f32 %v345, 0.0
      %v408 = vmax.f32 %v348, 0.0
      %v409 = vmax.f32 %v353, 0.0
      %v410 = vmax.f32 %v356, 0.0
      %v411 = vmax.f32 %v361, 0.0
      %v412 = vmax.f32 %v364, 0.0
      %v413 = vmax.f32 %v369, 0.0
      %v414 = vmax.f32 %v372, 0.0
      %v415 = vmax.f32 %v377, 0.0
      %v416 = vmax.f32 %v380, 0.0
      %v417 = vmax.f32 %v385, 0.0
      %v418 = vmax.f32 %v388, 0.0
      %v419 = vmax.f32 %v393, 0.0
      %v420 = vmax.f32 %v396, 0.0
      %v421 = vmax.f32 %v401, 0.0
      %v422 = vmax.f32 %v404, 0.0
      %v423 = vpack.c.bf16 %v408, %v407
      %v424 = vpack.c.bf16 %v410, %v409
      %v425 = vpack.c.bf16 %v412, %v411
      %v426 = vpack.c.bf16 %v414, %v413
      %v427 = vpack.c.bf16 %v416, %v415
      %v428 = vpack.c.bf16 %v418, %v417
      %v429 = vpack.c.bf16 %v420, %v419
      %v430 = vpack.c.bf16 %v422, %v421
      %v439 = vunpack.c.l.b16 %v423
      %v440 = vunpack.c.h.b16 %v423
      %v441 = vunpack.c.l.b16 %v424
      %v442 = vunpack.c.h.b16 %v424
      %v443 = vunpack.c.l.b16 %v425
      %v444 = vunpack.c.h.b16 %v425
      %v445 = vunpack.c.l.b16 %v426
      %v446 = vunpack.c.h.b16 %v426
      %v447 = vunpack.c.l.b16 %v427
      %v448 = vunpack.c.h.b16 %v427
      %v449 = vunpack.c.l.b16 %v428
      %v450 = vunpack.c.h.b16 %v428
      %v451 = vunpack.c.l.b16 %v429
      %v452 = vunpack.c.h.b16 %v429
      %v453 = vunpack.c.l.b16 %v430
      %v454 = vunpack.c.h.b16 %v430
      %v455 = vpack.c.b16 %v439, %v439
      %v456 = vpack.c.b16 %v440, %v440
      %v457 = vpack.c.b16 %v441, %v441
      %v458 = vpack.c.b16 %v442, %v442
      %v459 = vpack.c.b16 %v443, %v443
      %v460 = vpack.c.b16 %v444, %v444
      %v461 = vpack.c.b16 %v445, %v445
      %v462 = vpack.c.b16 %v446, %v446
      %v463 = vpack.c.b16 %v447, %v447
      %v464 = vpack.c.b16 %v448, %v448
      %v465 = vpack.c.b16 %v449, %v449
      %v466 = vpack.c.b16 %v450, %v450
      %v467 = vpack.c.b16 %v451, %v451
      %v468 = vpack.c.b16 %v452, %v452
      %v469 = vpack.c.b16 %v453, %v453
      %v470 = vpack.c.b16 %v454, %v454
      %487 = vst [vmem:[%s172] sm:$0xf] %v455
      %488 = vst [vmem:[%s172 + $0x4] sm:$0xf] %v456
      %489 = vst [vmem:[%s172 + $0x8] sm:$0xf] %v457
      %490 = vst [vmem:[%s172 + $0xc] sm:$0xf] %v458
      %491 = vst [vmem:[%s172 + $0x10] sm:$0xf] %v459
      %492 = vst [vmem:[%s172 + $0x14] sm:$0xf] %v460
      %493 = vst [vmem:[%s172 + $0x18] sm:$0xf] %v461
      %494 = vst [vmem:[%s172 + $0x1c] sm:$0xf] %v462
      %495 = vst [vmem:[%s172 + $0x20] sm:$0xf] %v463
      %496 = vst [vmem:[%s172 + $0x24] sm:$0xf] %v464
      %497 = vst [vmem:[%s172 + $0x28] sm:$0xf] %v465
      %498 = vst [vmem:[%s172 + $0x2c] sm:$0xf] %v466
      %499 = vst [vmem:[%s172 + $0x30] sm:$0xf] %v467
      %500 = vst [vmem:[%s172 + $0x34] sm:$0xf] %v468
      %501 = vst [vmem:[%s172 + $0x38] sm:$0xf] %v469
      %502 = vst [vmem:[%s172 + $0x3c] sm:$0xf] %v470
      %s503 = smul.u32 16, %s14
      %p504 = scmp.lt.s32.totalorder %s503, 63
      %s505 = scalar_select %p504, %s503, 63
      %s506 = smul.addr %s505, 4
      %s507 = scalar_lea.vmem %s3, %s506
      // Predicated region
      $region33: #{forward.7} parent=31 // pred_check
        %p508 = pneg %p100
      $region34: #{forward.7} parent=31 // pred_check_branch
        %510 = sbr.rel (%p508) target = $region36
      $region35: #{forward.7} parent=31 // pred_region
        %s511 = smul.u32 16, %s14
      $region36: #{forward.7} parent=31 // pred_fallthru
        _
    $region32: #{forward.7} parent=5 // pred_fallthru
      _
    %p512 = scmp.le.s32.totalorder 2, %s9
    // Predicated region
    $region37: #{forward.7} parent=5 // pred_check
      %p513 = pneg %p512
    $region38: #{forward.7} parent=5 // pred_check_branch
      %515 = sbr.rel (%p513) target = $region40
    $region39: #{forward.7} parent=5 // pred_region
      %s516 = ssub.s32 %s9, 2
      // Predicated region
      $region41: #{forward.7} parent=39 // pred_check
        %p517 = pneg %p106
      $region42: #{forward.7} parent=39 // pred_check_branch
        %519 = sbr.rel (%p517) target = $region44
      $region43: #{forward.7} parent=39 // pred_region
        %s520 = smul.u32 16, %s15
        %p521 = scmp.lt.s32.totalorder %s520, 63
        %s522 = scalar_select %p521, %s520, 63
        %s523 = smul.addr %s522, 4
        %s524 = scalar_lea.vmem %s3, %s523
      $region44: #{forward.7} parent=39 // pred_fallthru
        _
    $region40: #{forward.7} parent=5 // pred_fallthru
      _
  $region6: #{forward.7} parent=0 // loop_footer
    %s13 = sadd.s32 1, %s9
  $region7: #{forward.7} parent=0 // loop_footer_branch
    %8 = sbr.rel target = $region3
  $region8: #{forward.7} parent=0 // loop_exit
    _

// kernel: forward.9
$region0: #{forward.9}
  #allocation0 [shape = 'u32[]', space=smem, size = 0x4, offset = 0x4, fixed_abs, tag = 'smem constant byte address 0x4 - core index']
  #allocation1 [shape = 'u32[144,128]{1,0:T(1,128)}', space=vmem, size = 0x12000, scoped, tag = 'internal scratch']
  %s0 = inlined_call_operand.vmem [shape: bf16[80,1024], index: 0, kind: input, shape index: {}]
  %s1 = inlined_call_operand.vmem [shape: bf16[1024,128], index: 1, kind: input, shape index: {}]
  %s2 = inlined_call_operand.vmem [shape: f32[1,128], index: 2, kind: input, shape index: {}]
  %s3 = inlined_call_operand.vmem [shape: bf16[80,128], index: 3, kind: output, shape index: {}]
  %s4 = sld [smem:[#allocation0]]
  $region22: #{forward.9} parent=0
    _
  %s6 = ssub.s32 1, %s4
  %s7 = scalar_select 0, %s6, %s4
  // Predicated region
  $region2: #{forward.9} parent=0 // pred_check
    _
  $region3: #{forward.9} parent=0 // pred_check_branch
    %9 = sbr.rel (0) target = $region5
  $region4: #{forward.9} parent=0 // pred_region
    _
  $region5: #{forward.9} parent=0 // pred_fallthru
    _
  // Predicated region
  $region6: #{forward.9} parent=0 // pred_check
    _
  $region7: #{forward.9} parent=0 // pred_check_branch
    %11 = sbr.rel (0) target = $region9
  $region8: #{forward.9} parent=0 // pred_region
    _
  $region9: #{forward.9} parent=0 // pred_fallthru
    _
  // Predicated region
  $region10: #{forward.9} parent=0 // pred_check
    _
  $region11: #{forward.9} parent=0 // pred_check_branch
    %13 = sbr.rel (0) target = $region13
  $region12: #{forward.9} parent=0 // pred_region
    _
  $region13: #{forward.9} parent=0 // pred_fallthru
    _
  %v15 = vld [vmem:[%s0] sm:$0xff]
  %v16 = vld [vmem:[%s0 + $0x8] sm:$0xff]
  %v17 = vld [vmem:[%s0 + $0x10] sm:$0xff]
  %v18 = vld [vmem:[%s0 + $0x18] sm:$0xff]
  %v19 = vld [vmem:[%s0 + $0x20] sm:$0xff]
  %v20 = vld [vmem:[%s0 + $0x28] sm:$0xff]
  %v21 = vld [vmem:[%s0 + $0x30] sm:$0xff]
  %v22 = vld [vmem:[%s0 + $0x38] sm:$0xff]
  %v23 = vld [vmem:[%s0 + $0x40] sm:$0xff]
  %v24 = vld [vmem:[%s0 + $0x48] sm:$0xff]
  %v25 = vld [vmem:[%s0 + $0x50] sm:$0xff]
  %v26 = vld [vmem:[%s0 + $0x58] sm:$0xff]
  %v27 = vld [vmem:[%s0 + $0x60] sm:$0xff]
  %v28 = vld [vmem:[%s0 + $0x68] sm:$0xff]
  %v29 = vld [vmem:[%s0 + $0x70] sm:$0xff]
  %v30 = vld [vmem:[%s0 + $0x78] sm:$0xff]
  %v31 = vld [vmem:[%s0 + $0x80] sm:$0xff]
  %v32 = vld [vmem:[%s0 + $0x88] sm:$0xff]
  %v33 = vld [vmem:[%s0 + $0x90] sm:$0xff]
  %v34 = vld [vmem:[%s0 + $0x98] sm:$0xff]
  %v35 = vld [vmem:[%s0 + $0xa0] sm:$0xff]
  %v36 = vld [vmem:[%s0 + $0xa8] sm:$0xff]
  %v37 = vld [vmem:[%s0 + $0xb0] sm:$0xff]
  %v38 = vld [vmem:[%s0 + $0xb8] sm:$0xff]
  %v39 = vld [vmem:[%s0 + $0xc0] sm:$0xff]
  %v40 = vld [vmem:[%s0 + $0xc8] sm:$0xff]
  %v41 = vld [vmem:[%s0 + $0xd0] sm:$0xff]
  %v42 = vld [vmem:[%s0 + $0xd8] sm:$0xff]
  %v43 = vld [vmem:[%s0 + $0xe0] sm:$0xff]
  %v44 = vld [vmem:[%s0 + $0xe8] sm:$0xff]
  %v45 = vld [vmem:[%s0 + $0xf0] sm:$0xff]
  %v46 = vld [vmem:[%s0 + $0xf8] sm:$0xff]
  %v47 = vld [vmem:[%s0 + $0x100] sm:$0xff]
  %v48 = vld [vmem:[%s0 + $0x108] sm:$0xff]
  %v49 = vld [vmem:[%s0 + $0x110] sm:$0xff]
  %v50 = vld [vmem:[%s0 + $0x118] sm:$0xff]
  %v51 = vld [vmem:[%s0 + $0x120] sm:$0xff]
  %v52 = vld [vmem:[%s0 + $0x128] sm:$0xff]
  %v53 = vld [vmem:[%s0 + $0x130] sm:$0xff]
  %v54 = vld [vmem:[%s0 + $0x138] sm:$0xff]
  %v55 = vld [vmem:[%s1] sm:$0xf]
  %v56 = vld [vmem:[%s1 + $0x4] sm:$0xf]
  %v57 = vld [vmem:[%s1 + $0x8] sm:$0xf]
  %v58 = vld [vmem:[%s1 + $0xc] sm:$0xf]
  %v59 = vld [vmem:[%s1 + $0x10] sm:$0xf]
  %v60 = vld [vmem:[%s1 + $0x14] sm:$0xf]
  %v61 = vld [vmem:[%s1 + $0x18] sm:$0xf]
  %v62 = vld [vmem:[%s1 + $0x1c] sm:$0xf]
  %v63 = vld [vmem:[%s1 + $0x20] sm:$0xf]
  %v64 = vld [vmem:[%s1 + $0x24] sm:$0xf]
  %v65 = vld [vmem:[%s1 + $0x28] sm:$0xf]
  %v66 = vld [vmem:[%s1 + $0x2c] sm:$0xf]
  %v67 = vld [vmem:[%s1 + $0x30] sm:$0xf]
  %v68 = vld [vmem:[%s1 + $0x34] sm:$0xf]
  %v69 = vld [vmem:[%s1 + $0x38] sm:$0xf]
  %v70 = vld [vmem:[%s1 + $0x3c] sm:$0xf]
  %v71 = vld [vmem:[%s1 + $0x40] sm:$0xf]
  %v72 = vld [vmem:[%s1 + $0x44] sm:$0xf]
  %v73 = vld [vmem:[%s1 + $0x48] sm:$0xf]
  %v74 = vld [vmem:[%s1 + $0x4c] sm:$0xf]
  %v75 = vld [vmem:[%s1 + $0x50] sm:$0xf]
  %v76 = vld [vmem:[%s1 + $0x54] sm:$0xf]
  %v77 = vld [vmem:[%s1 + $0x58] sm:$0xf]
  %v78 = vld [vmem:[%s1 + $0x5c] sm:$0xf]
  %v79 = vld [vmem:[%s1 + $0x60] sm:$0xf]
  %v80 = vld [vmem:[%s1 + $0x64] sm:$0xf]
  %v81 = vld [vmem:[%s1 + $0x68] sm:$0xf]
  %v82 = vld [vmem:[%s1 + $0x6c] sm:$0xf]
  %v83 = vld [vmem:[%s1 + $0x70] sm:$0xf]
  %v84 = vld [vmem:[%s1 + $0x74] sm:$0xf]
  %v85 = vld [vmem:[%s1 + $0x78] sm:$0xf]
  %v86 = vld [vmem:[%s1 + $0x7c] sm:$0xf]
  %v87 = vld [vmem:[%s1 + $0x80] sm:$0xf]
  %v88 = vld [vmem:[%s1 + $0x84] sm:$0xf]
  %v89 = vld [vmem:[%s1 + $0x88] sm:$0xf]
  %v90 = vld [vmem:[%s1 + $0x8c] sm:$0xf]
  %v91 = vld [vmem:[%s1 + $0x90] sm:$0xf]
  %v92 = vld [vmem:[%s1 + $0x94] sm:$0xf]
  %v93 = vld [vmem:[%s1 + $0x98] sm:$0xf]
  %v94 = vld [vmem:[%s1 + $0x9c] sm:$0xf]
  %v95 = vld [vmem:[%s1 + $0xa0] sm:$0xf]
  %v96 = vld [vmem:[%s1 + $0xa4] sm:$0xf]
  %v97 = vld [vmem:[%s1 + $0xa8] sm:$0xf]
  %v98 = vld [vmem:[%s1 + $0xac] sm:$0xf]
  %v99 = vld [vmem:[%s1 + $0xb0] sm:$0xf]
  %v100 = vld [vmem:[%s1 + $0xb4] sm:$0xf]
  %v101 = vld [vmem:[%s1 + $0xb8] sm:$0xf]
  %v102 = vld [vmem:[%s1 + $0xbc] sm:$0xf]
  %v103 = vld [vmem:[%s1 + $0xc0] sm:$0xf]
  %v104 = vld [vmem:[%s1 + $0xc4] sm:$0xf]
  %v105 = vld [vmem:[%s1 + $0xc8] sm:$0xf]
  %v106 = vld [vmem:[%s1 + $0xcc] sm:$0xf]
  %v107 = vld [vmem:[%s1 + $0xd0] sm:$0xf]
  %v108 = vld [vmem:[%s1 + $0xd4] sm:$0xf]
  %v109 = vld [vmem:[%s1 + $0xd8] sm:$0xf]
  %v110 = vld [vmem:[%s1 + $0xdc] sm:$0xf]
  %v111 = vld [vmem:[%s1 + $0xe0] sm:$0xf]
  %v112 = vld [vmem:[%s1 + $0xe4] sm:$0xf]
  %v113 = vld [vmem:[%s1 + $0xe8] sm:$0xf]
  %v114 = vld [vmem:[%s1 + $0xec] sm:$0xf]
  %v115 = vld [vmem:[%s1 + $0xf0] sm:$0xf]
  %v116 = vld [vmem:[%s1 + $0xf4] sm:$0xf]
  %v117 = vld [vmem:[%s1 + $0xf8] sm:$0xf]
  %v118 = vld [vmem:[%s1 + $0xfc] sm:$0xf]
  %v119 = vld [vmem:[%s1 + $0x100] sm:$0xf]
  %v120 = vld [vmem:[%s1 + $0x104] sm:$0xf]
  %v121 = vld [vmem:[%s1 + $0x108] sm:$0xf]
  %v122 = vld [vmem:[%s1 + $0x10c] sm:$0xf]
  %v123 = vld [vmem:[%s1 + $0x110] sm:$0xf]
  %v124 = vld [vmem:[%s1 + $0x114] sm:$0xf]
  %v125 = vld [vmem:[%s1 + $0x118] sm:$0xf]
  %v126 = vld [vmem:[%s1 + $0x11c] sm:$0xf]
  %v127 = vld [vmem:[%s1 + $0x120] sm:$0xf]
  %v128 = vld [vmem:[%s1 + $0x124] sm:$0xf]
  %v129 = vld [vmem:[%s1 + $0x128] sm:$0xf]
  %v130 = vld [vmem:[%s1 + $0x12c] sm:$0xf]
  %v131 = vld [vmem:[%s1 + $0x130] sm:$0xf]
  %v132 = vld [vmem:[%s1 + $0x134] sm:$0xf]
  %v133 = vld [vmem:[%s1 + $0x138] sm:$0xf]
  %v134 = vld [vmem:[%s1 + $0x13c] sm:$0xf]
  %v135 = vld [vmem:[%s1 + $0x140] sm:$0xf]
  %v136 = vld [vmem:[%s1 + $0x144] sm:$0xf]
  %v137 = vld [vmem:[%s1 + $0x148] sm:$0xf]
  %v138 = vld [vmem:[%s1 + $0x14c] sm:$0xf]
  %v139 = vld [vmem:[%s1 + $0x150] sm:$0xf]
  %v140 = vld [vmem:[%s1 + $0x154] sm:$0xf]
  %v141 = vld [vmem:[%s1 + $0x158] sm:$0xf]
  %v142 = vld [vmem:[%s1 + $0x15c] sm:$0xf]
  %v143 = vld [vmem:[%s1 + $0x160] sm:$0xf]
  %v144 = vld [vmem:[%s1 + $0x164] sm:$0xf]
  %v145 = vld [vmem:[%s1 + $0x168] sm:$0xf]
  %v146 = vld [vmem:[%s1 + $0x16c] sm:$0xf]
  %v147 = vld [vmem:[%s1 + $0x170] sm:$0xf]
  %v148 = vld [vmem:[%s1 + $0x174] sm:$0xf]
  %v149 = vld [vmem:[%s1 + $0x178] sm:$0xf]
  %v150 = vld [vmem:[%s1 + $0x17c] sm:$0xf]
  %v151 = vld [vmem:[%s1 + $0x180] sm:$0xf]
  %v152 = vld [vmem:[%s1 + $0x184] sm:$0xf]
  %v153 = vld [vmem:[%s1 + $0x188] sm:$0xf]
  %v154 = vld [vmem:[%s1 + $0x18c] sm:$0xf]
  %v155 = vld [vmem:[%s1 + $0x190] sm:$0xf]
  %v156 = vld [vmem:[%s1 + $0x194] sm:$0xf]
  %v157 = vld [vmem:[%s1 + $0x198] sm:$0xf]
  %v158 = vld [vmem:[%s1 + $0x19c] sm:$0xf]
  %v159 = vld [vmem:[%s1 + $0x1a0] sm:$0xf]
  %v160 = vld [vmem:[%s1 + $0x1a4] sm:$0xf]
  %v161 = vld [vmem:[%s1 + $0x1a8] sm:$0xf]
  %v162 = vld [vmem:[%s1 + $0x1ac] sm:$0xf]
  %v163 = vld [vmem:[%s1 + $0x1b0] sm:$0xf]
  %v164 = vld [vmem:[%s1 + $0x1b4] sm:$0xf]
  %v165 = vld [vmem:[%s1 + $0x1b8] sm:$0xf]
  %v166 = vld [vmem:[%s1 + $0x1bc] sm:$0xf]
  %v167 = vld [vmem:[%s1 + $0x1c0] sm:$0xf]
  %v168 = vld [vmem:[%s1 + $0x1c4] sm:$0xf]
  %v169 = vld [vmem:[%s1 + $0x1c8] sm:$0xf]
  %v170 = vld [vmem:[%s1 + $0x1cc] sm:$0xf]
  %v171 = vld [vmem:[%s1 + $0x1d0] sm:$0xf]
  %v172 = vld [vmem:[%s1 + $0x1d4] sm:$0xf]
  %v173 = vld [vmem:[%s1 + $0x1d8] sm:$0xf]
  %v174 = vld [vmem:[%s1 + $0x1dc] sm:$0xf]
  %v175 = vld [vmem:[%s1 + $0x1e0] sm:$0xf]
  %v176 = vld [vmem:[%s1 + $0x1e4] sm:$0xf]
  %v177 = vld [vmem:[%s1 + $0x1e8] sm:$0xf]
  %v178 = vld [vmem:[%s1 + $0x1ec] sm:$0xf]
  %v179 = vld [vmem:[%s1 + $0x1f0] sm:$0xf]
  %v180 = vld [vmem:[%s1 + $0x1f4] sm:$0xf]
  %v181 = vld [vmem:[%s1 + $0x1f8] sm:$0xf]
  %v182 = vld [vmem:[%s1 + $0x1fc] sm:$0xf]
  %v183 = vld [vmem:[%s2] sm:$0x1]
  %v185 = vlaneseq
  %v186 = vshrl.u32 %v185, 7
  %v187 = vsub.s32 0, %v186
  %v188 = vrot.slane %v183, %v187
  %v230 = vunpack.c.l.b16 %v15
  %v231 = vunpack.c.h.b16 %v15
  %v232 = vunpack.c.l.b16 %v16
  %v233 = vunpack.c.h.b16 %v16
  %v234 = vunpack.c.l.b16 %v17
  %v235 = vunpack.c.h.b16 %v17
  %v236 = vunpack.c.l.b16 %v18
  %v237 = vunpack.c.h.b16 %v18
  %v238 = vunpack.c.l.b16 %v19
  %v239 = vunpack.c.h.b16 %v19
  %v240 = vunpack.c.l.b16 %v20
  %v241 = vunpack.c.h.b16 %v20
  %v242 = vunpack.c.l.b16 %v21
  %v243 = vunpack.c.h.b16 %v21
  %v244 = vunpack.c.l.b16 %v22
  %v245 = vunpack.c.h.b16 %v22
  %v246 = vunpack.c.l.b16 %v23
  %v247 = vunpack.c.h.b16 %v23
  %v248 = vunpack.c.l.b16 %v24
  %v249 = vunpack.c.h.b16 %v24
  %v250 = vunpack.c.l.b16 %v25
  %v251 = vunpack.c.h.b16 %v25
  %v252 = vunpack.c.l.b16 %v26
  %v253 = vunpack.c.h.b16 %v26
  %v254 = vunpack.c.l.b16 %v27
  %v255 = vunpack.c.h.b16 %v27
  %v256 = vunpack.c.l.b16 %v28
  %v257 = vunpack.c.h.b16 %v28
  %v258 = vunpack.c.l.b16 %v29
  %v259 = vunpack.c.h.b16 %v29
  %v260 = vunpack.c.l.b16 %v30
  %v261 = vunpack.c.h.b16 %v30
  %v262 = vunpack.c.l.b16 %v31
  %v263 = vunpack.c.h.b16 %v31
  %v264 = vunpack.c.l.b16 %v32
  %v265 = vunpack.c.h.b16 %v32
  %v266 = vunpack.c.l.b16 %v33
  %v267 = vunpack.c.h.b16 %v33
  %v268 = vunpack.c.l.b16 %v34
  %v269 = vunpack.c.h.b16 %v34
  %v270 = vunpack.c.l.b16 %v35
  %v271 = vunpack.c.h.b16 %v35
  %v272 = vunpack.c.l.b16 %v36
  %v273 = vunpack.c.h.b16 %v36
  %v274 = vunpack.c.l.b16 %v37
  %v275 = vunpack.c.h.b16 %v37
  %v276 = vunpack.c.l.b16 %v38
  %v277 = vunpack.c.h.b16 %v38
  %v278 = vunpack.c.l.b16 %v39
  %v279 = vunpack.c.h.b16 %v39
  %v280 = vunpack.c.l.b16 %v40
  %v281 = vunpack.c.h.b16 %v40
  %v282 = vunpack.c.l.b16 %v41
  %v283 = vunpack.c.h.b16 %v41
  %v284 = vunpack.c.l.b16 %v42
  %v285 = vunpack.c.h.b16 %v42
  %v286 = vunpack.c.l.b16 %v43
  %v287 = vunpack.c.h.b16 %v43
  %v288 = vunpack.c.l.b16 %v44
  %v289 = vunpack.c.h.b16 %v44
  %v290 = vunpack.c.l.b16 %v45
  %v291 = vunpack.c.h.b16 %v45
  %v292 = vunpack.c.l.b16 %v46
  %v293 = vunpack.c.h.b16 %v46
  %v294 = vunpack.c.l.b16 %v47
  %v295 = vunpack.c.h.b16 %v47
  %v296 = vunpack.c.l.b16 %v48
  %v297 = vunpack.c.h.b16 %v48
  %v298 = vunpack.c.l.b16 %v49
  %v299 = vunpack.c.h.b16 %v49
  %v300 = vunpack.c.l.b16 %v50
  %v301 = vunpack.c.h.b16 %v50
  %v302 = vunpack.c.l.b16 %v51
  %v303 = vunpack.c.h.b16 %v51
  %v304 = vunpack.c.l.b16 %v52
  %v305 = vunpack.c.h.b16 %v52
  %v306 = vunpack.c.l.b16 %v53
  %v307 = vunpack.c.h.b16 %v53
  %v308 = vunpack.c.l.b16 %v54
  %v309 = vunpack.c.h.b16 %v54
  %v310 = vpack.c.b16 %v238, %v230
  %v311 = vpack.c.b16 %v239, %v231
  %v312 = vpack.c.b16 %v240, %v232
  %v313 = vpack.c.b16 %v241, %v233
  %v314 = vpack.c.b16 %v242, %v234
  %v315 = vpack.c.b16 %v243, %v235
  %v316 = vpack.c.b16 %v244, %v236
  %v317 = vpack.c.b16 %v245, %v237
  %v318 = vpack.c.b16 %v254, %v246
  %v319 = vpack.c.b16 %v255, %v247
  %v320 = vpack.c.b16 %v256, %v248
  %v321 = vpack.c.b16 %v257, %v249
  %v322 = vpack.c.b16 %v258, %v250
  %v323 = vpack.c.b16 %v259, %v251
  %v324 = vpack.c.b16 %v260, %v252
  %v325 = vpack.c.b16 %v261, %v253
  %v326 = vpack.c.b16 %v270, %v262
  %v327 = vpack.c.b16 %v271, %v263
  %v328 = vpack.c.b16 %v272, %v264
  %v329 = vpack.c.b16 %v273, %v265
  %v330 = vpack.c.b16 %v274, %v266
  %v331 = vpack.c.b16 %v275, %v267
  %v332 = vpack.c.b16 %v276, %v268
  %v333 = vpack.c.b16 %v277, %v269
  %v334 = vpack.c.b16 %v286, %v278
  %v335 = vpack.c.b16 %v287, %v279
  %v336 = vpack.c.b16 %v288, %v280
  %v337 = vpack.c.b16 %v289, %v281
  %v338 = vpack.c.b16 %v290, %v282
  %v339 = vpack.c.b16 %v291, %v283
  %v340 = vpack.c.b16 %v292, %v284
  %v341 = vpack.c.b16 %v293, %v285
  %v342 = vpack.c.b16 %v302, %v294
  %v343 = vpack.c.b16 %v303, %v295
  %v344 = vpack.c.b16 %v304, %v296
  %v345 = vpack.c.b16 %v305, %v297
  %v346 = vpack.c.b16 %v306, %v298
  %v347 = vpack.c.b16 %v307, %v299
  %v348 = vpack.c.b16 %v308, %v300
  %v349 = vpack.c.b16 %v309, %v301
  %v518 = vunpack.c.l.b16 %v55
  %v519 = vunpack.c.l.b16 %v56
  %v520 = vunpack.c.l.b16 %v57
  %v521 = vunpack.c.l.b16 %v58
  %v522 = vunpack.c.l.b16 %v59
  %v523 = vunpack.c.l.b16 %v60
  %v524 = vunpack.c.l.b16 %v61
  %v525 = vunpack.c.l.b16 %v62
  %v526 = vunpack.c.l.b16 %v63
  %v527 = vunpack.c.l.b16 %v64
  %v528 = vunpack.c.l.b16 %v65
  %v529 = vunpack.c.l.b16 %v66
  %v530 = vunpack.c.l.b16 %v67
  %v531 = vunpack.c.l.b16 %v68
  %v532 = vunpack.c.l.b16 %v69
  %v533 = vunpack.c.l.b16 %v70
  %v534 = vunpack.c.l.b16 %v71
  %v535 = vunpack.c.l.b16 %v72
  %v536 = vunpack.c.l.b16 %v73
  %v537 = vunpack.c.l.b16 %v74
  %v538 = vunpack.c.l.b16 %v75
  %v539 = vunpack.c.l.b16 %v76
  %v540 = vunpack.c.l.b16 %v77
  %v541 = vunpack.c.l.b16 %v78
  %v542 = vunpack.c.l.b16 %v79
  %v543 = vunpack.c.l.b16 %v80
  %v544 = vunpack.c.l.b16 %v81
  %v545 = vunpack.c.l.b16 %v82
  %v546 = vunpack.c.l.b16 %v83
  %v547 = vunpack.c.l.b16 %v84
  %v548 = vunpack.c.l.b16 %v85
  %v549 = vunpack.c.l.b16 %v86
  %v550 = vunpack.c.l.b16 %v87
  %v551 = vunpack.c.l.b16 %v88
  %v552 = vunpack.c.l.b16 %v89
  %v553 = vunpack.c.l.b16 %v90
  %v554 = vunpack.c.l.b16 %v91
  %v555 = vunpack.c.l.b16 %v92
  %v556 = vunpack.c.l.b16 %v93
  %v557 = vunpack.c.l.b16 %v94
  %v558 = vunpack.c.l.b16 %v95
  %v559 = vunpack.c.l.b16 %v96
  %v560 = vunpack.c.l.b16 %v97
  %v561 = vunpack.c.l.b16 %v98
  %v562 = vunpack.c.l.b16 %v99
  %v563 = vunpack.c.l.b16 %v100
  %v564 = vunpack.c.l.b16 %v101
  %v565 = vunpack.c.l.b16 %v102
  %v566 = vunpack.c.l.b16 %v103
  %v567 = vunpack.c.l.b16 %v104
  %v568 = vunpack.c.l.b16 %v105
  %v569 = vunpack.c.l.b16 %v106
  %v570 = vunpack.c.l.b16 %v107
  %v571 = vunpack.c.l.b16 %v108
  %v572 = vunpack.c.l.b16 %v109
  %v573 = vunpack.c.l.b16 %v110
  %v574 = vunpack.c.l.b16 %v111
  %v575 = vunpack.c.l.b16 %v112
  %v576 = vunpack.c.l.b16 %v113
  %v577 = vunpack.c.l.b16 %v114
  %v578 = vunpack.c.l.b16 %v115
  %v579 = vunpack.c.l.b16 %v116
  %v580 = vunpack.c.l.b16 %v117
  %v581 = vunpack.c.l.b16 %v118
  %v582 = vunpack.c.l.b16 %v119
  %v583 = vunpack.c.l.b16 %v120
  %v584 = vunpack.c.l.b16 %v121
  %v585 = vunpack.c.l.b16 %v122
  %v586 = vunpack.c.l.b16 %v123
  %v587 = vunpack.c.l.b16 %v124
  %v588 = vunpack.c.l.b16 %v125
  %v589 = vunpack.c.l.b16 %v126
  %v590 = vunpack.c.l.b16 %v127
  %v591 = vunpack.c.l.b16 %v128
  %v592 = vunpack.c.l.b16 %v129
  %v593 = vunpack.c.l.b16 %v130
  %v594 = vunpack.c.l.b16 %v131
  %v595 = vunpack.c.l.b16 %v132
  %v596 = vunpack.c.l.b16 %v133
  %v597 = vunpack.c.l.b16 %v134
  %v598 = vunpack.c.l.b16 %v135
  %v599 = vunpack.c.l.b16 %v136
  %v600 = vunpack.c.l.b16 %v137
  %v601 = vunpack.c.l.b16 %v138
  %v602 = vunpack.c.l.b16 %v139
  %v603 = vunpack.c.l.b16 %v140
  %v604 = vunpack.c.l.b16 %v141
  %v605 = vunpack.c.l.b16 %v142
  %v606 = vunpack.c.l.b16 %v143
  %v607 = vunpack.c.l.b16 %v144
  %v608 = vunpack.c.l.b16 %v145
  %v609 = vunpack.c.l.b16 %v146
  %v610 = vunpack.c.l.b16 %v147
  %v611 = vunpack.c.l.b16 %v148
  %v612 = vunpack.c.l.b16 %v149
  %v613 = vunpack.c.l.b16 %v150
  %v614 = vunpack.c.l.b16 %v151
  %v615 = vunpack.c.l.b16 %v152
  %v616 = vunpack.c.l.b16 %v153
  %v617 = vunpack.c.l.b16 %v154
  %v618 = vunpack.c.l.b16 %v155
  %v619 = vunpack.c.l.b16 %v156
  %v620 = vunpack.c.l.b16 %v157
  %v621 = vunpack.c.l.b16 %v158
  %v622 = vunpack.c.l.b16 %v159
  %v623 = vunpack.c.l.b16 %v160
  %v624 = vunpack.c.l.b16 %v161
  %v625 = vunpack.c.l.b16 %v162
  %v626 = vunpack.c.l.b16 %v163
  %v627 = vunpack.c.l.b16 %v164
  %v628 = vunpack.c.l.b16 %v165
  %v629 = vunpack.c.l.b16 %v166
  %v630 = vunpack.c.l.b16 %v167
  %v631 = vunpack.c.l.b16 %v168
  %v632 = vunpack.c.l.b16 %v169
  %v633 = vunpack.c.l.b16 %v170
  %v634 = vunpack.c.l.b16 %v171
  %v635 = vunpack.c.l.b16 %v172
  %v636 = vunpack.c.l.b16 %v173
  %v637 = vunpack.c.l.b16 %v174
  %v638 = vunpack.c.l.b16 %v175
  %v639 = vunpack.c.l.b16 %v176
  %v640 = vunpack.c.l.b16 %v177
  %v641 = vunpack.c.l.b16 %v178
  %v642 = vunpack.c.l.b16 %v179
  %v643 = vunpack.c.l.b16 %v180
  %v644 = vunpack.c.l.b16 %v181
  %v645 = vunpack.c.l.b16 %v182
  %v646 = vpack.c.b16 %v519, %v518
  %v647 = vpack.c.b16 %v521, %v520
  %v648 = vpack.c.b16 %v523, %v522
  %v649 = vpack.c.b16 %v525, %v524
  %v650 = vpack.c.b16 %v527, %v526
  %v651 = vpack.c.b16 %v529, %v528
  %v652 = vpack.c.b16 %v531, %v530
  %v653 = vpack.c.b16 %v533, %v532
  %v654 = vpack.c.b16 %v535, %v534
  %v655 = vpack.c.b16 %v537, %v536
  %v656 = vpack.c.b16 %v539, %v538
  %v657 = vpack.c.b16 %v541, %v540
  %v658 = vpack.c.b16 %v543, %v542
  %v659 = vpack.c.b16 %v545, %v544
  %v660 = vpack.c.b16 %v547, %v546
  %v661 = vpack.c.b16 %v549, %v548
  %v662 = vpack.c.b16 %v551, %v550
  %v663 = vpack.c.b16 %v553, %v552
  %v664 = vpack.c.b16 %v555, %v554
  %v665 = vpack.c.b16 %v557, %v556
  %v666 = vpack.c.b16 %v559, %v558
  %v667 = vpack.c.b16 %v561, %v560
  %v668 = vpack.c.b16 %v563, %v562
  %v669 = vpack.c.b16 %v565, %v564
  %v670 = vpack.c.b16 %v567, %v566
  %v671 = vpack.c.b16 %v569, %v568
  %v672 = vpack.c.b16 %v571, %v570
  %v673 = vpack.c.b16 %v573, %v572
  %v674 = vpack.c.b16 %v575, %v574
  %v675 = vpack.c.b16 %v577, %v576
  %v676 = vpack.c.b16 %v579, %v578
  %v677 = vpack.c.b16 %v581, %v580
  %v678 = vpack.c.b16 %v583, %v582
  %v679 = vpack.c.b16 %v585, %v584
  %v680 = vpack.c.b16 %v587, %v586
  %v681 = vpack.c.b16 %v589, %v588
  %v682 = vpack.c.b16 %v591, %v590
  %v683 = vpack.c.b16 %v593, %v592
  %v684 = vpack.c.b16 %v595, %v594
  %v685 = vpack.c.b16 %v597, %v596
  %v686 = vpack.c.b16 %v599, %v598
  %v687 = vpack.c.b16 %v601, %v600
  %v688 = vpack.c.b16 %v603, %v602
  %v689 = vpack.c.b16 %v605, %v604
  %v690 = vpack.c.b16 %v607, %v606
  %v691 = vpack.c.b16 %v609, %v608
  %v692 = vpack.c.b16 %v611, %v610
  %v693 = vpack.c.b16 %v613, %v612
  %v694 = vpack.c.b16 %v615, %v614
  %v695 = vpack.c.b16 %v617, %v616
  %v696 = vpack.c.b16 %v619, %v618
  %v697 = vpack.c.b16 %v621, %v620
  %v698 = vpack.c.b16 %v623, %v622
  %v699 = vpack.c.b16 %v625, %v624
  %v700 = vpack.c.b16 %v627, %v626
  %v701 = vpack.c.b16 %v629, %v628
  %v702 = vpack.c.b16 %v631, %v630
  %v703 = vpack.c.b16 %v633, %v632
  %v704 = vpack.c.b16 %v635, %v634
  %v705 = vpack.c.b16 %v637, %v636
  %v706 = vpack.c.b16 %v639, %v638
  %v707 = vpack.c.b16 %v641, %v640
  %v708 = vpack.c.b16 %v643, %v642
  %v709 = vpack.c.b16 %v645, %v644
  %774 = vmatprep.subr.bf16.mxu0 0
  %775 = vmatpush1.bf16.msra.mxu0 %v646
  %776 = vmatprep.subr.bf16.mxu0 0
  %777 = vmatpush1.bf16.msra.mxu0 %v647
  %778 = vmatprep.subr.bf16.mxu0 0
  %779 = vmatpush1.bf16.msra.mxu0 %v648
  %780 = vmatprep.subr.bf16.mxu0 0
  %781 = vmatpush1.bf16.msra.mxu0 %v649
  %782 = vmatprep.subr.bf16.mxu0 0
  %783 = vmatpush1.bf16.msra.mxu0 %v650
  %784 = vmatprep.subr.bf16.mxu0 0
  %785 = vmatpush1.bf16.msra.mxu0 %v651
  %786 = vmatprep.subr.bf16.mxu0 0
  %787 = vmatpush1.bf16.msra.mxu0 %v652
  %788 = vmatprep.subr.bf16.mxu0 0
  %789 = vmatpush1.bf16.msra.mxu0 %v653
  %790 = vmatprep.subr.bf16.mxu0 0
  %791 = vmatpush1.bf16.msra.mxu0 %v654
  %792 = vmatprep.subr.bf16.mxu0 0
  %793 = vmatpush1.bf16.msra.mxu0 %v655
  %794 = vmatprep.subr.bf16.mxu0 0
  %795 = vmatpush1.bf16.msra.mxu0 %v656
  %796 = vmatprep.subr.bf16.mxu0 0
  %797 = vmatpush1.bf16.msra.mxu0 %v657
  %798 = vmatprep.subr.bf16.mxu0 0
  %799 = vmatpush1.bf16.msra.mxu0 %v658
  %800 = vmatprep.subr.bf16.mxu0 0
  %801 = vmatpush1.bf16.msra.mxu0 %v659
  %802 = vmatprep.subr.bf16.mxu0 0
  %803 = vmatpush1.bf16.msra.mxu0 %v660
  %804 = vmatprep.subr.bf16.mxu0 0
  %805 = vmatpush1.bf16.msra.mxu0 %v661
  %806 = vmatprep.mubr.bf16.mxu0 %v311
  %807 = vmatmul.mubr.bf16.gmra.mrb[0].mxu0 %v310
  %v808 = vpop.f32.mrb[0].mxu0
  %v809 = vadd.f32 %v188, %v808
  %v810 = vpop.f32.mrb[0].mxu0
  %v811 = vpop.f32.mrb[0].mxu0
  %v812 = vadd.f32 %v188, %v811
  %v813 = vpop.f32.mrb[0].mxu0
  %814 = vmatprep.mubr.bf16.mxu0 %v319
  %815 = vmatmul.mubr.bf16.gmra.mrb[0].mxu0 %v318
  %v816 = vpop.f32.mrb[0].mxu0
  %v817 = vadd.f32 %v188, %v816
  %v818 = vpop.f32.mrb[0].mxu0
  %v819 = vpop.f32.mrb[0].mxu0
  %v820 = vadd.f32 %v188, %v819
  %v821 = vpop.f32.mrb[0].mxu0
  %822 = vmatprep.mubr.bf16.mxu0 %v327
  %823 = vmatmul.mubr.bf16.gmra.mrb[0].mxu0 %v326
  %v824 = vpop.f32.mrb[0].mxu0
  %v825 = vadd.f32 %v188, %v824
  %v826 = vpop.f32.mrb[0].mxu0
  %v827 = vpop.f32.mrb[0].mxu0
  %v828 = vadd.f32 %v188, %v827
  %v829 = vpop.f32.mrb[0].mxu0
  %830 = vmatprep.mubr.bf16.mxu0 %v335
  %831 = vmatmul.mubr.bf16.gmra.mrb[0].mxu0 %v334
  %v832 = vpop.f32.mrb[0].mxu0
  %v833 = vadd.f32 %v188, %v832
  %v834 = vpop.f32.mrb[0].mxu0
  %v835 = vpop.f32.mrb[0].mxu0
  %v836 = vadd.f32 %v188, %v835
  %v837 = vpop.f32.mrb[0].mxu0
  %838 = vmatprep.mubr.bf16.mxu0 %v343
  %839 = vmatmul.mubr.bf16.gmra.mrb[0].mxu0 %v342
  %v840 = vpop.f32.mrb[0].mxu0
  %v841 = vadd.f32 %v188, %v840
  %v842 = vpop.f32.mrb[0].mxu0
  %v843 = vpop.f32.mrb[0].mxu0
  %v844 = vadd.f32 %v188, %v843
  %v845 = vpop.f32.mrb[0].mxu0
  %846 = vdwg.mxu0
  %847 = vmatprep.subr.bf16.mxu0 0
  %848 = vmatpush1.bf16.msra.mxu0 %v662
  %849 = vmatprep.subr.bf16.mxu0 0
  %850 = vmatpush1.bf16.msra.mxu0 %v663
  %851 = vmatprep.subr.bf16.mxu0 0
  %852 = vmatpush1.bf16.msra.mxu0 %v664
  %853 = vmatprep.subr.bf16.mxu0 0
  %854 = vmatpush1.bf16.msra.mxu0 %v665
  %855 = vmatprep.subr.bf16.mxu0 0
  %856 = vmatpush1.bf16.msra.mxu0 %v666
  %857 = vmatprep.subr.bf16.mxu0 0
  %858 = vmatpush1.bf16.msra.mxu0 %v667
  %859 = vmatprep.subr.bf16.mxu0 0
  %860 = vmatpush1.bf16.msra.mxu0 %v668
  %861 = vmatprep.subr.bf16.mxu0 0
  %862 = vmatpush1.bf16.msra.mxu0 %v669
  %863 = vmatprep.subr.bf16.mxu0 0
  %864 = vmatpush1.bf16.msra.mxu0 %v670
  %865 = vmatprep.subr.bf16.mxu0 0
  %866 = vmatpush1.bf16.msra.mxu0 %v671
  %867 = vmatprep.subr.bf16.mxu0 0
  %868 = vmatpush1.bf16.msra.mxu0 %v672
  %869 = vmatprep.subr.bf16.mxu0 0
  %870 = vmatpush1.bf16.msra.mxu0 %v673
  %871 = vmatprep.subr.bf16.mxu0 0
  %872 = vmatpush1.bf16.msra.mxu0 %v674
  %873 = vmatprep.subr.bf16.mxu0 0
  %874 = vmatpush1.bf16.msra.mxu0 %v675
  %875 = vmatprep.subr.bf16.mxu0 0
  %876 = vmatpush1.bf16.msra.mxu0 %v676
  %877 = vmatprep.subr.bf16.mxu0 0
  %878 = vmatpush1.bf16.msra.mxu0 %v677
  %879 = vmatprep.mubr.bf16.mxu0 %v313
  %880 = vmatmul.mubr.bf16.gmra.mrb[0].mxu0 %v312
  %v881 = vpop.f32.mrb[0].mxu0
  %v882 = vadd.f32 %v809, %v881
  %v883 = vpop.f32.mrb[0].mxu0
  %v884 = vpop.f32.mrb[0].mxu0
  %v885 = vadd.f32 %v812, %v884
  %v886 = vpop.f32.mrb[0].mxu0
  %887 = vmatprep.mubr.bf16.mxu0 %v321
  %888 = vmatmul.mubr.bf16.gmra.mrb[0].mxu0 %v320
  %v889 = vpop.f32.mrb[0].mxu0
  %v890 = vadd.f32 %v817, %v889
  %v891 = vpop.f32.mrb[0].mxu0
  %v892 = vpop.f32.mrb[0].mxu0
  %v893 = vadd.f32 %v820, %v892
  %v894 = vpop.f32.mrb[0].mxu0
  %895 = vmatprep.mubr.bf16.mxu0 %v329
  %896 = vmatmul.mubr.bf16.gmra.mrb[0].mxu0 %v328
  %v897 = vpop.f32.mrb[0].mxu0
  %v898 = vadd.f32 %v825, %v897
  %v899 = vpop.f32.mrb[0].mxu0
  %v900 = vpop.f32.mrb[0].mxu0
  %v901 = vadd.f32 %v828, %v900
  %v902 = vpop.f32.mrb[0].mxu0
  %903 = vmatprep.mubr.bf16.mxu0 %v337
  %904 = vmatmul.mubr.bf16.gmra.mrb[0].mxu0 %v336
  %v905 = vpop.f32.mrb[0].mxu0
  %v906 = vadd.f32 %v833, %v905
  %v907 = vpop.f32.mrb[0].mxu0
  %v908 = vpop.f32.mrb[0].mxu0
  %v909 = vadd.f32 %v836, %v908
  %v910 = vpop.f32.mrb[0].mxu0
  %911 = vmatprep.mubr.bf16.mxu0 %v345
  %912 = vmatmul.mubr.bf16.gmra.mrb[0].mxu0 %v344
  %v913 = vpop.f32.mrb[0].mxu0
  %v914 = vadd.f32 %v841, %v913
  %v915 = vpop.f32.mrb[0].mxu0
  %v916 = vpop.f32.mrb[0].mxu0
  %v917 = vadd.f32 %v844, %v916
  %v918 = vpop.f32.mrb[0].mxu0
  %919 = vdwg.mxu0
  %920 = vmatprep.subr.bf16.mxu0 0
  %921 = vmatpush1.bf16.msra.mxu0 %v678
  %922 = vmatprep.subr.bf16.mxu0 0
  %923 = vmatpush1.bf16.msra.mxu0 %v679
  %924 = vmatprep.subr.bf16.mxu0 0
  %925 = vmatpush1.bf16.msra.mxu0 %v680
  %926 = vmatprep.subr.bf16.mxu0 0
  %927 = vmatpush1.bf16.msra.mxu0 %v681
  %928 = vmatprep.subr.bf16.mxu0 0
  %929 = vmatpush1.bf16.msra.mxu0 %v682
  %930 = vmatprep.subr.bf16.mxu0 0
  %931 = vmatpush1.bf16.msra.mxu0 %v683
  %932 = vmatprep.subr.bf16.mxu0 0
  %933 = vmatpush1.bf16.msra.mxu0 %v684
  %934 = vmatprep.subr.bf16.mxu0 0
  %935 = vmatpush1.bf16.msra.mxu0 %v685
  %936 = vmatprep.subr.bf16.mxu0 0
  %937 = vmatpush1.bf16.msra.mxu0 %v686
  %938 = vmatprep.subr.bf16.mxu0 0
  %939 = vmatpush1.bf16.msra.mxu0 %v687
  %940 = vmatprep.subr.bf16.mxu0 0
  %941 = vmatpush1.bf16.msra.mxu0 %v688
  %942 = vmatprep.subr.bf16.mxu0 0
  %943 = vmatpush1.bf16.msra.mxu0 %v689
  %944 = vmatprep.subr.bf16.mxu0 0
  %945 = vmatpush1.bf16.msra.mxu0 %v690
  %946 = vmatprep.subr.bf16.mxu0 0
  %947 = vmatpush1.bf16.msra.mxu0 %v691
  %948 = vmatprep.subr.bf16.mxu0 0
  %949 = vmatpush1.bf16.msra.mxu0 %v692
  %950 = vmatprep.subr.bf16.mxu0 0
  %951 = vmatpush1.bf16.msra.mxu0 %v693
  %952 = vmatprep.mubr.bf16.mxu0 %v315
  %953 = vmatmul.mubr.bf16.gmra.mrb[0].mxu0 %v314
  %v954 = vpop.f32.mrb[0].mxu0
  %v955 = vadd.f32 %v882, %v954
  %v956 = vpop.f32.mrb[0].mxu0
  %v957 = vpop.f32.mrb[0].mxu0
  %v958 = vadd.f32 %v885, %v957
  %v959 = vpop.f32.mrb[0].mxu0
  %960 = vmatprep.mubr.bf16.mxu0 %v323
  %961 = vmatmul.mubr.bf16.gmra.mrb[0].mxu0 %v322
  %v962 = vpop.f32.mrb[0].mxu0
  %v963 = vadd.f32 %v890, %v962
  %v964 = vpop.f32.mrb[0].mxu0
  %v965 = vpop.f32.mrb[0].mxu0
  %v966 = vadd.f32 %v893, %v965
  %v967 = vpop.f32.mrb[0].mxu0
  %968 = vmatprep.mubr.bf16.mxu0 %v331
  %969 = vmatmul.mubr.bf16.gmra.mrb[0].mxu0 %v330
  %v970 = vpop.f32.mrb[0].mxu0
  %v971 = vadd.f32 %v898, %v970
  %v972 = vpop.f32.mrb[0].mxu0
  %v973 = vpop.f32.mrb[0].mxu0
  %v974 = vadd.f32 %v901, %v973
  %v975 = vpop.f32.mrb[0].mxu0
  %976 = vmatprep.mubr.bf16.mxu0 %v339
  %977 = vmatmul.mubr.bf16.gmra.mrb[0].mxu0 %v338
  %v978 = vpop.f32.mrb[0].mxu0
  %v979 = vadd.f32 %v906, %v978
  %v980 = vpop.f32.mrb[0].mxu0
  %v981 = vpop.f32.mrb[0].mxu0
  %v982 = vadd.f32 %v909, %v981
  %v983 = vpop.f32.mrb[0].mxu0
  %984 = vmatprep.mubr.bf16.mxu0 %v347
  %985 = vmatmul.mubr.bf16.gmra.mrb[0].mxu0 %v346
  %v986 = vpop.f32.mrb[0].mxu0
  %v987 = vadd.f32 %v914, %v986
  %v988 = vpop.f32.mrb[0].mxu0
  %v989 = vpop.f32.mrb[0].mxu0
  %v990 = vadd.f32 %v917, %v989
  %v991 = vpop.f32.mrb[0].mxu0
  %992 = vdwg.mxu0
  %993 = vmatprep.subr.bf16.mxu0 0
  %994 = vmatpush1.bf16.msra.mxu0 %v694
  %995 = vmatprep.subr.bf16.mxu0 0
  %996 = vmatpush1.bf16.msra.mxu0 %v695
  %997 = vmatprep.subr.bf16.mxu0 0
  %998 = vmatpush1.bf16.msra.mxu0 %v696
  %999 = vmatprep.subr.bf16.mxu0 0
  %1000 = vmatpush1.bf16.msra.mxu0 %v697
  %1001 = vmatprep.subr.bf16.mxu0 0
  %1002 = vmatpush1.bf16.msra.mxu0 %v698
  %1003 = vmatprep.subr.bf16.mxu0 0
  %1004 = vmatpush1.bf16.msra.mxu0 %v699
  %1005 = vmatprep.subr.bf16.mxu0 0
  %1006 = vmatpush1.bf16.msra.mxu0 %v700
  %1007 = vmatprep.subr.bf16.mxu0 0
  %1008 = vmatpush1.bf16.msra.mxu0 %v701
  %1009 = vmatprep.subr.bf16.mxu0 0
  %1010 = vmatpush1.bf16.msra.mxu0 %v702
  %1011 = vmatprep.subr.bf16.mxu0 0
  %1012 = vmatpush1.bf16.msra.mxu0 %v703
  %1013 = vmatprep.subr.bf16.mxu0 0
  %1014 = vmatpush1.bf16.msra.mxu0 %v704
  %1015 = vmatprep.subr.bf16.mxu0 0
  %1016 = vmatpush1.bf16.msra.mxu0 %v705
  %1017 = vmatprep.subr.bf16.mxu0 0
  %1018 = vmatpush1.bf16.msra.mxu0 %v706
  %1019 = vmatprep.subr.bf16.mxu0 0
  %1020 = vmatpush1.bf16.msra.mxu0 %v707
  %1021 = vmatprep.subr.bf16.mxu0 0
  %1022 = vmatpush1.bf16.msra.mxu0 %v708
  %1023 = vmatprep.subr.bf16.mxu0 0
  %1024 = vmatpush1.bf16.msra.mxu0 %v709
  %1025 = vmatprep.mubr.bf16.mxu0 %v317
  %1026 = vmatmul.mubr.bf16.gmra.mrb[0].mxu0 %v316
  %v1027 = vpop.f32.mrb[0].mxu0
  %v1028 = vadd.f32 %v955, %v1027
  %v1029 = vpop.f32.mrb[0].mxu0
  %v1030 = vpop.f32.mrb[0].mxu0
  %v1031 = vadd.f32 %v958, %v1030
  %v1032 = vpop.f32.mrb[0].mxu0
  %1033 = vmatprep.mubr.bf16.mxu0 %v325
  %1034 = vmatmul.mubr.bf16.gmra.mrb[0].mxu0 %v324
  %v1035 = vpop.f32.mrb[0].mxu0
  %v1036 = vadd.f32 %v963, %v1035
  %v1037 = vpop.f32.mrb[0].mxu0
  %v1038 = vpop.f32.mrb[0].mxu0
  %v1039 = vadd.f32 %v966, %v1038
  %v1040 = vpop.f32.mrb[0].mxu0
  %1041 = vmatprep.mubr.bf16.mxu0 %v333
  %1042 = vmatmul.mubr.bf16.gmra.mrb[0].mxu0 %v332
  %v1043 = vpop.f32.mrb[0].mxu0
  %v1044 = vadd.f32 %v971, %v1043
  %v1045 = vpop.f32.mrb[0].mxu0
  %v1046 = vpop.f32.mrb[0].mxu0
  %v1047 = vadd.f32 %v974, %v1046
  %v1048 = vpop.f32.mrb[0].mxu0
  %1049 = vmatprep.mubr.bf16.mxu0 %v341
  %1050 = vmatmul.mubr.bf16.gmra.mrb[0].mxu0 %v340
  %v1051 = vpop.f32.mrb[0].mxu0
  %v1052 = vadd.f32 %v979, %v1051
  %v1053 = vpop.f32.mrb[0].mxu0
  %v1054 = vpop.f32.mrb[0].mxu0
  %v1055 = vadd.f32 %v982, %v1054
  %v1056 = vpop.f32.mrb[0].mxu0
  %1057 = vmatprep.mubr.bf16.mxu0 %v349
  %1058 = vmatmul.mubr.bf16.gmra.mrb[0].mxu0 %v348
  %v1059 = vpop.f32.mrb[0].mxu0
  %v1060 = vadd.f32 %v987, %v1059
  %v1061 = vpop.f32.mrb[0].mxu0
  %v1062 = vpop.f32.mrb[0].mxu0
  %v1063 = vadd.f32 %v990, %v1062
  %v1064 = vpop.f32.mrb[0].mxu0
  %1065 = vdwg.mxu0
  %v1066 = vmax.f32 %v1028, 0.0
  %v1067 = vmax.f32 %v1031, 0.0
  %v1068 = vmax.f32 %v1036, 0.0
  %v1069 = vmax.f32 %v1039, 0.0
  %v1070 = vmax.f32 %v1044, 0.0
  %v1071 = vmax.f32 %v1047, 0.0
  %v1072 = vmax.f32 %v1052, 0.0
  %v1073 = vmax.f32 %v1055, 0.0
  %v1074 = vmax.f32 %v1060, 0.0
  %v1075 = vmax.f32 %v1063, 0.0
  %v1076 = vpack.c.bf16 %v1067, %v1066
  %v1077 = vpack.c.bf16 %v1069, %v1068
  %v1078 = vpack.c.bf16 %v1071, %v1070
  %v1079 = vpack.c.bf16 %v1073, %v1072
  %v1080 = vpack.c.bf16 %v1075, %v1074
  %v1086 = vunpack.c.l.b16 %v1076
  %v1087 = vunpack.c.h.b16 %v1076
  %v1088 = vunpack.c.l.b16 %v1077
  %v1089 = vunpack.c.h.b16 %v1077
  %v1090 = vunpack.c.l.b16 %v1078
  %v1091 = vunpack.c.h.b16 %v1078
  %v1092 = vunpack.c.l.b16 %v1079
  %v1093 = vunpack.c.h.b16 %v1079
  %v1094 = vunpack.c.l.b16 %v1080
  %v1095 = vunpack.c.h.b16 %v1080
  %v1096 = vpack.c.b16 %v1086, %v1086
  %v1097 = vpack.c.b16 %v1087, %v1087
  %v1098 = vpack.c.b16 %v1088, %v1088
  %v1099 = vpack.c.b16 %v1089, %v1089
  %v1100 = vpack.c.b16 %v1090, %v1090
  %v1101 = vpack.c.b16 %v1091, %v1091
  %v1102 = vpack.c.b16 %v1092, %v1092
  %v1103 = vpack.c.b16 %v1093, %v1093
  %v1104 = vpack.c.b16 %v1094, %v1094
  %v1105 = vpack.c.b16 %v1095, %v1095
  %1116 = vst [vmem:[%s3] sm:$0xf] %v1096
  %1117 = vst [vmem:[%s3 + $0x4] sm:$0xf] %v1097
  %1118 = vst [vmem:[%s3 + $0x8] sm:$0xf] %v1098
  %1119 = vst [vmem:[%s3 + $0xc] sm:$0xf] %v1099
  %1120 = vst [vmem:[%s3 + $0x10] sm:$0xf] %v1100
  %1121 = vst [vmem:[%s3 + $0x14] sm:$0xf] %v1101
  %1122 = vst [vmem:[%s3 + $0x18] sm:$0xf] %v1102
  %1123 = vst [vmem:[%s3 + $0x1c] sm:$0xf] %v1103
  %1124 = vst [vmem:[%s3 + $0x20] sm:$0xf] %v1104
  %1125 = vst [vmem:[%s3 + $0x24] sm:$0xf] %v1105
  // Predicated region
  $region14: #{forward.9} parent=0 // pred_check
    _
  $region15: #{forward.9} parent=0 // pred_check_branch
    %1127 = sbr.rel (0) target = $region17
  $region16: #{forward.9} parent=0 // pred_region
    _
  $region17: #{forward.9} parent=0 // pred_fallthru
    _
  // Predicated region
  $region18: #{forward.9} parent=0 // pred_check
    _
  $region19: #{forward.9} parent=0 // pred_check_branch
    %1129 = sbr.rel (0) target = $region21
  $region20: #{forward.9} parent=0 // pred_region
    _
  $region21: #{forward.9} parent=0 // pred_fallthru
    _

// kernel: forward.10
$region0: #{forward.10}
  #allocation0 [shape = 'u32[]', space=smem, size = 0x4, offset = 0x4, fixed_abs, tag = 'smem constant byte address 0x4 - core index']
  #allocation1 [shape = 'u32[144,128]{1,0:T(1,128)}', space=vmem, size = 0x12000, scoped, tag = 'internal scratch']
  %s0 = inlined_call_operand.vmem [shape: bf16[32,128], index: 0, kind: input, shape index: {}]
  %s1 = inlined_call_operand.vmem [shape: bf16[32,128], index: 1, kind: input, shape index: {}]
  %s2 = inlined_call_operand.vmem [shape: bf16[32,128], index: 2, kind: input, shape index: {}]
  %s3 = inlined_call_operand.vmem [shape: bf16[32,128], index: 3, kind: input, shape index: {}]
  %s4 = inlined_call_operand.vmem [shape: bf16[32,128], index: 4, kind: output, shape index: {}]
  %s5 = sld [smem:[#allocation0]]
  $region26: #{forward.10} parent=0
    _
  %s7 = ssub.s32 1, %s5
  %s8 = scalar_select 0, %s7, %s5
  // Predicated region
  $region2: #{forward.10} parent=0 // pred_check
    _
  $region3: #{forward.10} parent=0 // pred_check_branch
    %10 = sbr.rel (0) target = $region5
  $region4: #{forward.10} parent=0 // pred_region
    _
  $region5: #{forward.10} parent=0 // pred_fallthru
    _
  // Predicated region
  $region6: #{forward.10} parent=0 // pred_check
    _
  $region7: #{forward.10} parent=0 // pred_check_branch
    %12 = sbr.rel (0) target = $region9
  $region8: #{forward.10} parent=0 // pred_region
    _
  $region9: #{forward.10} parent=0 // pred_fallthru
    _
  // Predicated region
  $region10: #{forward.10} parent=0 // pred_check
    _
  $region11: #{forward.10} parent=0 // pred_check_branch
    %14 = sbr.rel (0) target = $region13
  $region12: #{forward.10} parent=0 // pred_region
    _
  $region13: #{forward.10} parent=0 // pred_fallthru
    _
  // Predicated region
  $region14: #{forward.10} parent=0 // pred_check
    _
  $region15: #{forward.10} parent=0 // pred_check_branch
    %16 = sbr.rel (0) target = $region17
  $region16: #{forward.10} parent=0 // pred_region
    _
  $region17: #{forward.10} parent=0 // pred_fallthru
    _
  %v17 = vld [vmem:[%s0] sm:$0xf]
  %v18 = vld [vmem:[%s0 + $0x4] sm:$0xf]
  %v19 = vld [vmem:[%s0 + $0x8] sm:$0xf]
  %v20 = vld [vmem:[%s0 + $0xc] sm:$0xf]
  %v21 = vld [vmem:[%s1] sm:$0xf]
  %v22 = vld [vmem:[%s1 + $0x4] sm:$0xf]
  %v23 = vld [vmem:[%s1 + $0x8] sm:$0xf]
  %v24 = vld [vmem:[%s1 + $0xc] sm:$0xf]
  %v25 = vmax.bf16 %v17, %v21
  %v26 = vmax.bf16 %v18, %v22
  %v27 = vmax.bf16 %v19, %v23
  %v28 = vmax.bf16 %v20, %v24
  %v29 = vld [vmem:[%s2] sm:$0xf]
  %v30 = vld [vmem:[%s2 + $0x4] sm:$0xf]
  %v31 = vld [vmem:[%s2 + $0x8] sm:$0xf]
  %v32 = vld [vmem:[%s2 + $0xc] sm:$0xf]
  %v33 = vld [vmem:[%s3] sm:$0xf]
  %v34 = vld [vmem:[%s3 + $0x4] sm:$0xf]
  %v35 = vld [vmem:[%s3 + $0x8] sm:$0xf]
  %v36 = vld [vmem:[%s3 + $0xc] sm:$0xf]
  %v37 = vmax.bf16 %v29, %v33
  %v38 = vmax.bf16 %v30, %v34
  %v39 = vmax.bf16 %v31, %v35
  %v40 = vmax.bf16 %v32, %v36
  %v41 = vmax.bf16 %v25, %v37
  %v42 = vmax.bf16 %v26, %v38
  %v43 = vmax.bf16 %v27, %v39
  %v44 = vmax.bf16 %v28, %v40
  %45 = vst [vmem:[%s4] sm:$0xf] %v41
  %46 = vst [vmem:[%s4 + $0x4] sm:$0xf] %v42
  %47 = vst [vmem:[%s4 + $0x8] sm:$0xf] %v43
  %48 = vst [vmem:[%s4 + $0xc] sm:$0xf] %v44
  // Predicated region
  $region18: #{forward.10} parent=0 // pred_check
    _
  $region19: #{forward.10} parent=0 // pred_check_branch
    %50 = sbr.rel (0) target = $region21
  $region20: #{forward.10} parent=0 // pred_region
    _
  $region21: #{forward.10} parent=0 // pred_fallthru
    _
  // Predicated region
  $region22: #{forward.10} parent=0 // pred_check
    _
  $region23: #{forward.10} parent=0 // pred_check_branch
    %52 = sbr.rel (0) target = $region25
  $region24: #{forward.10} parent=0 // pred_region
    _
  $region25: #{forward.10} parent=0 // pred_fallthru
    _

// kernel: forward.12
$region0: #{forward.12}
  #allocation0 [shape = 'u32[]', space=smem, size = 0x4, offset = 0x4, fixed_abs, tag = 'smem constant byte address 0x4 - core index']
  #allocation1 [shape = 'u32[144,128]{1,0:T(1,128)}', space=vmem, size = 0x12000, scoped, tag = 'internal scratch']
  %s0 = inlined_call_operand.vmem [shape: bf16[16,256], index: 0, kind: input, shape index: {}]
  %s1 = inlined_call_operand.vmem [shape: bf16[16,256], index: 1, kind: input, shape index: {}]
  %s2 = inlined_call_operand.vmem [shape: bf16[16,256], index: 2, kind: input, shape index: {}]
  %s3 = inlined_call_operand.vmem [shape: bf16[16,256], index: 3, kind: input, shape index: {}]
  %s4 = inlined_call_operand.vmem [shape: bf16[16,256], index: 4, kind: output, shape index: {}]
  %s5 = sld [smem:[#allocation0]]
  $region26: #{forward.12} parent=0
    _
  %s7 = ssub.s32 1, %s5
  %s8 = scalar_select 0, %s7, %s5
  // Predicated region
  $region2: #{forward.12} parent=0 // pred_check
    _
  $region3: #{forward.12} parent=0 // pred_check_branch
    %10 = sbr.rel (0) target = $region5
  $region4: #{forward.12} parent=0 // pred_region
    _
  $region5: #{forward.12} parent=0 // pred_fallthru
    _
  // Predicated region
  $region6: #{forward.12} parent=0 // pred_check
    _
  $region7: #{forward.12} parent=0 // pred_check_branch
    %12 = sbr.rel (0) target = $region9
  $region8: #{forward.12} parent=0 // pred_region
    _
  $region9: #{forward.12} parent=0 // pred_fallthru
    _
  // Predicated region
  $region10: #{forward.12} parent=0 // pred_check
    _
  $region11: #{forward.12} parent=0 // pred_check_branch
    %14 = sbr.rel (0) target = $region13
  $region12: #{forward.12} parent=0 // pred_region
    _
  $region13: #{forward.12} parent=0 // pred_fallthru
    _
  // Predicated region
  $region14: #{forward.12} parent=0 // pred_check
    _
  $region15: #{forward.12} parent=0 // pred_check_branch
    %16 = sbr.rel (0) target = $region17
  $region16: #{forward.12} parent=0 // pred_region
    _
  $region17: #{forward.12} parent=0 // pred_fallthru
    _
  %v17 = vld [vmem:[%s0] sm:$0xff]
  %v18 = vld [vmem:[%s0 + $0x8] sm:$0xff]
  %v19 = vld [vmem:[%s1] sm:$0xff]
  %v20 = vld [vmem:[%s1 + $0x8] sm:$0xff]
  %v21 = vmax.bf16 %v17, %v19
  %v22 = vmax.bf16 %v18, %v20
  %v23 = vld [vmem:[%s2] sm:$0xff]
  %v24 = vld [vmem:[%s2 + $0x8] sm:$0xff]
  %v25 = vld [vmem:[%s3] sm:$0xff]
  %v26 = vld [vmem:[%s3 + $0x8] sm:$0xff]
  %v27 = vmax.bf16 %v23, %v25
  %v28 = vmax.bf16 %v24, %v26
  %v29 = vmax.bf16 %v21, %v27
  %v30 = vmax.bf16 %v22, %v28
  %31 = vst [vmem:[%s4] sm:$0xff] %v29
  %32 = vst [vmem:[%s4 + $0x8] sm:$0xff] %v30
  // Predicated region
  $region18: #{forward.12} parent=0 // pred_check
    _
  $region19: #{forward.12} parent=0 // pred_check_branch
    %34 = sbr.rel (0) target = $region21
  $region20: #{forward.12} parent=0 // pred_region
    _
  $region21: #{forward.12} parent=0 // pred_fallthru
    _
  // Predicated region
  $region22: #{forward.12} parent=0 // pred_check
    _
  $region23: #{forward.12} parent=0 // pred_check_branch
    %36 = sbr.rel (0) target = $region25
  $region24: #{forward.12} parent=0 // pred_region
    _
  $region25: #{forward.12} parent=0 // pred_fallthru
    _

// kernel: forward.11
$region0: #{forward.11}
  #allocation0 [shape = 'u32[]', space=smem, size = 0x4, offset = 0x4, fixed_abs, tag = 'smem constant byte address 0x4 - core index']
  #allocation1 [shape = 'u32[144,128]{1,0:T(1,128)}', space=vmem, size = 0x12000, scoped, tag = 'internal scratch']
  %s0 = inlined_call_operand.vmem [shape: bf16[16,2048], index: 0, kind: input, shape index: {}]
  %s1 = inlined_call_operand.vmem [shape: bf16[2048,256], index: 1, kind: input, shape index: {}]
  %s2 = inlined_call_operand.vmem [shape: f32[1,256], index: 2, kind: input, shape index: {}]
  %s3 = inlined_call_operand.vmem [shape: bf16[16,256], index: 3, kind: output, shape index: {}]
  %s4 = sld [smem:[#allocation0]]
  $region22: #{forward.11} parent=0
    _
  %s6 = ssub.s32 1, %s4
  %s7 = scalar_select 0, %s6, %s4
  // Predicated region
  $region2: #{forward.11} parent=0 // pred_check
    _
  $region3: #{forward.11} parent=0 // pred_check_branch
    %9 = sbr.rel (0) target = $region5
  $region4: #{forward.11} parent=0 // pred_region
    _
  $region5: #{forward.11} parent=0 // pred_fallthru
    _
  // Predicated region
  $region6: #{forward.11} parent=0 // pred_check
    _
  $region7: #{forward.11} parent=0 // pred_check_branch
    %11 = sbr.rel (0) target = $region9
  $region8: #{forward.11} parent=0 // pred_region
    _
  $region9: #{forward.11} parent=0 // pred_fallthru
    _
  // Predicated region
  $region10: #{forward.11} parent=0 // pred_check
    _
  $region11: #{forward.11} parent=0 // pred_check_branch
    %13 = sbr.rel (0) target = $region13
  $region12: #{forward.11} parent=0 // pred_region
    _
  $region13: #{forward.11} parent=0 // pred_fallthru
    _
  %v14 = vld [vmem:[%s0] sm:$0xff]
  %v15 = vld [vmem:[%s0 + $0x8] sm:$0xff]
  %v16 = vld [vmem:[%s0 + $0x10] sm:$0xff]
  %v17 = vld [vmem:[%s0 + $0x18] sm:$0xff]
  %v18 = vld [vmem:[%s0 + $0x20] sm:$0xff]
  %v19 = vld [vmem:[%s0 + $0x28] sm:$0xff]
  %v20 = vld [vmem:[%s0 + $0x30] sm:$0xff]
  %v21 = vld [vmem:[%s0 + $0x38] sm:$0xff]
  %v22 = vld [vmem:[%s0 + $0x40] sm:$0xff]
  %v23 = vld [vmem:[%s0 + $0x48] sm:$0xff]
  %v24 = vld [vmem:[%s0 + $0x50] sm:$0xff]
  %v25 = vld [vmem:[%s0 + $0x58] sm:$0xff]
  %v26 = vld [vmem:[%s0 + $0x60] sm:$0xff]
  %v27 = vld [vmem:[%s0 + $0x68] sm:$0xff]
  %v28 = vld [vmem:[%s0 + $0x70] sm:$0xff]
  %v29 = vld [vmem:[%s0 + $0x78] sm:$0xff]
  %v30 = vld [vmem:[%s1] sm:$0xff]
  %v31 = vld [vmem:[%s1 + $0x8] sm:$0xff]
  %v32 = vld [vmem:[%s1 + $0x10] sm:$0xff]
  %v33 = vld [vmem:[%s1 + $0x18] sm:$0xff]
  %v34 = vld [vmem:[%s1 + $0x20] sm:$0xff]
  %v35 = vld [vmem:[%s1 + $0x28] sm:$0xff]
  %v36 = vld [vmem:[%s1 + $0x30] sm:$0xff]
  %v37 = vld [vmem:[%s1 + $0x38] sm:$0xff]
  %v38 = vld [vmem:[%s1 + $0x40] sm:$0xff]
  %v39 = vld [vmem:[%s1 + $0x48] sm:$0xff]
  %v40 = vld [vmem:[%s1 + $0x50] sm:$0xff]
  %v41 = vld [vmem:[%s1 + $0x58] sm:$0xff]
  %v42 = vld [vmem:[%s1 + $0x60] sm:$0xff]
  %v43 = vld [vmem:[%s1 + $0x68] sm:$0xff]
  %v44 = vld [vmem:[%s1 + $0x70] sm:$0xff]
  %v45 = vld [vmem:[%s1 + $0x78] sm:$0xff]
  %v46 = vld [vmem:[%s1 + $0x80] sm:$0xff]
  %v47 = vld [vmem:[%s1 + $0x88] sm:$0xff]
  %v48 = vld [vmem:[%s1 + $0x90] sm:$0xff]
  %v49 = vld [vmem:[%s1 + $0x98] sm:$0xff]
  %v50 = vld [vmem:[%s1 + $0xa0] sm:$0xff]
  %v51 = vld [vmem:[%s1 + $0xa8] sm:$0xff]
  %v52 = vld [vmem:[%s1 + $0xb0] sm:$0xff]
  %v53 = vld [vmem:[%s1 + $0xb8] sm:$0xff]
  %v54 = vld [vmem:[%s1 + $0xc0] sm:$0xff]
  %v55 = vld [vmem:[%s1 + $0xc8] sm:$0xff]
  %v56 = vld [vmem:[%s1 + $0xd0] sm:$0xff]
  %v57 = vld [vmem:[%s1 + $0xd8] sm:$0xff]
  %v58 = vld [vmem:[%s1 + $0xe0] sm:$0xff]
  %v59 = vld [vmem:[%s1 + $0xe8] sm:$0xff]
  %v60 = vld [vmem:[%s1 + $0xf0] sm:$0xff]
  %v61 = vld [vmem:[%s1 + $0xf8] sm:$0xff]
  %v62 = vld [vmem:[%s1 + $0x100] sm:$0xff]
  %v63 = vld [vmem:[%s1 + $0x108] sm:$0xff]
  %v64 = vld [vmem:[%s1 + $0x110] sm:$0xff]
  %v65 = vld [vmem:[%s1 + $0x118] sm:$0xff]
  %v66 = vld [vmem:[%s1 + $0x120] sm:$0xff]
  %v67 = vld [vmem:[%s1 + $0x128] sm:$0xff]
  %v68 = vld [vmem:[%s1 + $0x130] sm:$0xff]
  %v69 = vld [vmem:[%s1 + $0x138] sm:$0xff]
  %v70 = vld [vmem:[%s1 + $0x140] sm:$0xff]
  %v71 = vld [vmem:[%s1 + $0x148] sm:$0xff]
  %v72 = vld [vmem:[%s1 + $0x150] sm:$0xff]
  %v73 = vld [vmem:[%s1 + $0x158] sm:$0xff]
  %v74 = vld [vmem:[%s1 + $0x160] sm:$0xff]
  %v75 = vld [vmem:[%s1 + $0x168] sm:$0xff]
  %v76 = vld [vmem:[%s1 + $0x170] sm:$0xff]
  %v77 = vld [vmem:[%s1 + $0x178] sm:$0xff]
  %v78 = vld [vmem:[%s1 + $0x180] sm:$0xff]
  %v79 = vld [vmem:[%s1 + $0x188] sm:$0xff]
  %v80 = vld [vmem:[%s1 + $0x190] sm:$0xff]
  %v81 = vld [vmem:[%s1 + $0x198] sm:$0xff]
  %v82 = vld [vmem:[%s1 + $0x1a0] sm:$0xff]
  %v83 = vld [vmem:[%s1 + $0x1a8] sm:$0xff]
  %v84 = vld [vmem:[%s1 + $0x1b0] sm:$0xff]
  %v85 = vld [vmem:[%s1 + $0x1b8] sm:$0xff]
  %v86 = vld [vmem:[%s1 + $0x1c0] sm:$0xff]
  %v87 = vld [vmem:[%s1 + $0x1c8] sm:$0xff]
  %v88 = vld [vmem:[%s1 + $0x1d0] sm:$0xff]
  %v89 = vld [vmem:[%s1 + $0x1d8] sm:$0xff]
  %v90 = vld [vmem:[%s1 + $0x1e0] sm:$0xff]
  %v91 = vld [vmem:[%s1 + $0x1e8] sm:$0xff]
  %v92 = vld [vmem:[%s1 + $0x1f0] sm:$0xff]
  %v93 = vld [vmem:[%s1 + $0x1f8] sm:$0xff]
  %v94 = vld [vmem:[%s1 + $0x200] sm:$0xff]
  %v95 = vld [vmem:[%s1 + $0x208] sm:$0xff]
  %v96 = vld [vmem:[%s1 + $0x210] sm:$0xff]
  %v97 = vld [vmem:[%s1 + $0x218] sm:$0xff]
  %v98 = vld [vmem:[%s1 + $0x220] sm:$0xff]
  %v99 = vld [vmem:[%s1 + $0x228] sm:$0xff]
  %v100 = vld [vmem:[%s1 + $0x230] sm:$0xff]
  %v101 = vld [vmem:[%s1 + $0x238] sm:$0xff]
  %v102 = vld [vmem:[%s1 + $0x240] sm:$0xff]
  %v103 = vld [vmem:[%s1 + $0x248] sm:$0xff]
  %v104 = vld [vmem:[%s1 + $0x250] sm:$0xff]
  %v105 = vld [vmem:[%s1 + $0x258] sm:$0xff]
  %v106 = vld [vmem:[%s1 + $0x260] sm:$0xff]
  %v107 = vld [vmem:[%s1 + $0x268] sm:$0xff]
  %v108 = vld [vmem:[%s1 + $0x270] sm:$0xff]
  %v109 = vld [vmem:[%s1 + $0x278] sm:$0xff]
  %v110 = vld [vmem:[%s1 + $0x280] sm:$0xff]
  %v111 = vld [vmem:[%s1 + $0x288] sm:$0xff]
  %v112 = vld [vmem:[%s1 + $0x290] sm:$0xff]
  %v113 = vld [vmem:[%s1 + $0x298] sm:$0xff]
  %v114 = vld [vmem:[%s1 + $0x2a0] sm:$0xff]
  %v115 = vld [vmem:[%s1 + $0x2a8] sm:$0xff]
  %v116 = vld [vmem:[%s1 + $0x2b0] sm:$0xff]
  %v117 = vld [vmem:[%s1 + $0x2b8] sm:$0xff]
  %v118 = vld [vmem:[%s1 + $0x2c0] sm:$0xff]
  %v119 = vld [vmem:[%s1 + $0x2c8] sm:$0xff]
  %v120 = vld [vmem:[%s1 + $0x2d0] sm:$0xff]
  %v121 = vld [vmem:[%s1 + $0x2d8] sm:$0xff]
  %v122 = vld [vmem:[%s1 + $0x2e0] sm:$0xff]
  %v123 = vld [vmem:[%s1 + $0x2e8] sm:$0xff]
  %v124 = vld [vmem:[%s1 + $0x2f0] sm:$0xff]
  %v125 = vld [vmem:[%s1 + $0x2f8] sm:$0xff]
  %v126 = vld [vmem:[%s1 + $0x300] sm:$0xff]
  %v127 = vld [vmem:[%s1 + $0x308] sm:$0xff]
  %v128 = vld [vmem:[%s1 + $0x310] sm:$0xff]
  %v129 = vld [vmem:[%s1 + $0x318] sm:$0xff]
  %v130 = vld [vmem:[%s1 + $0x320] sm:$0xff]
  %v131 = vld [vmem:[%s1 + $0x328] sm:$0xff]
  %v132 = vld [vmem:[%s1 + $0x330] sm:$0xff]
  %v133 = vld [vmem:[%s1 + $0x338] sm:$0xff]
  %v134 = vld [vmem:[%s1 + $0x340] sm:$0xff]
  %v135 = vld [vmem:[%s1 + $0x348] sm:$0xff]
  %v136 = vld [vmem:[%s1 + $0x350] sm:$0xff]
  %v137 = vld [vmem:[%s1 + $0x358] sm:$0xff]
  %v138 = vld [vmem:[%s1 + $0x360] sm:$0xff]
  %v139 = vld [vmem:[%s1 + $0x368] sm:$0xff]
  %v140 = vld [vmem:[%s1 + $0x370] sm:$0xff]
  %v141 = vld [vmem:[%s1 + $0x378] sm:$0xff]
  %v142 = vld [vmem:[%s1 + $0x380] sm:$0xff]
  %v143 = vld [vmem:[%s1 + $0x388] sm:$0xff]
  %v144 = vld [vmem:[%s1 + $0x390] sm:$0xff]
  %v145 = vld [vmem:[%s1 + $0x398] sm:$0xff]
  %v146 = vld [vmem:[%s1 + $0x3a0] sm:$0xff]
  %v147 = vld [vmem:[%s1 + $0x3a8] sm:$0xff]
  %v148 = vld [vmem:[%s1 + $0x3b0] sm:$0xff]
  %v149 = vld [vmem:[%s1 + $0x3b8] sm:$0xff]
  %v150 = vld [vmem:[%s1 + $0x3c0] sm:$0xff]
  %v151 = vld [vmem:[%s1 + $0x3c8] sm:$0xff]
  %v152 = vld [vmem:[%s1 + $0x3d0] sm:$0xff]
  %v153 = vld [vmem:[%s1 + $0x3d8] sm:$0xff]
  %v154 = vld [vmem:[%s1 + $0x3e0] sm:$0xff]
  %v155 = vld [vmem:[%s1 + $0x3e8] sm:$0xff]
  %v156 = vld [vmem:[%s1 + $0x3f0] sm:$0xff]
  %v157 = vld [vmem:[%s1 + $0x3f8] sm:$0xff]
  %v158 = vld [vmem:[%s1 + $0x400] sm:$0xff]
  %v159 = vld [vmem:[%s1 + $0x408] sm:$0xff]
  %v160 = vld [vmem:[%s1 + $0x410] sm:$0xff]
  %v161 = vld [vmem:[%s1 + $0x418] sm:$0xff]
  %v162 = vld [vmem:[%s1 + $0x420] sm:$0xff]
  %v163 = vld [vmem:[%s1 + $0x428] sm:$0xff]
  %v164 = vld [vmem:[%s1 + $0x430] sm:$0xff]
  %v165 = vld [vmem:[%s1 + $0x438] sm:$0xff]
  %v166 = vld [vmem:[%s1 + $0x440] sm:$0xff]
  %v167 = vld [vmem:[%s1 + $0x448] sm:$0xff]
  %v168 = vld [vmem:[%s1 + $0x450] sm:$0xff]
  %v169 = vld [vmem:[%s1 + $0x458] sm:$0xff]
  %v170 = vld [vmem:[%s1 + $0x460] sm:$0xff]
  %v171 = vld [vmem:[%s1 + $0x468] sm:$0xff]
  %v172 = vld [vmem:[%s1 + $0x470] sm:$0xff]
  %v173 = vld [vmem:[%s1 + $0x478] sm:$0xff]
  %v174 = vld [vmem:[%s1 + $0x480] sm:$0xff]
  %v175 = vld [vmem:[%s1 + $0x488] sm:$0xff]
  %v176 = vld [vmem:[%s1 + $0x490] sm:$0xff]
  %v177 = vld [vmem:[%s1 + $0x498] sm:$0xff]
  %v178 = vld [vmem:[%s1 + $0x4a0] sm:$0xff]
  %v179 = vld [vmem:[%s1 + $0x4a8] sm:$0xff]
  %v180 = vld [vmem:[%s1 + $0x4b0] sm:$0xff]
  %v181 = vld [vmem:[%s1 + $0x4b8] sm:$0xff]
  %v182 = vld [vmem:[%s1 + $0x4c0] sm:$0xff]
  %v183 = vld [vmem:[%s1 + $0x4c8] sm:$0xff]
  %v184 = vld [vmem:[%s1 + $0x4d0] sm:$0xff]
  %v185 = vld [vmem:[%s1 + $0x4d8] sm:$0xff]
  %v186 = vld [vmem:[%s1 + $0x4e0] sm:$0xff]
  %v187 = vld [vmem:[%s1 + $0x4e8] sm:$0xff]
  %v188 = vld [vmem:[%s1 + $0x4f0] sm:$0xff]
  %v189 = vld [vmem:[%s1 + $0x4f8] sm:$0xff]
  %v190 = vld [vmem:[%s1 + $0x500] sm:$0xff]
  %v191 = vld [vmem:[%s1 + $0x508] sm:$0xff]
  %v192 = vld [vmem:[%s1 + $0x510] sm:$0xff]
  %v193 = vld [vmem:[%s1 + $0x518] sm:$0xff]
  %v194 = vld [vmem:[%s1 + $0x520] sm:$0xff]
  %v195 = vld [vmem:[%s1 + $0x528] sm:$0xff]
  %v196 = vld [vmem:[%s1 + $0x530] sm:$0xff]
  %v197 = vld [vmem:[%s1 + $0x538] sm:$0xff]
  %v198 = vld [vmem:[%s1 + $0x540] sm:$0xff]
  %v199 = vld [vmem:[%s1 + $0x548] sm:$0xff]
  %v200 = vld [vmem:[%s1 + $0x550] sm:$0xff]
  %v201 = vld [vmem:[%s1 + $0x558] sm:$0xff]
  %v202 = vld [vmem:[%s1 + $0x560] sm:$0xff]
  %v203 = vld [vmem:[%s1 + $0x568] sm:$0xff]
  %v204 = vld [vmem:[%s1 + $0x570] sm:$0xff]
  %v205 = vld [vmem:[%s1 + $0x578] sm:$0xff]
  %v206 = vld [vmem:[%s1 + $0x580] sm:$0xff]
  %v207 = vld [vmem:[%s1 + $0x588] sm:$0xff]
  %v208 = vld [vmem:[%s1 + $0x590] sm:$0xff]
  %v209 = vld [vmem:[%s1 + $0x598] sm:$0xff]
  %v210 = vld [vmem:[%s1 + $0x5a0] sm:$0xff]
  %v211 = vld [vmem:[%s1 + $0x5a8] sm:$0xff]
  %v212 = vld [vmem:[%s1 + $0x5b0] sm:$0xff]
  %v213 = vld [vmem:[%s1 + $0x5b8] sm:$0xff]
  %v214 = vld [vmem:[%s1 + $0x5c0] sm:$0xff]
  %v215 = vld [vmem:[%s1 + $0x5c8] sm:$0xff]
  %v216 = vld [vmem:[%s1 + $0x5d0] sm:$0xff]
  %v217 = vld [vmem:[%s1 + $0x5d8] sm:$0xff]
  %v218 = vld [vmem:[%s1 + $0x5e0] sm:$0xff]
  %v219 = vld [vmem:[%s1 + $0x5e8] sm:$0xff]
  %v220 = vld [vmem:[%s1 + $0x5f0] sm:$0xff]
  %v221 = vld [vmem:[%s1 + $0x5f8] sm:$0xff]
  %v222 = vld [vmem:[%s1 + $0x600] sm:$0xff]
  %v223 = vld [vmem:[%s1 + $0x608] sm:$0xff]
  %v224 = vld [vmem:[%s1 + $0x610] sm:$0xff]
  %v225 = vld [vmem:[%s1 + $0x618] sm:$0xff]
  %v226 = vld [vmem:[%s1 + $0x620] sm:$0xff]
  %v227 = vld [vmem:[%s1 + $0x628] sm:$0xff]
  %v228 = vld [vmem:[%s1 + $0x630] sm:$0xff]
  %v229 = vld [vmem:[%s1 + $0x638] sm:$0xff]
  %v230 = vld [vmem:[%s1 + $0x640] sm:$0xff]
  %v231 = vld [vmem:[%s1 + $0x648] sm:$0xff]
  %v232 = vld [vmem:[%s1 + $0x650] sm:$0xff]
  %v233 = vld [vmem:[%s1 + $0x658] sm:$0xff]
  %v234 = vld [vmem:[%s1 + $0x660] sm:$0xff]
  %v235 = vld [vmem:[%s1 + $0x668] sm:$0xff]
  %v236 = vld [vmem:[%s1 + $0x670] sm:$0xff]
  %v237 = vld [vmem:[%s1 + $0x678] sm:$0xff]
  %v238 = vld [vmem:[%s1 + $0x680] sm:$0xff]
  %v239 = vld [vmem:[%s1 + $0x688] sm:$0xff]
  %v240 = vld [vmem:[%s1 + $0x690] sm:$0xff]
  %v241 = vld [vmem:[%s1 + $0x698] sm:$0xff]
  %v242 = vld [vmem:[%s1 + $0x6a0] sm:$0xff]
  %v243 = vld [vmem:[%s1 + $0x6a8] sm:$0xff]
  %v244 = vld [vmem:[%s1 + $0x6b0] sm:$0xff]
  %v245 = vld [vmem:[%s1 + $0x6b8] sm:$0xff]
  %v246 = vld [vmem:[%s1 + $0x6c0] sm:$0xff]
  %v247 = vld [vmem:[%s1 + $0x6c8] sm:$0xff]
  %v248 = vld [vmem:[%s1 + $0x6d0] sm:$0xff]
  %v249 = vld [vmem:[%s1 + $0x6d8] sm:$0xff]
  %v250 = vld [vmem:[%s1 + $0x6e0] sm:$0xff]
  %v251 = vld [vmem:[%s1 + $0x6e8] sm:$0xff]
  %v252 = vld [vmem:[%s1 + $0x6f0] sm:$0xff]
  %v253 = vld [vmem:[%s1 + $0x6f8] sm:$0xff]
  %v254 = vld [vmem:[%s1 + $0x700] sm:$0xff]
  %v255 = vld [vmem:[%s1 + $0x708] sm:$0xff]
  %v256 = vld [vmem:[%s1 + $0x710] sm:$0xff]
  %v257 = vld [vmem:[%s1 + $0x718] sm:$0xff]
  %v258 = vld [vmem:[%s1 + $0x720] sm:$0xff]
  %v259 = vld [vmem:[%s1 + $0x728] sm:$0xff]
  %v260 = vld [vmem:[%s1 + $0x730] sm:$0xff]
  %v261 = vld [vmem:[%s1 + $0x738] sm:$0xff]
  %v262 = vld [vmem:[%s1 + $0x740] sm:$0xff]
  %v263 = vld [vmem:[%s1 + $0x748] sm:$0xff]
  %v264 = vld [vmem:[%s1 + $0x750] sm:$0xff]
  %v265 = vld [vmem:[%s1 + $0x758] sm:$0xff]
  %v266 = vld [vmem:[%s1 + $0x760] sm:$0xff]
  %v267 = vld [vmem:[%s1 + $0x768] sm:$0xff]
  %v268 = vld [vmem:[%s1 + $0x770] sm:$0xff]
  %v269 = vld [vmem:[%s1 + $0x778] sm:$0xff]
  %v270 = vld [vmem:[%s1 + $0x780] sm:$0xff]
  %v271 = vld [vmem:[%s1 + $0x788] sm:$0xff]
  %v272 = vld [vmem:[%s1 + $0x790] sm:$0xff]
  %v273 = vld [vmem:[%s1 + $0x798] sm:$0xff]
  %v274 = vld [vmem:[%s1 + $0x7a0] sm:$0xff]
  %v275 = vld [vmem:[%s1 + $0x7a8] sm:$0xff]
  %v276 = vld [vmem:[%s1 + $0x7b0] sm:$0xff]
  %v277 = vld [vmem:[%s1 + $0x7b8] sm:$0xff]
  %v278 = vld [vmem:[%s1 + $0x7c0] sm:$0xff]
  %v279 = vld [vmem:[%s1 + $0x7c8] sm:$0xff]
  %v280 = vld [vmem:[%s1 + $0x7d0] sm:$0xff]
  %v281 = vld [vmem:[%s1 + $0x7d8] sm:$0xff]
  %v282 = vld [vmem:[%s1 + $0x7e0] sm:$0xff]
  %v283 = vld [vmem:[%s1 + $0x7e8] sm:$0xff]
  %v284 = vld [vmem:[%s1 + $0x7f0] sm:$0xff]
  %v285 = vld [vmem:[%s1 + $0x7f8] sm:$0xff]
  %v286 = vld [vmem:[%s2] sm:$0x3]
  %v288 = vlaneseq
  %v289 = vshrl.u32 %v288, 7
  %v290 = vsub.s32 0, %v289
  %v291 = vrot.slane %v286, %v290
  %v292 = vlaneseq
  %v293 = vshrl.u32 %v292, 7
  %v294 = vsub.s32 1, %v293
  %v295 = vrot.slane %v286, %v294
  %v314 = vunpack.c.l.b16 %v14
  %v315 = vunpack.c.h.b16 %v14
  %v316 = vunpack.c.l.b16 %v15
  %v317 = vunpack.c.h.b16 %v15
  %v318 = vunpack.c.l.b16 %v16
  %v319 = vunpack.c.h.b16 %v16
  %v320 = vunpack.c.l.b16 %v17
  %v321 = vunpack.c.h.b16 %v17
  %v322 = vunpack.c.l.b16 %v18
  %v323 = vunpack.c.h.b16 %v18
  %v324 = vunpack.c.l.b16 %v19
  %v325 = vunpack.c.h.b16 %v19
  %v326 = vunpack.c.l.b16 %v20
  %v327 = vunpack.c.h.b16 %v20
  %v328 = vunpack.c.l.b16 %v21
  %v329 = vunpack.c.h.b16 %v21
  %v330 = vunpack.c.l.b16 %v22
  %v331 = vunpack.c.h.b16 %v22
  %v332 = vunpack.c.l.b16 %v23
  %v333 = vunpack.c.h.b16 %v23
  %v334 = vunpack.c.l.b16 %v24
  %v335 = vunpack.c.h.b16 %v24
  %v336 = vunpack.c.l.b16 %v25
  %v337 = vunpack.c.h.b16 %v25
  %v338 = vunpack.c.l.b16 %v26
  %v339 = vunpack.c.h.b16 %v26
  %v340 = vunpack.c.l.b16 %v27
  %v341 = vunpack.c.h.b16 %v27
  %v342 = vunpack.c.l.b16 %v28
  %v343 = vunpack.c.h.b16 %v28
  %v344 = vunpack.c.l.b16 %v29
  %v345 = vunpack.c.h.b16 %v29
  %v346 = vpack.c.b16 %v330, %v314
  %v347 = vpack.c.b16 %v331, %v315
  %v348 = vpack.c.b16 %v332, %v316
  %v349 = vpack.c.b16 %v333, %v317
  %v350 = vpack.c.b16 %v334, %v318
  %v351 = vpack.c.b16 %v335, %v319
  %v352 = vpack.c.b16 %v336, %v320
  %v353 = vpack.c.b16 %v337, %v321
  %v354 = vpack.c.b16 %v338, %v322
  %v355 = vpack.c.b16 %v339, %v323
  %v356 = vpack.c.b16 %v340, %v324
  %v357 = vpack.c.b16 %v341, %v325
  %v358 = vpack.c.b16 %v342, %v326
  %v359 = vpack.c.b16 %v343, %v327
  %v360 = vpack.c.b16 %v344, %v328
  %v361 = vpack.c.b16 %v345, %v329
  %v634 = vunpack.c.l.b16 %v30
  %v635 = vunpack.c.h.b16 %v30
  %v636 = vunpack.c.l.b16 %v31
  %v637 = vunpack.c.h.b16 %v31
  %v638 = vunpack.c.l.b16 %v32
  %v639 = vunpack.c.h.b16 %v32
  %v640 = vunpack.c.l.b16 %v33
  %v641 = vunpack.c.h.b16 %v33
  %v642 = vunpack.c.l.b16 %v34
  %v643 = vunpack.c.h.b16 %v34
  %v644 = vunpack.c.l.b16 %v35
  %v645 = vunpack.c.h.b16 %v35
  %v646 = vunpack.c.l.b16 %v36
  %v647 = vunpack.c.h.b16 %v36
  %v648 = vunpack.c.l.b16 %v37
  %v649 = vunpack.c.h.b16 %v37
  %v650 = vunpack.c.l.b16 %v38
  %v651 = vunpack.c.h.b16 %v38
  %v652 = vunpack.c.l.b16 %v39
  %v653 = vunpack.c.h.b16 %v39
  %v654 = vunpack.c.l.b16 %v40
  %v655 = vunpack.c.h.b16 %v40
  %v656 = vunpack.c.l.b16 %v41
  %v657 = vunpack.c.h.b16 %v41
  %v658 = vunpack.c.l.b16 %v42
  %v659 = vunpack.c.h.b16 %v42
  %v660 = vunpack.c.l.b16 %v43
  %v661 = vunpack.c.h.b16 %v43
  %v662 = vunpack.c.l.b16 %v44
  %v663 = vunpack.c.h.b16 %v44
  %v664 = vunpack.c.l.b16 %v45
  %v665 = vunpack.c.h.b16 %v45
  %v666 = vunpack.c.l.b16 %v46
  %v667 = vunpack.c.h.b16 %v46
  %v668 = vunpack.c.l.b16 %v47
  %v669 = vunpack.c.h.b16 %v47
  %v670 = vunpack.c.l.b16 %v48
  %v671 = vunpack.c.h.b16 %v48
  %v672 = vunpack.c.l.b16 %v49
  %v673 = vunpack.c.h.b16 %v49
  %v674 = vunpack.c.l.b16 %v50
  %v675 = vunpack.c.h.b16 %v50
  %v676 = vunpack.c.l.b16 %v51
  %v677 = vunpack.c.h.b16 %v51
  %v678 = vunpack.c.l.b16 %v52
  %v679 = vunpack.c.h.b16 %v52
  %v680 = vunpack.c.l.b16 %v53
  %v681 = vunpack.c.h.b16 %v53
  %v682 = vunpack.c.l.b16 %v54
  %v683 = vunpack.c.h.b16 %v54
  %v684 = vunpack.c.l.b16 %v55
  %v685 = vunpack.c.h.b16 %v55
  %v686 = vunpack.c.l.b16 %v56
  %v687 = vunpack.c.h.b16 %v56
  %v688 = vunpack.c.l.b16 %v57
  %v689 = vunpack.c.h.b16 %v57
  %v690 = vunpack.c.l.b16 %v58
  %v691 = vunpack.c.h.b16 %v58
  %v692 = vunpack.c.l.b16 %v59
  %v693 = vunpack.c.h.b16 %v59
  %v694 = vunpack.c.l.b16 %v60
  %v695 = vunpack.c.h.b16 %v60
  %v696 = vunpack.c.l.b16 %v61
  %v697 = vunpack.c.h.b16 %v61
  %v698 = vunpack.c.l.b16 %v62
  %v699 = vunpack.c.h.b16 %v62
  %v700 = vunpack.c.l.b16 %v63
  %v701 = vunpack.c.h.b16 %v63
  %v702 = vunpack.c.l.b16 %v64
  %v703 = vunpack.c.h.b16 %v64
  %v704 = vunpack.c.l.b16 %v65
  %v705 = vunpack.c.h.b16 %v65
  %v706 = vunpack.c.l.b16 %v66
  %v707 = vunpack.c.h.b16 %v66
  %v708 = vunpack.c.l.b16 %v67
  %v709 = vunpack.c.h.b16 %v67
  %v710 = vunpack.c.l.b16 %v68
  %v711 = vunpack.c.h.b16 %v68
  %v712 = vunpack.c.l.b16 %v69
  %v713 = vunpack.c.h.b16 %v69
  %v714 = vunpack.c.l.b16 %v70
  %v715 = vunpack.c.h.b16 %v70
  %v716 = vunpack.c.l.b16 %v71
  %v717 = vunpack.c.h.b16 %v71
  %v718 = vunpack.c.l.b16 %v72
  %v719 = vunpack.c.h.b16 %v72
  %v720 = vunpack.c.l.b16 %v73
  %v721 = vunpack.c.h.b16 %v73
  %v722 = vunpack.c.l.b16 %v74
  %v723 = vunpack.c.h.b16 %v74
  %v724 = vunpack.c.l.b16 %v75
  %v725 = vunpack.c.h.b16 %v75
  %v726 = vunpack.c.l.b16 %v76
  %v727 = vunpack.c.h.b16 %v76
  %v728 = vunpack.c.l.b16 %v77
  %v729 = vunpack.c.h.b16 %v77
  %v730 = vunpack.c.l.b16 %v78
  %v731 = vunpack.c.h.b16 %v78
  %v732 = vunpack.c.l.b16 %v79
  %v733 = vunpack.c.h.b16 %v79
  %v734 = vunpack.c.l.b16 %v80
  %v735 = vunpack.c.h.b16 %v80
  %v736 = vunpack.c.l.b16 %v81
  %v737 = vunpack.c.h.b16 %v81
  %v738 = vunpack.c.l.b16 %v82
  %v739 = vunpack.c.h.b16 %v82
  %v740 = vunpack.c.l.b16 %v83
  %v741 = vunpack.c.h.b16 %v83
  %v742 = vunpack.c.l.b16 %v84
  %v743 = vunpack.c.h.b16 %v84
  %v744 = vunpack.c.l.b16 %v85
  %v745 = vunpack.c.h.b16 %v85
  %v746 = vunpack.c.l.b16 %v86
  %v747 = vunpack.c.h.b16 %v86
  %v748 = vunpack.c.l.b16 %v87
  %v749 = vunpack.c.h.b16 %v87
  %v750 = vunpack.c.l.b16 %v88
  %v751 = vunpack.c.h.b16 %v88
  %v752 = vunpack.c.l.b16 %v89
  %v753 = vunpack.c.h.b16 %v89
  %v754 = vunpack.c.l.b16 %v90
  %v755 = vunpack.c.h.b16 %v90
  %v756 = vunpack.c.l.b16 %v91
  %v757 = vunpack.c.h.b16 %v91
  %v758 = vunpack.c.l.b16 %v92
  %v759 = vunpack.c.h.b16 %v92
  %v760 = vunpack.c.l.b16 %v93
  %v761 = vunpack.c.h.b16 %v93
  %v762 = vunpack.c.l.b16 %v94
  %v763 = vunpack.c.h.b16 %v94
  %v764 = vunpack.c.l.b16 %v95
  %v765 = vunpack.c.h.b16 %v95
  %v766 = vunpack.c.l.b16 %v96
  %v767 = vunpack.c.h.b16 %v96
  %v768 = vunpack.c.l.b16 %v97
  %v769 = vunpack.c.h.b16 %v97
  %v770 = vunpack.c.l.b16 %v98
  %v771 = vunpack.c.h.b16 %v98
  %v772 = vunpack.c.l.b16 %v99
  %v773 = vunpack.c.h.b16 %v99
  %v774 = vunpack.c.l.b16 %v100
  %v775 = vunpack.c.h.b16 %v100
  %v776 = vunpack.c.l.b16 %v101
  %v777 = vunpack.c.h.b16 %v101
  %v778 = vunpack.c.l.b16 %v102
  %v779 = vunpack.c.h.b16 %v102
  %v780 = vunpack.c.l.b16 %v103
  %v781 = vunpack.c.h.b16 %v103
  %v782 = vunpack.c.l.b16 %v104
  %v783 = vunpack.c.h.b16 %v104
  %v784 = vunpack.c.l.b16 %v105
  %v785 = vunpack.c.h.b16 %v105
  %v786 = vunpack.c.l.b16 %v106
  %v787 = vunpack.c.h.b16 %v106
  %v788 = vunpack.c.l.b16 %v107
  %v789 = vunpack.c.h.b16 %v107
  %v790 = vunpack.c.l.b16 %v108
  %v791 = vunpack.c.h.b16 %v108
  %v792 = vunpack.c.l.b16 %v109
  %v793 = vunpack.c.h.b16 %v109
  %v794 = vunpack.c.l.b16 %v110
  %v795 = vunpack.c.h.b16 %v110
  %v796 = vunpack.c.l.b16 %v111
  %v797 = vunpack.c.h.b16 %v111
  %v798 = vunpack.c.l.b16 %v112
  %v799 = vunpack.c.h.b16 %v112
  %v800 = vunpack.c.l.b16 %v113
  %v801 = vunpack.c.h.b16 %v113
  %v802 = vunpack.c.l.b16 %v114
  %v803 = vunpack.c.h.b16 %v114
  %v804 = vunpack.c.l.b16 %v115
  %v805 = vunpack.c.h.b16 %v115
  %v806 = vunpack.c.l.b16 %v116
  %v807 = vunpack.c.h.b16 %v116
  %v808 = vunpack.c.l.b16 %v117
  %v809 = vunpack.c.h.b16 %v117
  %v810 = vunpack.c.l.b16 %v118
  %v811 = vunpack.c.h.b16 %v118
  %v812 = vunpack.c.l.b16 %v119
  %v813 = vunpack.c.h.b16 %v119
  %v814 = vunpack.c.l.b16 %v120
  %v815 = vunpack.c.h.b16 %v120
  %v816 = vunpack.c.l.b16 %v121
  %v817 = vunpack.c.h.b16 %v121
  %v818 = vunpack.c.l.b16 %v122
  %v819 = vunpack.c.h.b16 %v122
  %v820 = vunpack.c.l.b16 %v123
  %v821 = vunpack.c.h.b16 %v123
  %v822 = vunpack.c.l.b16 %v124
  %v823 = vunpack.c.h.b16 %v124
  %v824 = vunpack.c.l.b16 %v125
  %v825 = vunpack.c.h.b16 %v125
  %v826 = vunpack.c.l.b16 %v126
  %v827 = vunpack.c.h.b16 %v126
  %v828 = vunpack.c.l.b16 %v127
  %v829 = vunpack.c.h.b16 %v127
  %v830 = vunpack.c.l.b16 %v128
  %v831 = vunpack.c.h.b16 %v128
  %v832 = vunpack.c.l.b16 %v129
  %v833 = vunpack.c.h.b16 %v129
  %v834 = vunpack.c.l.b16 %v130
  %v835 = vunpack.c.h.b16 %v130
  %v836 = vunpack.c.l.b16 %v131
  %v837 = vunpack.c.h.b16 %v131
  %v838 = vunpack.c.l.b16 %v132
  %v839 = vunpack.c.h.b16 %v132
  %v840 = vunpack.c.l.b16 %v133
  %v841 = vunpack.c.h.b16 %v133
  %v842 = vunpack.c.l.b16 %v134
  %v843 = vunpack.c.h.b16 %v134
  %v844 = vunpack.c.l.b16 %v135
  %v845 = vunpack.c.h.b16 %v135
  %v846 = vunpack.c.l.b16 %v136
  %v847 = vunpack.c.h.b16 %v136
  %v848 = vunpack.c.l.b16 %v137
  %v849 = vunpack.c.h.b16 %v137
  %v850 = vunpack.c.l.b16 %v138
  %v851 = vunpack.c.h.b16 %v138
  %v852 = vunpack.c.l.b16 %v139
  %v853 = vunpack.c.h.b16 %v139
  %v854 = vunpack.c.l.b16 %v140
  %v855 = vunpack.c.h.b16 %v140
  %v856 = vunpack.c.l.b16 %v141
  %v857 = vunpack.c.h.b16 %v141
  %v858 = vunpack.c.l.b16 %v142
  %v859 = vunpack.c.h.b16 %v142
  %v860 = vunpack.c.l.b16 %v143
  %v861 = vunpack.c.h.b16 %v143
  %v862 = vunpack.c.l.b16 %v144
  %v863 = vunpack.c.h.b16 %v144
  %v864 = vunpack.c.l.b16 %v145
  %v865 = vunpack.c.h.b16 %v145
  %v866 = vunpack.c.l.b16 %v146
  %v867 = vunpack.c.h.b16 %v146
  %v868 = vunpack.c.l.b16 %v147
  %v869 = vunpack.c.h.b16 %v147
  %v870 = vunpack.c.l.b16 %v148
  %v871 = vunpack.c.h.b16 %v148
  %v872 = vunpack.c.l.b16 %v149
  %v873 = vunpack.c.h.b16 %v149
  %v874 = vunpack.c.l.b16 %v150
  %v875 = vunpack.c.h.b16 %v150
  %v876 = vunpack.c.l.b16 %v151
  %v877 = vunpack.c.h.b16 %v151
  %v878 = vunpack.c.l.b16 %v152
  %v879 = vunpack.c.h.b16 %v152
  %v880 = vunpack.c.l.b16 %v153
  %v881 = vunpack.c.h.b16 %v153
  %v882 = vunpack.c.l.b16 %v154
  %v883 = vunpack.c.h.b16 %v154
  %v884 = vunpack.c.l.b16 %v155
  %v885 = vunpack.c.h.b16 %v155
  %v886 = vunpack.c.l.b16 %v156
  %v887 = vunpack.c.h.b16 %v156
  %v888 = vunpack.c.l.b16 %v157
  %v889 = vunpack.c.h.b16 %v157
  %v890 = vunpack.c.l.b16 %v158
  %v891 = vunpack.c.h.b16 %v158
  %v892 = vunpack.c.l.b16 %v159
  %v893 = vunpack.c.h.b16 %v159
  %v894 = vunpack.c.l.b16 %v160
  %v895 = vunpack.c.h.b16 %v160
  %v896 = vunpack.c.l.b16 %v161
  %v897 = vunpack.c.h.b16 %v161
  %v898 = vunpack.c.l.b16 %v162
  %v899 = vunpack.c.h.b16 %v162
  %v900 = vunpack.c.l.b16 %v163
  %v901 = vunpack.c.h.b16 %v163
  %v902 = vunpack.c.l.b16 %v164
  %v903 = vunpack.c.h.b16 %v164
  %v904 = vunpack.c.l.b16 %v165
  %v905 = vunpack.c.h.b16 %v165
  %v906 = vunpack.c.l.b16 %v166
  %v907 = vunpack.c.h.b16 %v166
  %v908 = vunpack.c.l.b16 %v167
  %v909 = vunpack.c.h.b16 %v167
  %v910 = vunpack.c.l.b16 %v168
  %v911 = vunpack.c.h.b16 %v168
  %v912 = vunpack.c.l.b16 %v169
  %v913 = vunpack.c.h.b16 %v169
  %v914 = vunpack.c.l.b16 %v170
  %v915 = vunpack.c.h.b16 %v170
  %v916 = vunpack.c.l.b16 %v171
  %v917 = vunpack.c.h.b16 %v171
  %v918 = vunpack.c.l.b16 %v172
  %v919 = vunpack.c.h.b16 %v172
  %v920 = vunpack.c.l.b16 %v173
  %v921 = vunpack.c.h.b16 %v173
  %v922 = vunpack.c.l.b16 %v174
  %v923 = vunpack.c.h.b16 %v174
  %v924 = vunpack.c.l.b16 %v175
  %v925 = vunpack.c.h.b16 %v175
  %v926 = vunpack.c.l.b16 %v176
  %v927 = vunpack.c.h.b16 %v176
  %v928 = vunpack.c.l.b16 %v177
  %v929 = vunpack.c.h.b16 %v177
  %v930 = vunpack.c.l.b16 %v178
  %v931 = vunpack.c.h.b16 %v178
  %v932 = vunpack.c.l.b16 %v179
  %v933 = vunpack.c.h.b16 %v179
  %v934 = vunpack.c.l.b16 %v180
  %v935 = vunpack.c.h.b16 %v180
  %v936 = vunpack.c.l.b16 %v181
  %v937 = vunpack.c.h.b16 %v181
  %v938 = vunpack.c.l.b16 %v182
  %v939 = vunpack.c.h.b16 %v182
  %v940 = vunpack.c.l.b16 %v183
  %v941 = vunpack.c.h.b16 %v183
  %v942 = vunpack.c.l.b16 %v184
  %v943 = vunpack.c.h.b16 %v184
  %v944 = vunpack.c.l.b16 %v185
  %v945 = vunpack.c.h.b16 %v185
  %v946 = vunpack.c.l.b16 %v186
  %v947 = vunpack.c.h.b16 %v186
  %v948 = vunpack.c.l.b16 %v187
  %v949 = vunpack.c.h.b16 %v187
  %v950 = vunpack.c.l.b16 %v188
  %v951 = vunpack.c.h.b16 %v188
  %v952 = vunpack.c.l.b16 %v189
  %v953 = vunpack.c.h.b16 %v189
  %v954 = vunpack.c.l.b16 %v190
  %v955 = vunpack.c.h.b16 %v190
  %v956 = vunpack.c.l.b16 %v191
  %v957 = vunpack.c.h.b16 %v191
  %v958 = vunpack.c.l.b16 %v192
  %v959 = vunpack.c.h.b16 %v192
  %v960 = vunpack.c.l.b16 %v193
  %v961 = vunpack.c.h.b16 %v193
  %v962 = vunpack.c.l.b16 %v194
  %v963 = vunpack.c.h.b16 %v194
  %v964 = vunpack.c.l.b16 %v195
  %v965 = vunpack.c.h.b16 %v195
  %v966 = vunpack.c.l.b16 %v196
  %v967 = vunpack.c.h.b16 %v196
  %v968 = vunpack.c.l.b16 %v197
  %v969 = vunpack.c.h.b16 %v197
  %v970 = vunpack.c.l.b16 %v198
  %v971 = vunpack.c.h.b16 %v198
  %v972 = vunpack.c.l.b16 %v199
  %v973 = vunpack.c.h.b16 %v199
  %v974 = vunpack.c.l.b16 %v200
  %v975 = vunpack.c.h.b16 %v200
  %v976 = vunpack.c.l.b16 %v201
  %v977 = vunpack.c.h.b16 %v201
  %v978 = vunpack.c.l.b16 %v202
  %v979 = vunpack.c.h.b16 %v202
  %v980 = vunpack.c.l.b16 %v203
  %v981 = vunpack.c.h.b16 %v203
  %v982 = vunpack.c.l.b16 %v204
  %v983 = vunpack.c.h.b16 %v204
  %v984 = vunpack.c.l.b16 %v205
  %v985 = vunpack.c.h.b16 %v205
  %v986 = vunpack.c.l.b16 %v206
  %v987 = vunpack.c.h.b16 %v206
  %v988 = vunpack.c.l.b16 %v207
  %v989 = vunpack.c.h.b16 %v207
  %v990 = vunpack.c.l.b16 %v208
  %v991 = vunpack.c.h.b16 %v208
  %v992 = vunpack.c.l.b16 %v209
  %v993 = vunpack.c.h.b16 %v209
  %v994 = vunpack.c.l.b16 %v210
  %v995 = vunpack.c.h.b16 %v210
  %v996 = vunpack.c.l.b16 %v211
  %v997 = vunpack.c.h.b16 %v211
  %v998 = vunpack.c.l.b16 %v212
  %v999 = vunpack.c.h.b16 %v212
  %v1000 = vunpack.c.l.b16 %v213
  %v1001 = vunpack.c.h.b16 %v213
  %v1002 = vunpack.c.l.b16 %v214
  %v1003 = vunpack.c.h.b16 %v214
  %v1004 = vunpack.c.l.b16 %v215
  %v1005 = vunpack.c.h.b16 %v215
  %v1006 = vunpack.c.l.b16 %v216
  %v1007 = vunpack.c.h.b16 %v216
  %v1008 = vunpack.c.l.b16 %v217
  %v1009 = vunpack.c.h.b16 %v217
  %v1010 = vunpack.c.l.b16 %v218
  %v1011 = vunpack.c.h.b16 %v218
  %v1012 = vunpack.c.l.b16 %v219
  %v1013 = vunpack.c.h.b16 %v219
  %v1014 = vunpack.c.l.b16 %v220
  %v1015 = vunpack.c.h.b16 %v220
  %v1016 = vunpack.c.l.b16 %v221
  %v1017 = vunpack.c.h.b16 %v221
  %v1018 = vunpack.c.l.b16 %v222
  %v1019 = vunpack.c.h.b16 %v222
  %v1020 = vunpack.c.l.b16 %v223
  %v1021 = vunpack.c.h.b16 %v223
  %v1022 = vunpack.c.l.b16 %v224
  %v1023 = vunpack.c.h.b16 %v224
  %v1024 = vunpack.c.l.b16 %v225
  %v1025 = vunpack.c.h.b16 %v225
  %v1026 = vunpack.c.l.b16 %v226
  %v1027 = vunpack.c.h.b16 %v226
  %v1028 = vunpack.c.l.b16 %v227
  %v1029 = vunpack.c.h.b16 %v227
  %v1030 = vunpack.c.l.b16 %v228
  %v1031 = vunpack.c.h.b16 %v228
  %v1032 = vunpack.c.l.b16 %v229
  %v1033 = vunpack.c.h.b16 %v229
  %v1034 = vunpack.c.l.b16 %v230
  %v1035 = vunpack.c.h.b16 %v230
  %v1036 = vunpack.c.l.b16 %v231
  %v1037 = vunpack.c.h.b16 %v231
  %v1038 = vunpack.c.l.b16 %v232
  %v1039 = vunpack.c.h.b16 %v232
  %v1040 = vunpack.c.l.b16 %v233
  %v1041 = vunpack.c.h.b16 %v233
  %v1042 = vunpack.c.l.b16 %v234
  %v1043 = vunpack.c.h.b16 %v234
  %v1044 = vunpack.c.l.b16 %v235
  %v1045 = vunpack.c.h.b16 %v235
  %v1046 = vunpack.c.l.b16 %v236
  %v1047 = vunpack.c.h.b16 %v236
  %v1048 = vunpack.c.l.b16 %v237
  %v1049 = vunpack.c.h.b16 %v237
  %v1050 = vunpack.c.l.b16 %v238
  %v1051 = vunpack.c.h.b16 %v238
  %v1052 = vunpack.c.l.b16 %v239
  %v1053 = vunpack.c.h.b16 %v239
  %v1054 = vunpack.c.l.b16 %v240
  %v1055 = vunpack.c.h.b16 %v240
  %v1056 = vunpack.c.l.b16 %v241
  %v1057 = vunpack.c.h.b16 %v241
  %v1058 = vunpack.c.l.b16 %v242
  %v1059 = vunpack.c.h.b16 %v242
  %v1060 = vunpack.c.l.b16 %v243
  %v1061 = vunpack.c.h.b16 %v243
  %v1062 = vunpack.c.l.b16 %v244
  %v1063 = vunpack.c.h.b16 %v244
  %v1064 = vunpack.c.l.b16 %v245
  %v1065 = vunpack.c.h.b16 %v245
  %v1066 = vunpack.c.l.b16 %v246
  %v1067 = vunpack.c.h.b16 %v246
  %v1068 = vunpack.c.l.b16 %v247
  %v1069 = vunpack.c.h.b16 %v247
  %v1070 = vunpack.c.l.b16 %v248
  %v1071 = vunpack.c.h.b16 %v248
  %v1072 = vunpack.c.l.b16 %v249
  %v1073 = vunpack.c.h.b16 %v249
  %v1074 = vunpack.c.l.b16 %v250
  %v1075 = vunpack.c.h.b16 %v250
  %v1076 = vunpack.c.l.b16 %v251
  %v1077 = vunpack.c.h.b16 %v251
  %v1078 = vunpack.c.l.b16 %v252
  %v1079 = vunpack.c.h.b16 %v252
  %v1080 = vunpack.c.l.b16 %v253
  %v1081 = vunpack.c.h.b16 %v253
  %v1082 = vunpack.c.l.b16 %v254
  %v1083 = vunpack.c.h.b16 %v254
  %v1084 = vunpack.c.l.b16 %v255
  %v1085 = vunpack.c.h.b16 %v255
  %v1086 = vunpack.c.l.b16 %v256
  %v1087 = vunpack.c.h.b16 %v256
  %v1088 = vunpack.c.l.b16 %v257
  %v1089 = vunpack.c.h.b16 %v257
  %v1090 = vunpack.c.l.b16 %v258
  %v1091 = vunpack.c.h.b16 %v258
  %v1092 = vunpack.c.l.b16 %v259
  %v1093 = vunpack.c.h.b16 %v259
  %v1094 = vunpack.c.l.b16 %v260
  %v1095 = vunpack.c.h.b16 %v260
  %v1096 = vunpack.c.l.b16 %v261
  %v1097 = vunpack.c.h.b16 %v261
  %v1098 = vunpack.c.l.b16 %v262
  %v1099 = vunpack.c.h.b16 %v262
  %v1100 = vunpack.c.l.b16 %v263
  %v1101 = vunpack.c.h.b16 %v263
  %v1102 = vunpack.c.l.b16 %v264
  %v1103 = vunpack.c.h.b16 %v264
  %v1104 = vunpack.c.l.b16 %v265
  %v1105 = vunpack.c.h.b16 %v265
  %v1106 = vunpack.c.l.b16 %v266
  %v1107 = vunpack.c.h.b16 %v266
  %v1108 = vunpack.c.l.b16 %v267
  %v1109 = vunpack.c.h.b16 %v267
  %v1110 = vunpack.c.l.b16 %v268
  %v1111 = vunpack.c.h.b16 %v268
  %v1112 = vunpack.c.l.b16 %v269
  %v1113 = vunpack.c.h.b16 %v269
  %v1114 = vunpack.c.l.b16 %v270
  %v1115 = vunpack.c.h.b16 %v270
  %v1116 = vunpack.c.l.b16 %v271
  %v1117 = vunpack.c.h.b16 %v271
  %v1118 = vunpack.c.l.b16 %v272
  %v1119 = vunpack.c.h.b16 %v272
  %v1120 = vunpack.c.l.b16 %v273
  %v1121 = vunpack.c.h.b16 %v273
  %v1122 = vunpack.c.l.b16 %v274
  %v1123 = vunpack.c.h.b16 %v274
  %v1124 = vunpack.c.l.b16 %v275
  %v1125 = vunpack.c.h.b16 %v275
  %v1126 = vunpack.c.l.b16 %v276
  %v1127 = vunpack.c.h.b16 %v276
  %v1128 = vunpack.c.l.b16 %v277
  %v1129 = vunpack.c.h.b16 %v277
  %v1130 = vunpack.c.l.b16 %v278
  %v1131 = vunpack.c.h.b16 %v278
  %v1132 = vunpack.c.l.b16 %v279
  %v1133 = vunpack.c.h.b16 %v279
  %v1134 = vunpack.c.l.b16 %v280
  %v1135 = vunpack.c.h.b16 %v280
  %v1136 = vunpack.c.l.b16 %v281
  %v1137 = vunpack.c.h.b16 %v281
  %v1138 = vunpack.c.l.b16 %v282
  %v1139 = vunpack.c.h.b16 %v282
  %v1140 = vunpack.c.l.b16 %v283
  %v1141 = vunpack.c.h.b16 %v283
  %v1142 = vunpack.c.l.b16 %v284
  %v1143 = vunpack.c.h.b16 %v284
  %v1144 = vunpack.c.l.b16 %v285
  %v1145 = vunpack.c.h.b16 %v285
  %v1146 = vpack.c.b16 %v636, %v634
  %v1147 = vpack.c.b16 %v637, %v635
  %v1148 = vpack.c.b16 %v640, %v638
  %v1149 = vpack.c.b16 %v641, %v639
  %v1150 = vpack.c.b16 %v644, %v642
  %v1151 = vpack.c.b16 %v645, %v643
  %v1152 = vpack.c.b16 %v648, %v646
  %v1153 = vpack.c.b16 %v649, %v647
  %v1154 = vpack.c.b16 %v652, %v650
  %v1155 = vpack.c.b16 %v653, %v651
  %v1156 = vpack.c.b16 %v656, %v654
  %v1157 = vpack.c.b16 %v657, %v655
  %v1158 = vpack.c.b16 %v660, %v658
  %v1159 = vpack.c.b16 %v661, %v659
  %v1160 = vpack.c.b16 %v664, %v662
  %v1161 = vpack.c.b16 %v665, %v663
  %v1162 = vpack.c.b16 %v668, %v666
  %v1163 = vpack.c.b16 %v669, %v667
  %v1164 = vpack.c.b16 %v672, %v670
  %v1165 = vpack.c.b16 %v673, %v671
  %v1166 = vpack.c.b16 %v676, %v674
  %v1167 = vpack.c.b16 %v677, %v675
  %v1168 = vpack.c.b16 %v680, %v678
  %v1169 = vpack.c.b16 %v681, %v679
  %v1170 = vpack.c.b16 %v684, %v682
  %v1171 = vpack.c.b16 %v685, %v683
  %v1172 = vpack.c.b16 %v688, %v686
  %v1173 = vpack.c.b16 %v689, %v687
  %v1174 = vpack.c.b16 %v692, %v690
  %v1175 = vpack.c.b16 %v693, %v691
  %v1176 = vpack.c.b16 %v696, %v694
  %v1177 = vpack.c.b16 %v697, %v695
  %v1178 = vpack.c.b16 %v700, %v698
  %v1179 = vpack.c.b16 %v701, %v699
  %v1180 = vpack.c.b16 %v704, %v702
  %v1181 = vpack.c.b16 %v705, %v703
  %v1182 = vpack.c.b16 %v708, %v706
  %v1183 = vpack.c.b16 %v709, %v707
  %v1184 = vpack.c.b16 %v712, %v710
  %v1185 = vpack.c.b16 %v713, %v711
  %v1186 = vpack.c.b16 %v716, %v714
  %v1187 = vpack.c.b16 %v717, %v715
  %v1188 = vpack.c.b16 %v720, %v718
  %v1189 = vpack.c.b16 %v721, %v719
  %v1190 = vpack.c.b16 %v724, %v722
  %v1191 = vpack.c.b16 %v725, %v723
  %v1192 = vpack.c.b16 %v728, %v726
  %v1193 = vpack.c.b16 %v729, %v727
  %v1194 = vpack.c.b16 %v732, %v730
  %v1195 = vpack.c.b16 %v733, %v731
  %v1196 = vpack.c.b16 %v736, %v734
  %v1197 = vpack.c.b16 %v737, %v735
  %v1198 = vpack.c.b16 %v740, %v738
  %v1199 = vpack.c.b16 %v741, %v739
  %v1200 = vpack.c.b16 %v744, %v742
  %v1201 = vpack.c.b16 %v745, %v743
  %v1202 = vpack.c.b16 %v748, %v746
  %v1203 = vpack.c.b16 %v749, %v747
  %v1204 = vpack.c.b16 %v752, %v750
  %v1205 = vpack.c.b16 %v753, %v751
  %v1206 = vpack.c.b16 %v756, %v754
  %v1207 = vpack.c.b16 %v757, %v755
  %v1208 = vpack.c.b16 %v760, %v758
  %v1209 = vpack.c.b16 %v761, %v759
  %v1210 = vpack.c.b16 %v764, %v762
  %v1211 = vpack.c.b16 %v765, %v763
  %v1212 = vpack.c.b16 %v768, %v766
  %v1213 = vpack.c.b16 %v769, %v767
  %v1214 = vpack.c.b16 %v772, %v770
  %v1215 = vpack.c.b16 %v773, %v771
  %v1216 = vpack.c.b16 %v776, %v774
  %v1217 = vpack.c.b16 %v777, %v775
  %v1218 = vpack.c.b16 %v780, %v778
  %v1219 = vpack.c.b16 %v781, %v779
  %v1220 = vpack.c.b16 %v784, %v782
  %v1221 = vpack.c.b16 %v785, %v783
  %v1222 = vpack.c.b16 %v788, %v786
  %v1223 = vpack.c.b16 %v789, %v787
  %v1224 = vpack.c.b16 %v792, %v790
  %v1225 = vpack.c.b16 %v793, %v791
  %v1226 = vpack.c.b16 %v796, %v794
  %v1227 = vpack.c.b16 %v797, %v795
  %v1228 = vpack.c.b16 %v800, %v798
  %v1229 = vpack.c.b16 %v801, %v799
  %v1230 = vpack.c.b16 %v804, %v802
  %v1231 = vpack.c.b16 %v805, %v803
  %v1232 = vpack.c.b16 %v808, %v806
  %v1233 = vpack.c.b16 %v809, %v807
  %v1234 = vpack.c.b16 %v812, %v810
  %v1235 = vpack.c.b16 %v813, %v811
  %v1236 = vpack.c.b16 %v816, %v814
  %v1237 = vpack.c.b16 %v817, %v815
  %v1238 = vpack.c.b16 %v820, %v818
  %v1239 = vpack.c.b16 %v821, %v819
  %v1240 = vpack.c.b16 %v824, %v822
  %v1241 = vpack.c.b16 %v825, %v823
  %v1242 = vpack.c.b16 %v828, %v826
  %v1243 = vpack.c.b16 %v829, %v827
  %v1244 = vpack.c.b16 %v832, %v830
  %v1245 = vpack.c.b16 %v833, %v831
  %v1246 = vpack.c.b16 %v836, %v834
  %v1247 = vpack.c.b16 %v837, %v835
  %v1248 = vpack.c.b16 %v840, %v838
  %v1249 = vpack.c.b16 %v841, %v839
  %v1250 = vpack.c.b16 %v844, %v842
  %v1251 = vpack.c.b16 %v845, %v843
  %v1252 = vpack.c.b16 %v848, %v846
  %v1253 = vpack.c.b16 %v849, %v847
  %v1254 = vpack.c.b16 %v852, %v850
  %v1255 = vpack.c.b16 %v853, %v851
  %v1256 = vpack.c.b16 %v856, %v854
  %v1257 = vpack.c.b16 %v857, %v855
  %v1258 = vpack.c.b16 %v860, %v858
  %v1259 = vpack.c.b16 %v861, %v859
  %v1260 = vpack.c.b16 %v864, %v862
  %v1261 = vpack.c.b16 %v865, %v863
  %v1262 = vpack.c.b16 %v868, %v866
  %v1263 = vpack.c.b16 %v869, %v867
  %v1264 = vpack.c.b16 %v872, %v870
  %v1265 = vpack.c.b16 %v873, %v871
  %v1266 = vpack.c.b16 %v876, %v874
  %v1267 = vpack.c.b16 %v877, %v875
  %v1268 = vpack.c.b16 %v880, %v878
  %v1269 = vpack.c.b16 %v881, %v879
  %v1270 = vpack.c.b16 %v884, %v882
  %v1271 = vpack.c.b16 %v885, %v883
  %v1272 = vpack.c.b16 %v888, %v886
  %v1273 = vpack.c.b16 %v889, %v887
  %v1274 = vpack.c.b16 %v892, %v890
  %v1275 = vpack.c.b16 %v893, %v891
  %v1276 = vpack.c.b16 %v896, %v894
  %v1277 = vpack.c.b16 %v897, %v895
  %v1278 = vpack.c.b16 %v900, %v898
  %v1279 = vpack.c.b16 %v901, %v899
  %v1280 = vpack.c.b16 %v904, %v902
  %v1281 = vpack.c.b16 %v905, %v903
  %v1282 = vpack.c.b16 %v908, %v906
  %v1283 = vpack.c.b16 %v909, %v907
  %v1284 = vpack.c.b16 %v912, %v910
  %v1285 = vpack.c.b16 %v913, %v911
  %v1286 = vpack.c.b16 %v916, %v914
  %v1287 = vpack.c.b16 %v917, %v915
  %v1288 = vpack.c.b16 %v920, %v918
  %v1289 = vpack.c.b16 %v921, %v919
  %v1290 = vpack.c.b16 %v924, %v922
  %v1291 = vpack.c.b16 %v925, %v923
  %v1292 = vpack.c.b16 %v928, %v926
  %v1293 = vpack.c.b16 %v929, %v927
  %v1294 = vpack.c.b16 %v932, %v930
  %v1295 = vpack.c.b16 %v933, %v931
  %v1296 = vpack.c.b16 %v936, %v934
  %v1297 = vpack.c.b16 %v937, %v935
  %v1298 = vpack.c.b16 %v940, %v938
  %v1299 = vpack.c.b16 %v941, %v939
  %v1300 = vpack.c.b16 %v944, %v942
  %v1301 = vpack.c.b16 %v945, %v943
  %v1302 = vpack.c.b16 %v948, %v946
  %v1303 = vpack.c.b16 %v949, %v947
  %v1304 = vpack.c.b16 %v952, %v950
  %v1305 = vpack.c.b16 %v953, %v951
  %v1306 = vpack.c.b16 %v956, %v954
  %v1307 = vpack.c.b16 %v957, %v955
  %v1308 = vpack.c.b16 %v960, %v958
  %v1309 = vpack.c.b16 %v961, %v959
  %v1310 = vpack.c.b16 %v964, %v962
  %v1311 = vpack.c.b16 %v965, %v963
  %v1312 = vpack.c.b16 %v968, %v966
  %v1313 = vpack.c.b16 %v969, %v967
  %v1314 = vpack.c.b16 %v972, %v970
  %v1315 = vpack.c.b16 %v973, %v971
  %v1316 = vpack.c.b16 %v976, %v974
  %v1317 = vpack.c.b16 %v977, %v975
  %v1318 = vpack.c.b16 %v980, %v978
  %v1319 = vpack.c.b16 %v981, %v979
  %v1320 = vpack.c.b16 %v984, %v982
  %v1321 = vpack.c.b16 %v985, %v983
  %v1322 = vpack.c.b16 %v988, %v986
  %v1323 = vpack.c.b16 %v989, %v987
  %v1324 = vpack.c.b16 %v992, %v990
  %v1325 = vpack.c.b16 %v993, %v991
  %v1326 = vpack.c.b16 %v996, %v994
  %v1327 = vpack.c.b16 %v997, %v995
  %v1328 = vpack.c.b16 %v1000, %v998
  %v1329 = vpack.c.b16 %v1001, %v999
  %v1330 = vpack.c.b16 %v1004, %v1002
  %v1331 = vpack.c.b16 %v1005, %v1003
  %v1332 = vpack.c.b16 %v1008, %v1006
  %v1333 = vpack.c.b16 %v1009, %v1007
  %v1334 = vpack.c.b16 %v1012, %v1010
  %v1335 = vpack.c.b16 %v1013, %v1011
  %v1336 = vpack.c.b16 %v1016, %v1014
  %v1337 = vpack.c.b16 %v1017, %v1015
  %v1338 = vpack.c.b16 %v1020, %v1018
  %v1339 = vpack.c.b16 %v1021, %v1019
  %v1340 = vpack.c.b16 %v1024, %v1022
  %v1341 = vpack.c.b16 %v1025, %v1023
  %v1342 = vpack.c.b16 %v1028, %v1026
  %v1343 = vpack.c.b16 %v1029, %v1027
  %v1344 = vpack.c.b16 %v1032, %v1030
  %v1345 = vpack.c.b16 %v1033, %v1031
  %v1346 = vpack.c.b16 %v1036, %v1034
  %v1347 = vpack.c.b16 %v1037, %v1035
  %v1348 = vpack.c.b16 %v1040, %v1038
  %v1349 = vpack.c.b16 %v1041, %v1039
  %v1350 = vpack.c.b16 %v1044, %v1042
  %v1351 = vpack.c.b16 %v1045, %v1043
  %v1352 = vpack.c.b16 %v1048, %v1046
  %v1353 = vpack.c.b16 %v1049, %v1047
  %v1354 = vpack.c.b16 %v1052, %v1050
  %v1355 = vpack.c.b16 %v1053, %v1051
  %v1356 = vpack.c.b16 %v1056, %v1054
  %v1357 = vpack.c.b16 %v1057, %v1055
  %v1358 = vpack.c.b16 %v1060, %v1058
  %v1359 = vpack.c.b16 %v1061, %v1059
  %v1360 = vpack.c.b16 %v1064, %v1062
  %v1361 = vpack.c.b16 %v1065, %v1063
  %v1362 = vpack.c.b16 %v1068, %v1066
  %v1363 = vpack.c.b16 %v1069, %v1067
  %v1364 = vpack.c.b16 %v1072, %v1070
  %v1365 = vpack.c.b16 %v1073, %v1071
  %v1366 = vpack.c.b16 %v1076, %v1074
  %v1367 = vpack.c.b16 %v1077, %v1075
  %v1368 = vpack.c.b16 %v1080, %v1078
  %v1369 = vpack.c.b16 %v1081, %v1079
  %v1370 = vpack.c.b16 %v1084, %v1082
  %v1371 = vpack.c.b16 %v1085, %v1083
  %v1372 = vpack.c.b16 %v1088, %v1086
  %v1373 = vpack.c.b16 %v1089, %v1087
  %v1374 = vpack.c.b16 %v1092, %v1090
  %v1375 = vpack.c.b16 %v1093, %v1091
  %v1376 = vpack.c.b16 %v1096, %v1094
  %v1377 = vpack.c.b16 %v1097, %v1095
  %v1378 = vpack.c.b16 %v1100, %v1098
  %v1379 = vpack.c.b16 %v1101, %v1099
  %v1380 = vpack.c.b16 %v1104, %v1102
  %v1381 = vpack.c.b16 %v1105, %v1103
  %v1382 = vpack.c.b16 %v1108, %v1106
  %v1383 = vpack.c.b16 %v1109, %v1107
  %v1384 = vpack.c.b16 %v1112, %v1110
  %v1385 = vpack.c.b16 %v1113, %v1111
  %v1386 = vpack.c.b16 %v1116, %v1114
  %v1387 = vpack.c.b16 %v1117, %v1115
  %v1388 = vpack.c.b16 %v1120, %v1118
  %v1389 = vpack.c.b16 %v1121, %v1119
  %v1390 = vpack.c.b16 %v1124, %v1122
  %v1391 = vpack.c.b16 %v1125, %v1123
  %v1392 = vpack.c.b16 %v1128, %v1126
  %v1393 = vpack.c.b16 %v1129, %v1127
  %v1394 = vpack.c.b16 %v1132, %v1130
  %v1395 = vpack.c.b16 %v1133, %v1131
  %v1396 = vpack.c.b16 %v1136, %v1134
  %v1397 = vpack.c.b16 %v1137, %v1135
  %v1398 = vpack.c.b16 %v1140, %v1138
  %v1399 = vpack.c.b16 %v1141, %v1139
  %v1400 = vpack.c.b16 %v1144, %v1142
  %v1401 = vpack.c.b16 %v1145, %v1143
  %1658 = vmatprep.subr.bf16.mxu0 %v1147
  %1659 = vmatpush1.bf16.msra.mxu0 %v1146
  %1660 = vmatprep.subr.bf16.mxu0 %v1149
  %1661 = vmatpush1.bf16.msra.mxu0 %v1148
  %1662 = vmatprep.subr.bf16.mxu0 %v1151
  %1663 = vmatpush1.bf16.msra.mxu0 %v1150
  %1664 = vmatprep.subr.bf16.mxu0 %v1153
  %1665 = vmatpush1.bf16.msra.mxu0 %v1152
  %1666 = vmatprep.subr.bf16.mxu0 %v1155
  %1667 = vmatpush1.bf16.msra.mxu0 %v1154
  %1668 = vmatprep.subr.bf16.mxu0 %v1157
  %1669 = vmatpush1.bf16.msra.mxu0 %v1156
  %1670 = vmatprep.subr.bf16.mxu0 %v1159
  %1671 = vmatpush1.bf16.msra.mxu0 %v1158
  %1672 = vmatprep.subr.bf16.mxu0 %v1161
  %1673 = vmatpush1.bf16.msra.mxu0 %v1160
  %1674 = vmatprep.subr.bf16.mxu0 %v1163
  %1675 = vmatpush1.bf16.msra.mxu0 %v1162
  %1676 = vmatprep.subr.bf16.mxu0 %v1165
  %1677 = vmatpush1.bf16.msra.mxu0 %v1164
  %1678 = vmatprep.subr.bf16.mxu0 %v1167
  %1679 = vmatpush1.bf16.msra.mxu0 %v1166
  %1680 = vmatprep.subr.bf16.mxu0 %v1169
  %1681 = vmatpush1.bf16.msra.mxu0 %v1168
  %1682 = vmatprep.subr.bf16.mxu0 %v1171
  %1683 = vmatpush1.bf16.msra.mxu0 %v1170
  %1684 = vmatprep.subr.bf16.mxu0 %v1173
  %1685 = vmatpush1.bf16.msra.mxu0 %v1172
  %1686 = vmatprep.subr.bf16.mxu0 %v1175
  %1687 = vmatpush1.bf16.msra.mxu0 %v1174
  %1688 = vmatprep.subr.bf16.mxu0 %v1177
  %1689 = vmatpush1.bf16.msra.mxu0 %v1176
  %1690 = vmatprep.mubr.bf16.mxu0 %v347
  %1691 = vmatmul.mubr.bf16.gmra.mrb[0].mxu0 %v346
  %v1692 = vpop.f32.mrb[0].mxu0
  %v1693 = vadd.f32 %v291, %v1692
  %v1694 = vpop.f32.mrb[0].mxu0
  %v1695 = vadd.f32 %v295, %v1694
  %v1696 = vpop.f32.mrb[0].mxu0
  %v1697 = vadd.f32 %v291, %v1696
  %v1698 = vpop.f32.mrb[0].mxu0
  %v1699 = vadd.f32 %v295, %v1698
  %1700 = vdwg.mxu0
  %1701 = vmatprep.subr.bf16.mxu0 %v1179
  %1702 = vmatpush1.bf16.msra.mxu0 %v1178
  %1703 = vmatprep.subr.bf16.mxu0 %v1181
  %1704 = vmatpush1.bf16.msra.mxu0 %v1180
  %1705 = vmatprep.subr.bf16.mxu0 %v1183
  %1706 = vmatpush1.bf16.msra.mxu0 %v1182
  %1707 = vmatprep.subr.bf16.mxu0 %v1185
  %1708 = vmatpush1.bf16.msra.mxu0 %v1184
  %1709 = vmatprep.subr.bf16.mxu0 %v1187
  %1710 = vmatpush1.bf16.msra.mxu0 %v1186
  %1711 = vmatprep.subr.bf16.mxu0 %v1189
  %1712 = vmatpush1.bf16.msra.mxu0 %v1188
  %1713 = vmatprep.subr.bf16.mxu0 %v1191
  %1714 = vmatpush1.bf16.msra.mxu0 %v1190
  %1715 = vmatprep.subr.bf16.mxu0 %v1193
  %1716 = vmatpush1.bf16.msra.mxu0 %v1192
  %1717 = vmatprep.subr.bf16.mxu0 %v1195
  %1718 = vmatpush1.bf16.msra.mxu0 %v1194
  %1719 = vmatprep.subr.bf16.mxu0 %v1197
  %1720 = vmatpush1.bf16.msra.mxu0 %v1196
  %1721 = vmatprep.subr.bf16.mxu0 %v1199
  %1722 = vmatpush1.bf16.msra.mxu0 %v1198
  %1723 = vmatprep.subr.bf16.mxu0 %v1201
  %1724 = vmatpush1.bf16.msra.mxu0 %v1200
  %1725 = vmatprep.subr.bf16.mxu0 %v1203
  %1726 = vmatpush1.bf16.msra.mxu0 %v1202
  %1727 = vmatprep.subr.bf16.mxu0 %v1205
  %1728 = vmatpush1.bf16.msra.mxu0 %v1204
  %1729 = vmatprep.subr.bf16.mxu0 %v1207
  %1730 = vmatpush1.bf16.msra.mxu0 %v1206
  %1731 = vmatprep.subr.bf16.mxu0 %v1209
  %1732 = vmatpush1.bf16.msra.mxu0 %v1208
  %1733 = vmatprep.mubr.bf16.mxu0 %v349
  %1734 = vmatmul.mubr.bf16.gmra.mrb[0].mxu0 %v348
  %v1735 = vpop.f32.mrb[0].mxu0
  %v1736 = vadd.f32 %v1693, %v1735
  %v1737 = vpop.f32.mrb[0].mxu0
  %v1738 = vadd.f32 %v1695, %v1737
  %v1739 = vpop.f32.mrb[0].mxu0
  %v1740 = vadd.f32 %v1697, %v1739
  %v1741 = vpop.f32.mrb[0].mxu0
  %v1742 = vadd.f32 %v1699, %v1741
  %1743 = vdwg.mxu0
  %1744 = vmatprep.subr.bf16.mxu0 %v1211
  %1745 = vmatpush1.bf16.msra.mxu0 %v1210
  %1746 = vmatprep.subr.bf16.mxu0 %v1213
  %1747 = vmatpush1.bf16.msra.mxu0 %v1212
  %1748 = vmatprep.subr.bf16.mxu0 %v1215
  %1749 = vmatpush1.bf16.msra.mxu0 %v1214
  %1750 = vmatprep.subr.bf16.mxu0 %v1217
  %1751 = vmatpush1.bf16.msra.mxu0 %v1216
  %1752 = vmatprep.subr.bf16.mxu0 %v1219
  %1753 = vmatpush1.bf16.msra.mxu0 %v1218
  %1754 = vmatprep.subr.bf16.mxu0 %v1221
  %1755 = vmatpush1.bf16.msra.mxu0 %v1220
  %1756 = vmatprep.subr.bf16.mxu0 %v1223
  %1757 = vmatpush1.bf16.msra.mxu0 %v1222
  %1758 = vmatprep.subr.bf16.mxu0 %v1225
  %1759 = vmatpush1.bf16.msra.mxu0 %v1224
  %1760 = vmatprep.subr.bf16.mxu0 %v1227
  %1761 = vmatpush1.bf16.msra.mxu0 %v1226
  %1762 = vmatprep.subr.bf16.mxu0 %v1229
  %1763 = vmatpush1.bf16.msra.mxu0 %v1228
  %1764 = vmatprep.subr.bf16.mxu0 %v1231
  %1765 = vmatpush1.bf16.msra.mxu0 %v1230
  %1766 = vmatprep.subr.bf16.mxu0 %v1233
  %1767 = vmatpush1.bf16.msra.mxu0 %v1232
  %1768 = vmatprep.subr.bf16.mxu0 %v1235
  %1769 = vmatpush1.bf16.msra.mxu0 %v1234
  %1770 = vmatprep.subr.bf16.mxu0 %v1237
  %1771 = vmatpush1.bf16.msra.mxu0 %v1236
  %1772 = vmatprep.subr.bf16.mxu0 %v1239
  %1773 = vmatpush1.bf16.msra.mxu0 %v1238
  %1774 = vmatprep.subr.bf16.mxu0 %v1241
  %1775 = vmatpush1.bf16.msra.mxu0 %v1240
  %1776 = vmatprep.mubr.bf16.mxu0 %v351
  %1777 = vmatmul.mubr.bf16.gmra.mrb[0].mxu0 %v350
  %v1778 = vpop.f32.mrb[0].mxu0
  %v1779 = vadd.f32 %v1736, %v1778
  %v1780 = vpop.f32.mrb[0].mxu0
  %v1781 = vadd.f32 %v1738, %v1780
  %v1782 = vpop.f32.mrb[0].mxu0
  %v1783 = vadd.f32 %v1740, %v1782
  %v1784 = vpop.f32.mrb[0].mxu0
  %v1785 = vadd.f32 %v1742, %v1784
  %1786 = vdwg.mxu0
  %1787 = vmatprep.subr.bf16.mxu0 %v1243
  %1788 = vmatpush1.bf16.msra.mxu0 %v1242
  %1789 = vmatprep.subr.bf16.mxu0 %v1245
  %1790 = vmatpush1.bf16.msra.mxu0 %v1244
  %1791 = vmatprep.subr.bf16.mxu0 %v1247
  %1792 = vmatpush1.bf16.msra.mxu0 %v1246
  %1793 = vmatprep.subr.bf16.mxu0 %v1249
  %1794 = vmatpush1.bf16.msra.mxu0 %v1248
  %1795 = vmatprep.subr.bf16.mxu0 %v1251
  %1796 = vmatpush1.bf16.msra.mxu0 %v1250
  %1797 = vmatprep.subr.bf16.mxu0 %v1253
  %1798 = vmatpush1.bf16.msra.mxu0 %v1252
  %1799 = vmatprep.subr.bf16.mxu0 %v1255
  %1800 = vmatpush1.bf16.msra.mxu0 %v1254
  %1801 = vmatprep.subr.bf16.mxu0 %v1257
  %1802 = vmatpush1.bf16.msra.mxu0 %v1256
  %1803 = vmatprep.subr.bf16.mxu0 %v1259
  %1804 = vmatpush1.bf16.msra.mxu0 %v1258
  %1805 = vmatprep.subr.bf16.mxu0 %v1261
  %1806 = vmatpush1.bf16.msra.mxu0 %v1260
  %1807 = vmatprep.subr.bf16.mxu0 %v1263
  %1808 = vmatpush1.bf16.msra.mxu0 %v1262
  %1809 = vmatprep.subr.bf16.mxu0 %v1265
  %1810 = vmatpush1.bf16.msra.mxu0 %v1264
  %1811 = vmatprep.subr.bf16.mxu0 %v1267
  %1812 = vmatpush1.bf16.msra.mxu0 %v1266
  %1813 = vmatprep.subr.bf16.mxu0 %v1269
  %1814 = vmatpush1.bf16.msra.mxu0 %v1268
  %1815 = vmatprep.subr.bf16.mxu0 %v1271
  %1816 = vmatpush1.bf16.msra.mxu0 %v1270
  %1817 = vmatprep.subr.bf16.mxu0 %v1273
  %1818 = vmatpush1.bf16.msra.mxu0 %v1272
  %1819 = vmatprep.mubr.bf16.mxu0 %v353
  %1820 = vmatmul.mubr.bf16.gmra.mrb[0].mxu0 %v352
  %v1821 = vpop.f32.mrb[0].mxu0
  %v1822 = vadd.f32 %v1779, %v1821
  %v1823 = vpop.f32.mrb[0].mxu0
  %v1824 = vadd.f32 %v1781, %v1823
  %v1825 = vpop.f32.mrb[0].mxu0
  %v1826 = vadd.f32 %v1783, %v1825
  %v1827 = vpop.f32.mrb[0].mxu0
  %v1828 = vadd.f32 %v1785, %v1827
  %1829 = vdwg.mxu0
  %1830 = vmatprep.subr.bf16.mxu0 %v1275
  %1831 = vmatpush1.bf16.msra.mxu0 %v1274
  %1832 = vmatprep.subr.bf16.mxu0 %v1277
  %1833 = vmatpush1.bf16.msra.mxu0 %v1276
  %1834 = vmatprep.subr.bf16.mxu0 %v1279
  %1835 = vmatpush1.bf16.msra.mxu0 %v1278
  %1836 = vmatprep.subr.bf16.mxu0 %v1281
  %1837 = vmatpush1.bf16.msra.mxu0 %v1280
  %1838 = vmatprep.subr.bf16.mxu0 %v1283
  %1839 = vmatpush1.bf16.msra.mxu0 %v1282
  %1840 = vmatprep.subr.bf16.mxu0 %v1285
  %1841 = vmatpush1.bf16.msra.mxu0 %v1284
  %1842 = vmatprep.subr.bf16.mxu0 %v1287
  %1843 = vmatpush1.bf16.msra.mxu0 %v1286
  %1844 = vmatprep.subr.bf16.mxu0 %v1289
  %1845 = vmatpush1.bf16.msra.mxu0 %v1288
  %1846 = vmatprep.subr.bf16.mxu0 %v1291
  %1847 = vmatpush1.bf16.msra.mxu0 %v1290
  %1848 = vmatprep.subr.bf16.mxu0 %v1293
  %1849 = vmatpush1.bf16.msra.mxu0 %v1292
  %1850 = vmatprep.subr.bf16.mxu0 %v1295
  %1851 = vmatpush1.bf16.msra.mxu0 %v1294
  %1852 = vmatprep.subr.bf16.mxu0 %v1297
  %1853 = vmatpush1.bf16.msra.mxu0 %v1296
  %1854 = vmatprep.subr.bf16.mxu0 %v1299
  %1855 = vmatpush1.bf16.msra.mxu0 %v1298
  %1856 = vmatprep.subr.bf16.mxu0 %v1301
  %1857 = vmatpush1.bf16.msra.mxu0 %v1300
  %1858 = vmatprep.subr.bf16.mxu0 %v1303
  %1859 = vmatpush1.bf16.msra.mxu0 %v1302
  %1860 = vmatprep.subr.bf16.mxu0 %v1305
  %1861 = vmatpush1.bf16.msra.mxu0 %v1304
  %1862 = vmatprep.mubr.bf16.mxu0 %v355
  %1863 = vmatmul.mubr.bf16.gmra.mrb[0].mxu0 %v354
  %v1864 = vpop.f32.mrb[0].mxu0
  %v1865 = vadd.f32 %v1822, %v1864
  %v1866 = vpop.f32.mrb[0].mxu0
  %v1867 = vadd.f32 %v1824, %v1866
  %v1868 = vpop.f32.mrb[0].mxu0
  %v1869 = vadd.f32 %v1826, %v1868
  %v1870 = vpop.f32.mrb[0].mxu0
  %v1871 = vadd.f32 %v1828, %v1870
  %1872 = vdwg.mxu0
  %1873 = vmatprep.subr.bf16.mxu0 %v1307
  %1874 = vmatpush1.bf16.msra.mxu0 %v1306
  %1875 = vmatprep.subr.bf16.mxu0 %v1309
  %1876 = vmatpush1.bf16.msra.mxu0 %v1308
  %1877 = vmatprep.subr.bf16.mxu0 %v1311
  %1878 = vmatpush1.bf16.msra.mxu0 %v1310
  %1879 = vmatprep.subr.bf16.mxu0 %v1313
  %1880 = vmatpush1.bf16.msra.mxu0 %v1312
  %1881 = vmatprep.subr.bf16.mxu0 %v1315
  %1882 = vmatpush1.bf16.msra.mxu0 %v1314
  %1883 = vmatprep.subr.bf16.mxu0 %v1317
  %1884 = vmatpush1.bf16.msra.mxu0 %v1316
  %1885 = vmatprep.subr.bf16.mxu0 %v1319
  %1886 = vmatpush1.bf16.msra.mxu0 %v1318
  %1887 = vmatprep.subr.bf16.mxu0 %v1321
  %1888 = vmatpush1.bf16.msra.mxu0 %v1320
  %1889 = vmatprep.subr.bf16.mxu0 %v1323
  %1890 = vmatpush1.bf16.msra.mxu0 %v1322
  %1891 = vmatprep.subr.bf16.mxu0 %v1325
  %1892 = vmatpush1.bf16.msra.mxu0 %v1324
  %1893 = vmatprep.subr.bf16.mxu0 %v1327
  %1894 = vmatpush1.bf16.msra.mxu0 %v1326
  %1895 = vmatprep.subr.bf16.mxu0 %v1329
  %1896 = vmatpush1.bf16.msra.mxu0 %v1328
  %1897 = vmatprep.subr.bf16.mxu0 %v1331
  %1898 = vmatpush1.bf16.msra.mxu0 %v1330
  %1899 = vmatprep.subr.bf16.mxu0 %v1333
  %1900 = vmatpush1.bf16.msra.mxu0 %v1332
  %1901 = vmatprep.subr.bf16.mxu0 %v1335
  %1902 = vmatpush1.bf16.msra.mxu0 %v1334
  %1903 = vmatprep.subr.bf16.mxu0 %v1337
  %1904 = vmatpush1.bf16.msra.mxu0 %v1336
  %1905 = vmatprep.mubr.bf16.mxu0 %v357
  %1906 = vmatmul.mubr.bf16.gmra.mrb[0].mxu0 %v356
  %v1907 = vpop.f32.mrb[0].mxu0
  %v1908 = vadd.f32 %v1865, %v1907
  %v1909 = vpop.f32.mrb[0].mxu0
  %v1910 = vadd.f32 %v1867, %v1909
  %v1911 = vpop.f32.mrb[0].mxu0
  %v1912 = vadd.f32 %v1869, %v1911
  %v1913 = vpop.f32.mrb[0].mxu0
  %v1914 = vadd.f32 %v1871, %v1913
  %1915 = vdwg.mxu0
  %1916 = vmatprep.subr.bf16.mxu0 %v1339
  %1917 = vmatpush1.bf16.msra.mxu0 %v1338
  %1918 = vmatprep.subr.bf16.mxu0 %v1341
  %1919 = vmatpush1.bf16.msra.mxu0 %v1340
  %1920 = vmatprep.subr.bf16.mxu0 %v1343
  %1921 = vmatpush1.bf16.msra.mxu0 %v1342
  %1922 = vmatprep.subr.bf16.mxu0 %v1345
  %1923 = vmatpush1.bf16.msra.mxu0 %v1344
  %1924 = vmatprep.subr.bf16.mxu0 %v1347
  %1925 = vmatpush1.bf16.msra.mxu0 %v1346
  %1926 = vmatprep.subr.bf16.mxu0 %v1349
  %1927 = vmatpush1.bf16.msra.mxu0 %v1348
  %1928 = vmatprep.subr.bf16.mxu0 %v1351
  %1929 = vmatpush1.bf16.msra.mxu0 %v1350
  %1930 = vmatprep.subr.bf16.mxu0 %v1353
  %1931 = vmatpush1.bf16.msra.mxu0 %v1352
  %1932 = vmatprep.subr.bf16.mxu0 %v1355
  %1933 = vmatpush1.bf16.msra.mxu0 %v1354
  %1934 = vmatprep.subr.bf16.mxu0 %v1357
  %1935 = vmatpush1.bf16.msra.mxu0 %v1356
  %1936 = vmatprep.subr.bf16.mxu0 %v1359
  %1937 = vmatpush1.bf16.msra.mxu0 %v1358
  %1938 = vmatprep.subr.bf16.mxu0 %v1361
  %1939 = vmatpush1.bf16.msra.mxu0 %v1360
  %1940 = vmatprep.subr.bf16.mxu0 %v1363
  %1941 = vmatpush1.bf16.msra.mxu0 %v1362
  %1942 = vmatprep.subr.bf16.mxu0 %v1365
  %1943 = vmatpush1.bf16.msra.mxu0 %v1364
  %1944 = vmatprep.subr.bf16.mxu0 %v1367
  %1945 = vmatpush1.bf16.msra.mxu0 %v1366
  %1946 = vmatprep.subr.bf16.mxu0 %v1369
  %1947 = vmatpush1.bf16.msra.mxu0 %v1368
  %1948 = vmatprep.mubr.bf16.mxu0 %v359
  %1949 = vmatmul.mubr.bf16.gmra.mrb[0].mxu0 %v358
  %v1950 = vpop.f32.mrb[0].mxu0
  %v1951 = vadd.f32 %v1908, %v1950
  %v1952 = vpop.f32.mrb[0].mxu0
  %v1953 = vadd.f32 %v1910, %v1952
  %v1954 = vpop.f32.mrb[0].mxu0
  %v1955 = vadd.f32 %v1912, %v1954
  %v1956 = vpop.f32.mrb[0].mxu0
  %v1957 = vadd.f32 %v1914, %v1956
  %1958 = vdwg.mxu0
  %1959 = vmatprep.subr.bf16.mxu0 %v1371
  %1960 = vmatpush1.bf16.msra.mxu0 %v1370
  %1961 = vmatprep.subr.bf16.mxu0 %v1373
  %1962 = vmatpush1.bf16.msra.mxu0 %v1372
  %1963 = vmatprep.subr.bf16.mxu0 %v1375
  %1964 = vmatpush1.bf16.msra.mxu0 %v1374
  %1965 = vmatprep.subr.bf16.mxu0 %v1377
  %1966 = vmatpush1.bf16.msra.mxu0 %v1376
  %1967 = vmatprep.subr.bf16.mxu0 %v1379
  %1968 = vmatpush1.bf16.msra.mxu0 %v1378
  %1969 = vmatprep.subr.bf16.mxu0 %v1381
  %1970 = vmatpush1.bf16.msra.mxu0 %v1380
  %1971 = vmatprep.subr.bf16.mxu0 %v1383
  %1972 = vmatpush1.bf16.msra.mxu0 %v1382
  %1973 = vmatprep.subr.bf16.mxu0 %v1385
  %1974 = vmatpush1.bf16.msra.mxu0 %v1384
  %1975 = vmatprep.subr.bf16.mxu0 %v1387
  %1976 = vmatpush1.bf16.msra.mxu0 %v1386
  %1977 = vmatprep.subr.bf16.mxu0 %v1389
  %1978 = vmatpush1.bf16.msra.mxu0 %v1388
  %1979 = vmatprep.subr.bf16.mxu0 %v1391
  %1980 = vmatpush1.bf16.msra.mxu0 %v1390
  %1981 = vmatprep.subr.bf16.mxu0 %v1393
  %1982 = vmatpush1.bf16.msra.mxu0 %v1392
  %1983 = vmatprep.subr.bf16.mxu0 %v1395
  %1984 = vmatpush1.bf16.msra.mxu0 %v1394
  %1985 = vmatprep.subr.bf16.mxu0 %v1397
  %1986 = vmatpush1.bf16.msra.mxu0 %v1396
  %1987 = vmatprep.subr.bf16.mxu0 %v1399
  %1988 = vmatpush1.bf16.msra.mxu0 %v1398
  %1989 = vmatprep.subr.bf16.mxu0 %v1401
  %1990 = vmatpush1.bf16.msra.mxu0 %v1400
  %1991 = vmatprep.mubr.bf16.mxu0 %v361
  %1992 = vmatmul.mubr.bf16.gmra.mrb[0].mxu0 %v360
  %v1993 = vpop.f32.mrb[0].mxu0
  %v1994 = vadd.f32 %v1951, %v1993
  %v1995 = vpop.f32.mrb[0].mxu0
  %v1996 = vadd.f32 %v1953, %v1995
  %v1997 = vpop.f32.mrb[0].mxu0
  %v1998 = vadd.f32 %v1955, %v1997
  %v1999 = vpop.f32.mrb[0].mxu0
  %v2000 = vadd.f32 %v1957, %v1999
  %2001 = vdwg.mxu0
  %v2002 = vmax.f32 %v1994, 0.0
  %v2003 = vmax.f32 %v1996, 0.0
  %v2004 = vmax.f32 %v1998, 0.0
  %v2005 = vmax.f32 %v2000, 0.0
  %v2006 = vpack.c.bf16 %v2004, %v2002
  %v2007 = vpack.c.bf16 %v2005, %v2003
  %v2010 = vunpack.c.l.b16 %v2006
  %v2011 = vunpack.c.l.b16 %v2007
  %v2012 = vunpack.c.h.b16 %v2006
  %v2013 = vunpack.c.h.b16 %v2007
  %v2014 = vpack.c.b16 %v2011, %v2010
  %v2015 = vpack.c.b16 %v2013, %v2012
  %2018 = vst [vmem:[%s3] sm:$0xff] %v2014
  %2019 = vst [vmem:[%s3 + $0x8] sm:$0xff] %v2015
  // Predicated region
  $region14: #{forward.11} parent=0 // pred_check
    _
  $region15: #{forward.11} parent=0 // pred_check_branch
    %2021 = sbr.rel (0) target = $region17
  $region16: #{forward.11} parent=0 // pred_region
    _
  $region17: #{forward.11} parent=0 // pred_fallthru
    _
  // Predicated region
  $region18: #{forward.11} parent=0 // pred_check
    _
  $region19: #{forward.11} parent=0 // pred_check_branch
    %2023 = sbr.rel (0) target = $region21
  $region20: #{forward.11} parent=0 // pred_region
    _
  $region21: #{forward.11} parent=0 // pred_fallthru
    _

// kernel: forward.13
$region0: #{forward.13}
  #allocation0 [shape = 'u32[]', space=smem, size = 0x4, offset = 0x4, fixed_abs, tag = 'smem constant byte address 0x4 - core index']
  #allocation1 [shape = 'u32[144,128]{1,0:T(1,128)}', space=vmem, size = 0x12000, scoped, tag = 'internal scratch']
  %s0 = inlined_call_operand.vmem [shape: bf16[16,256], index: 0, kind: input, shape index: {}]
  %s1 = inlined_call_operand.vmem [shape: bf16[256,512], index: 1, kind: input, shape index: {}]
  %s2 = inlined_call_operand.vmem [shape: f32[1,512], index: 2, kind: input, shape index: {}]
  %s3 = inlined_call_operand.vmem [shape: bf16[512,256], index: 3, kind: input, shape index: {}]
  %s4 = inlined_call_operand.vmem [shape: f32[1,256], index: 4, kind: input, shape index: {}]
  %s5 = inlined_call_operand.vmem [shape: bf16[256,128], index: 5, kind: input, shape index: {}]
  %s6 = inlined_call_operand.vmem [shape: f32[1,128], index: 6, kind: input, shape index: {}]
  %s7 = inlined_call_operand.vmem [shape: f32[16,128], index: 7, kind: output, shape index: {}]
  %s8 = sld [smem:[#allocation0]]
  $region38: #{forward.13} parent=0
    _
  %s10 = ssub.s32 1, %s8
  %s11 = scalar_select 0, %s10, %s8
  // Predicated region
  $region2: #{forward.13} parent=0 // pred_check
    _
  $region3: #{forward.13} parent=0 // pred_check_branch
    %13 = sbr.rel (0) target = $region5
  $region4: #{forward.13} parent=0 // pred_region
    _
  $region5: #{forward.13} parent=0 // pred_fallthru
    _
  // Predicated region
  $region6: #{forward.13} parent=0 // pred_check
    _
  $region7: #{forward.13} parent=0 // pred_check_branch
    %15 = sbr.rel (0) target = $region9
  $region8: #{forward.13} parent=0 // pred_region
    _
  $region9: #{forward.13} parent=0 // pred_fallthru
    _
  // Predicated region
  $region10: #{forward.13} parent=0 // pred_check
    _
  $region11: #{forward.13} parent=0 // pred_check_branch
    %17 = sbr.rel (0) target = $region13
  $region12: #{forward.13} parent=0 // pred_region
    _
  $region13: #{forward.13} parent=0 // pred_fallthru
    _
  // Predicated region
  $region14: #{forward.13} parent=0 // pred_check
    _
  $region15: #{forward.13} parent=0 // pred_check_branch
    %19 = sbr.rel (0) target = $region17
  $region16: #{forward.13} parent=0 // pred_region
    _
  $region17: #{forward.13} parent=0 // pred_fallthru
    _
  // Predicated region
  $region18: #{forward.13} parent=0 // pred_check
    _
  $region19: #{forward.13} parent=0 // pred_check_branch
    %21 = sbr.rel (0) target = $region21
  $region20: #{forward.13} parent=0 // pred_region
    _
  $region21: #{forward.13} parent=0 // pred_fallthru
    _
  // Predicated region
  $region22: #{forward.13} parent=0 // pred_check
    _
  $region23: #{forward.13} parent=0 // pred_check_branch
    %23 = sbr.rel (0) target = $region25
  $region24: #{forward.13} parent=0 // pred_region
    _
  $region25: #{forward.13} parent=0 // pred_fallthru
    _
  // Predicated region
  $region26: #{forward.13} parent=0 // pred_check
    _
  $region27: #{forward.13} parent=0 // pred_check_branch
    %25 = sbr.rel (0) target = $region29
  $region28: #{forward.13} parent=0 // pred_region
    _
  $region29: #{forward.13} parent=0 // pred_fallthru
    _
  %v27 = vld [vmem:[%s0] sm:$0xff]
  %v28 = vld [vmem:[%s0 + $0x8] sm:$0xff]
  %v29 = vld [vmem:[%s1] sm:$0xff]
  %v30 = vld [vmem:[%s1 + $0x8] sm:$0xff]
  %v31 = vld [vmem:[%s1 + $0x10] sm:$0xff]
  %v32 = vld [vmem:[%s1 + $0x18] sm:$0xff]
  %v33 = vld [vmem:[%s1 + $0x20] sm:$0xff]
  %v34 = vld [vmem:[%s1 + $0x28] sm:$0xff]
  %v35 = vld [vmem:[%s1 + $0x30] sm:$0xff]
  %v36 = vld [vmem:[%s1 + $0x38] sm:$0xff]
  %v37 = vld [vmem:[%s1 + $0x40] sm:$0xff]
  %v38 = vld [vmem:[%s1 + $0x48] sm:$0xff]
  %v39 = vld [vmem:[%s1 + $0x50] sm:$0xff]
  %v40 = vld [vmem:[%s1 + $0x58] sm:$0xff]
  %v41 = vld [vmem:[%s1 + $0x60] sm:$0xff]
  %v42 = vld [vmem:[%s1 + $0x68] sm:$0xff]
  %v43 = vld [vmem:[%s1 + $0x70] sm:$0xff]
  %v44 = vld [vmem:[%s1 + $0x78] sm:$0xff]
  %v45 = vld [vmem:[%s1 + $0x80] sm:$0xff]
  %v46 = vld [vmem:[%s1 + $0x88] sm:$0xff]
  %v47 = vld [vmem:[%s1 + $0x90] sm:$0xff]
  %v48 = vld [vmem:[%s1 + $0x98] sm:$0xff]
  %v49 = vld [vmem:[%s1 + $0xa0] sm:$0xff]
  %v50 = vld [vmem:[%s1 + $0xa8] sm:$0xff]
  %v51 = vld [vmem:[%s1 + $0xb0] sm:$0xff]
  %v52 = vld [vmem:[%s1 + $0xb8] sm:$0xff]
  %v53 = vld [vmem:[%s1 + $0xc0] sm:$0xff]
  %v54 = vld [vmem:[%s1 + $0xc8] sm:$0xff]
  %v55 = vld [vmem:[%s1 + $0xd0] sm:$0xff]
  %v56 = vld [vmem:[%s1 + $0xd8] sm:$0xff]
  %v57 = vld [vmem:[%s1 + $0xe0] sm:$0xff]
  %v58 = vld [vmem:[%s1 + $0xe8] sm:$0xff]
  %v59 = vld [vmem:[%s1 + $0xf0] sm:$0xff]
  %v60 = vld [vmem:[%s1 + $0xf8] sm:$0xff]
  %v61 = vld [vmem:[%s1 + $0x100] sm:$0xff]
  %v62 = vld [vmem:[%s1 + $0x108] sm:$0xff]
  %v63 = vld [vmem:[%s1 + $0x110] sm:$0xff]
  %v64 = vld [vmem:[%s1 + $0x118] sm:$0xff]
  %v65 = vld [vmem:[%s1 + $0x120] sm:$0xff]
  %v66 = vld [vmem:[%s1 + $0x128] sm:$0xff]
  %v67 = vld [vmem:[%s1 + $0x130] sm:$0xff]
  %v68 = vld [vmem:[%s1 + $0x138] sm:$0xff]
  %v69 = vld [vmem:[%s1 + $0x140] sm:$0xff]
  %v70 = vld [vmem:[%s1 + $0x148] sm:$0xff]
  %v71 = vld [vmem:[%s1 + $0x150] sm:$0xff]
  %v72 = vld [vmem:[%s1 + $0x158] sm:$0xff]
  %v73 = vld [vmem:[%s1 + $0x160] sm:$0xff]
  %v74 = vld [vmem:[%s1 + $0x168] sm:$0xff]
  %v75 = vld [vmem:[%s1 + $0x170] sm:$0xff]
  %v76 = vld [vmem:[%s1 + $0x178] sm:$0xff]
  %v77 = vld [vmem:[%s1 + $0x180] sm:$0xff]
  %v78 = vld [vmem:[%s1 + $0x188] sm:$0xff]
  %v79 = vld [vmem:[%s1 + $0x190] sm:$0xff]
  %v80 = vld [vmem:[%s1 + $0x198] sm:$0xff]
  %v81 = vld [vmem:[%s1 + $0x1a0] sm:$0xff]
  %v82 = vld [vmem:[%s1 + $0x1a8] sm:$0xff]
  %v83 = vld [vmem:[%s1 + $0x1b0] sm:$0xff]
  %v84 = vld [vmem:[%s1 + $0x1b8] sm:$0xff]
  %v85 = vld [vmem:[%s1 + $0x1c0] sm:$0xff]
  %v86 = vld [vmem:[%s1 + $0x1c8] sm:$0xff]
  %v87 = vld [vmem:[%s1 + $0x1d0] sm:$0xff]
  %v88 = vld [vmem:[%s1 + $0x1d8] sm:$0xff]
  %v89 = vld [vmem:[%s1 + $0x1e0] sm:$0xff]
  %v90 = vld [vmem:[%s1 + $0x1e8] sm:$0xff]
  %v91 = vld [vmem:[%s1 + $0x1f0] sm:$0xff]
  %v92 = vld [vmem:[%s1 + $0x1f8] sm:$0xff]
  %v93 = vld [vmem:[%s2] sm:$0xf]
  %v95 = vlaneseq
  %v96 = vshrl.u32 %v95, 7
  %v97 = vsub.s32 0, %v96
  %v98 = vrot.slane %v93, %v97
  %v99 = vlaneseq
  %v100 = vshrl.u32 %v99, 7
  %v101 = vsub.s32 1, %v100
  %v102 = vrot.slane %v93, %v101
  %v103 = vlaneseq
  %v104 = vshrl.u32 %v103, 7
  %v105 = vsub.s32 2, %v104
  %v106 = vrot.slane %v93, %v105
  %v107 = vlaneseq
  %v108 = vshrl.u32 %v107, 7
  %v109 = vsub.s32 3, %v108
  %v110 = vrot.slane %v93, %v109
  %v117 = vunpack.c.l.b16 %v27
  %v118 = vunpack.c.h.b16 %v27
  %v119 = vunpack.c.l.b16 %v28
  %v120 = vunpack.c.h.b16 %v28
  %v121 = vpack.c.b16 %v119, %v117
  %v122 = vpack.c.b16 %v120, %v118
  %v189 = vunpack.c.l.b16 %v29
  %v190 = vunpack.c.h.b16 %v29
  %v191 = vunpack.c.l.b16 %v30
  %v192 = vunpack.c.h.b16 %v30
  %v193 = vunpack.c.l.b16 %v31
  %v194 = vunpack.c.h.b16 %v31
  %v195 = vunpack.c.l.b16 %v32
  %v196 = vunpack.c.h.b16 %v32
  %v197 = vunpack.c.l.b16 %v33
  %v198 = vunpack.c.h.b16 %v33
  %v199 = vunpack.c.l.b16 %v34
  %v200 = vunpack.c.h.b16 %v34
  %v201 = vunpack.c.l.b16 %v35
  %v202 = vunpack.c.h.b16 %v35
  %v203 = vunpack.c.l.b16 %v36
  %v204 = vunpack.c.h.b16 %v36
  %v205 = vunpack.c.l.b16 %v37
  %v206 = vunpack.c.h.b16 %v37
  %v207 = vunpack.c.l.b16 %v38
  %v208 = vunpack.c.h.b16 %v38
  %v209 = vunpack.c.l.b16 %v39
  %v210 = vunpack.c.h.b16 %v39
  %v211 = vunpack.c.l.b16 %v40
  %v212 = vunpack.c.h.b16 %v40
  %v213 = vunpack.c.l.b16 %v41
  %v214 = vunpack.c.h.b16 %v41
  %v215 = vunpack.c.l.b16 %v42
  %v216 = vunpack.c.h.b16 %v42
  %v217 = vunpack.c.l.b16 %v43
  %v218 = vunpack.c.h.b16 %v43
  %v219 = vunpack.c.l.b16 %v44
  %v220 = vunpack.c.h.b16 %v44
  %v221 = vunpack.c.l.b16 %v45
  %v222 = vunpack.c.h.b16 %v45
  %v223 = vunpack.c.l.b16 %v46
  %v224 = vunpack.c.h.b16 %v46
  %v225 = vunpack.c.l.b16 %v47
  %v226 = vunpack.c.h.b16 %v47
  %v227 = vunpack.c.l.b16 %v48
  %v228 = vunpack.c.h.b16 %v48
  %v229 = vunpack.c.l.b16 %v49
  %v230 = vunpack.c.h.b16 %v49
  %v231 = vunpack.c.l.b16 %v50
  %v232 = vunpack.c.h.b16 %v50
  %v233 = vunpack.c.l.b16 %v51
  %v234 = vunpack.c.h.b16 %v51
  %v235 = vunpack.c.l.b16 %v52
  %v236 = vunpack.c.h.b16 %v52
  %v237 = vunpack.c.l.b16 %v53
  %v238 = vunpack.c.h.b16 %v53
  %v239 = vunpack.c.l.b16 %v54
  %v240 = vunpack.c.h.b16 %v54
  %v241 = vunpack.c.l.b16 %v55
  %v242 = vunpack.c.h.b16 %v55
  %v243 = vunpack.c.l.b16 %v56
  %v244 = vunpack.c.h.b16 %v56
  %v245 = vunpack.c.l.b16 %v57
  %v246 = vunpack.c.h.b16 %v57
  %v247 = vunpack.c.l.b16 %v58
  %v248 = vunpack.c.h.b16 %v58
  %v249 = vunpack.c.l.b16 %v59
  %v250 = vunpack.c.h.b16 %v59
  %v251 = vunpack.c.l.b16 %v60
  %v252 = vunpack.c.h.b16 %v60
  %v253 = vunpack.c.l.b16 %v61
  %v254 = vunpack.c.h.b16 %v61
  %v255 = vunpack.c.l.b16 %v62
  %v256 = vunpack.c.h.b16 %v62
  %v257 = vunpack.c.l.b16 %v63
  %v258 = vunpack.c.h.b16 %v63
  %v259 = vunpack.c.l.b16 %v64
  %v260 = vunpack.c.h.b16 %v64
  %v261 = vunpack.c.l.b16 %v65
  %v262 = vunpack.c.h.b16 %v65
  %v263 = vunpack.c.l.b16 %v66
  %v264 = vunpack.c.h.b16 %v66
  %v265 = vunpack.c.l.b16 %v67
  %v266 = vunpack.c.h.b16 %v67
  %v267 = vunpack.c.l.b16 %v68
  %v268 = vunpack.c.h.b16 %v68
  %v269 = vunpack.c.l.b16 %v69
  %v270 = vunpack.c.h.b16 %v69
  %v271 = vunpack.c.l.b16 %v70
  %v272 = vunpack.c.h.b16 %v70
  %v273 = vunpack.c.l.b16 %v71
  %v274 = vunpack.c.h.b16 %v71
  %v275 = vunpack.c.l.b16 %v72
  %v276 = vunpack.c.h.b16 %v72
  %v277 = vunpack.c.l.b16 %v73
  %v278 = vunpack.c.h.b16 %v73
  %v279 = vunpack.c.l.b16 %v74
  %v280 = vunpack.c.h.b16 %v74
  %v281 = vunpack.c.l.b16 %v75
  %v282 = vunpack.c.h.b16 %v75
  %v283 = vunpack.c.l.b16 %v76
  %v284 = vunpack.c.h.b16 %v76
  %v285 = vunpack.c.l.b16 %v77
  %v286 = vunpack.c.h.b16 %v77
  %v287 = vunpack.c.l.b16 %v78
  %v288 = vunpack.c.h.b16 %v78
  %v289 = vunpack.c.l.b16 %v79
  %v290 = vunpack.c.h.b16 %v79
  %v291 = vunpack.c.l.b16 %v80
  %v292 = vunpack.c.h.b16 %v80
  %v293 = vunpack.c.l.b16 %v81
  %v294 = vunpack.c.h.b16 %v81
  %v295 = vunpack.c.l.b16 %v82
  %v296 = vunpack.c.h.b16 %v82
  %v297 = vunpack.c.l.b16 %v83
  %v298 = vunpack.c.h.b16 %v83
  %v299 = vunpack.c.l.b16 %v84
  %v300 = vunpack.c.h.b16 %v84
  %v301 = vunpack.c.l.b16 %v85
  %v302 = vunpack.c.h.b16 %v85
  %v303 = vunpack.c.l.b16 %v86
  %v304 = vunpack.c.h.b16 %v86
  %v305 = vunpack.c.l.b16 %v87
  %v306 = vunpack.c.h.b16 %v87
  %v307 = vunpack.c.l.b16 %v88
  %v308 = vunpack.c.h.b16 %v88
  %v309 = vunpack.c.l.b16 %v89
  %v310 = vunpack.c.h.b16 %v89
  %v311 = vunpack.c.l.b16 %v90
  %v312 = vunpack.c.h.b16 %v90
  %v313 = vunpack.c.l.b16 %v91
  %v314 = vunpack.c.h.b16 %v91
  %v315 = vunpack.c.l.b16 %v92
  %v316 = vunpack.c.h.b16 %v92
  %v317 = vpack.c.b16 %v193, %v189
  %v318 = vpack.c.b16 %v194, %v190
  %v319 = vpack.c.b16 %v195, %v191
  %v320 = vpack.c.b16 %v196, %v192
  %v321 = vpack.c.b16 %v201, %v197
  %v322 = vpack.c.b16 %v202, %v198
  %v323 = vpack.c.b16 %v203, %v199
  %v324 = vpack.c.b16 %v204, %v200
  %v325 = vpack.c.b16 %v209, %v205
  %v326 = vpack.c.b16 %v210, %v206
  %v327 = vpack.c.b16 %v211, %v207
  %v328 = vpack.c.b16 %v212, %v208
  %v329 = vpack.c.b16 %v217, %v213
  %v330 = vpack.c.b16 %v218, %v214
  %v331 = vpack.c.b16 %v219, %v215
  %v332 = vpack.c.b16 %v220, %v216
  %v333 = vpack.c.b16 %v225, %v221
  %v334 = vpack.c.b16 %v226, %v222
  %v335 = vpack.c.b16 %v227, %v223
  %v336 = vpack.c.b16 %v228, %v224
  %v337 = vpack.c.b16 %v233, %v229
  %v338 = vpack.c.b16 %v234, %v230
  %v339 = vpack.c.b16 %v235, %v231
  %v340 = vpack.c.b16 %v236, %v232
  %v341 = vpack.c.b16 %v241, %v237
  %v342 = vpack.c.b16 %v242, %v238
  %v343 = vpack.c.b16 %v243, %v239
  %v344 = vpack.c.b16 %v244, %v240
  %v345 = vpack.c.b16 %v249, %v245
  %v346 = vpack.c.b16 %v250, %v246
  %v347 = vpack.c.b16 %v251, %v247
  %v348 = vpack.c.b16 %v252, %v248
  %v349 = vpack.c.b16 %v257, %v253
  %v350 = vpack.c.b16 %v258, %v254
  %v351 = vpack.c.b16 %v259, %v255
  %v352 = vpack.c.b16 %v260, %v256
  %v353 = vpack.c.b16 %v265, %v261
  %v354 = vpack.c.b16 %v266, %v262
  %v355 = vpack.c.b16 %v267, %v263
  %v356 = vpack.c.b16 %v268, %v264
  %v357 = vpack.c.b16 %v273, %v269
  %v358 = vpack.c.b16 %v274, %v270
  %v359 = vpack.c.b16 %v275, %v271
  %v360 = vpack.c.b16 %v276, %v272
  %v361 = vpack.c.b16 %v281, %v277
  %v362 = vpack.c.b16 %v282, %v278
  %v363 = vpack.c.b16 %v283, %v279
  %v364 = vpack.c.b16 %v284, %v280
  %v365 = vpack.c.b16 %v289, %v285
  %v366 = vpack.c.b16 %v290, %v286
  %v367 = vpack.c.b16 %v291, %v287
  %v368 = vpack.c.b16 %v292, %v288
  %v369 = vpack.c.b16 %v297, %v293
  %v370 = vpack.c.b16 %v298, %v294
  %v371 = vpack.c.b16 %v299, %v295
  %v372 = vpack.c.b16 %v300, %v296
  %v373 = vpack.c.b16 %v305, %v301
  %v374 = vpack.c.b16 %v306, %v302
  %v375 = vpack.c.b16 %v307, %v303
  %v376 = vpack.c.b16 %v308, %v304
  %v377 = vpack.c.b16 %v313, %v309
  %v378 = vpack.c.b16 %v314, %v310
  %v379 = vpack.c.b16 %v315, %v311
  %v380 = vpack.c.b16 %v316, %v312
  %445 = vmatprep.subr.bf16.mxu0 %v318
  %446 = vmatpush1.bf16.msra.mxu0 %v317
  %447 = vmatprep.subr.bf16.mxu0 %v322
  %448 = vmatpush1.bf16.msra.mxu0 %v321
  %449 = vmatprep.subr.bf16.mxu0 %v326
  %450 = vmatpush1.bf16.msra.mxu0 %v325
  %451 = vmatprep.subr.bf16.mxu0 %v330
  %452 = vmatpush1.bf16.msra.mxu0 %v329
  %453 = vmatprep.subr.bf16.mxu0 %v334
  %454 = vmatpush1.bf16.msra.mxu0 %v333
  %455 = vmatprep.subr.bf16.mxu0 %v338
  %456 = vmatpush1.bf16.msra.mxu0 %v337
  %457 = vmatprep.subr.bf16.mxu0 %v342
  %458 = vmatpush1.bf16.msra.mxu0 %v341
  %459 = vmatprep.subr.bf16.mxu0 %v346
  %460 = vmatpush1.bf16.msra.mxu0 %v345
  %461 = vmatprep.subr.bf16.mxu0 %v350
  %462 = vmatpush1.bf16.msra.mxu0 %v349
  %463 = vmatprep.subr.bf16.mxu0 %v354
  %464 = vmatpush1.bf16.msra.mxu0 %v353
  %465 = vmatprep.subr.bf16.mxu0 %v358
  %466 = vmatpush1.bf16.msra.mxu0 %v357
  %467 = vmatprep.subr.bf16.mxu0 %v362
  %468 = vmatpush1.bf16.msra.mxu0 %v361
  %469 = vmatprep.subr.bf16.mxu0 %v366
  %470 = vmatpush1.bf16.msra.mxu0 %v365
  %471 = vmatprep.subr.bf16.mxu0 %v370
  %472 = vmatpush1.bf16.msra.mxu0 %v369
  %473 = vmatprep.subr.bf16.mxu0 %v374
  %474 = vmatpush1.bf16.msra.mxu0 %v373
  %475 = vmatprep.subr.bf16.mxu0 %v378
  %476 = vmatpush1.bf16.msra.mxu0 %v377
  %477 = vmatprep.mubr.bf16.mxu0 %v122
  %478 = vmatmul.mubr.bf16.gmra.mrb[0].mxu0 %v121
  %v479 = vpop.f32.mrb[0].mxu0
  %v480 = vadd.f32 %v98, %v479
  %v481 = vpop.f32.mrb[0].mxu0
  %v482 = vadd.f32 %v102, %v481
  %v483 = vpop.f32.mrb[0].mxu0
  %v484 = vadd.f32 %v98, %v483
  %v485 = vpop.f32.mrb[0].mxu0
  %v486 = vadd.f32 %v102, %v485
  %487 = vdwg.mxu0
  %488 = vmatprep.subr.bf16.mxu0 %v320
  %489 = vmatpush1.bf16.msra.mxu0 %v319
  %490 = vmatprep.subr.bf16.mxu0 %v324
  %491 = vmatpush1.bf16.msra.mxu0 %v323
  %492 = vmatprep.subr.bf16.mxu0 %v328
  %493 = vmatpush1.bf16.msra.mxu0 %v327
  %494 = vmatprep.subr.bf16.mxu0 %v332
  %495 = vmatpush1.bf16.msra.mxu0 %v331
  %496 = vmatprep.subr.bf16.mxu0 %v336
  %497 = vmatpush1.bf16.msra.mxu0 %v335
  %498 = vmatprep.subr.bf16.mxu0 %v340
  %499 = vmatpush1.bf16.msra.mxu0 %v339
  %500 = vmatprep.subr.bf16.mxu0 %v344
  %501 = vmatpush1.bf16.msra.mxu0 %v343
  %502 = vmatprep.subr.bf16.mxu0 %v348
  %503 = vmatpush1.bf16.msra.mxu0 %v347
  %504 = vmatprep.subr.bf16.mxu0 %v352
  %505 = vmatpush1.bf16.msra.mxu0 %v351
  %506 = vmatprep.subr.bf16.mxu0 %v356
  %507 = vmatpush1.bf16.msra.mxu0 %v355
  %508 = vmatprep.subr.bf16.mxu0 %v360
  %509 = vmatpush1.bf16.msra.mxu0 %v359
  %510 = vmatprep.subr.bf16.mxu0 %v364
  %511 = vmatpush1.bf16.msra.mxu0 %v363
  %512 = vmatprep.subr.bf16.mxu0 %v368
  %513 = vmatpush1.bf16.msra.mxu0 %v367
  %514 = vmatprep.subr.bf16.mxu0 %v372
  %515 = vmatpush1.bf16.msra.mxu0 %v371
  %516 = vmatprep.subr.bf16.mxu0 %v376
  %517 = vmatpush1.bf16.msra.mxu0 %v375
  %518 = vmatprep.subr.bf16.mxu0 %v380
  %519 = vmatpush1.bf16.msra.mxu0 %v379
  %520 = vmatprep.mubr.bf16.mxu0 %v122
  %521 = vmatmul.mubr.bf16.gmra.mrb[0].mxu0 %v121
  %v522 = vpop.f32.mrb[0].mxu0
  %v523 = vadd.f32 %v106, %v522
  %v524 = vpop.f32.mrb[0].mxu0
  %v525 = vadd.f32 %v110, %v524
  %v526 = vpop.f32.mrb[0].mxu0
  %v527 = vadd.f32 %v106, %v526
  %v528 = vpop.f32.mrb[0].mxu0
  %v529 = vadd.f32 %v110, %v528
  %530 = vdwg.mxu0
  %vm531 = vcmp.ge.f32.partialorder %v480, 0.0
  %vm532 = vcmp.ge.f32.partialorder %v482, 0.0
  %vm533 = vcmp.ge.f32.partialorder %v523, 0.0
  %vm534 = vcmp.ge.f32.partialorder %v525, 0.0
  %vm535 = vcmp.ge.f32.partialorder %v484, 0.0
  %vm536 = vcmp.ge.f32.partialorder %v486, 0.0
  %vm537 = vcmp.ge.f32.partialorder %v527, 0.0
  %vm538 = vcmp.ge.f32.partialorder %v529, 0.0
  %v539 = vmul.f32 %v480, 0.01
  %v540 = vmul.f32 %v482, 0.01
  %v541 = vmul.f32 %v523, 0.01
  %v542 = vmul.f32 %v525, 0.01
  %v543 = vmul.f32 %v484, 0.01
  %v544 = vmul.f32 %v486, 0.01
  %v545 = vmul.f32 %v527, 0.01
  %v546 = vmul.f32 %v529, 0.01
  %v547 = vsel %vm531, %v480, %v539
  %v548 = vsel %vm532, %v482, %v540
  %v549 = vsel %vm533, %v523, %v541
  %v550 = vsel %vm534, %v525, %v542
  %v551 = vsel %vm535, %v484, %v543
  %v552 = vsel %vm536, %v486, %v544
  %v553 = vsel %vm537, %v527, %v545
  %v554 = vsel %vm538, %v529, %v546
  %v555 = vpack.c.bf16 %v551, %v547
  %v556 = vpack.c.bf16 %v552, %v548
  %v557 = vpack.c.bf16 %v553, %v549
  %v558 = vpack.c.bf16 %v554, %v550
  %v559 = vld [vmem:[%s3] sm:$0xff]
  %v560 = vld [vmem:[%s3 + $0x8] sm:$0xff]
  %v561 = vld [vmem:[%s3 + $0x10] sm:$0xff]
  %v562 = vld [vmem:[%s3 + $0x18] sm:$0xff]
  %v563 = vld [vmem:[%s3 + $0x20] sm:$0xff]
  %v564 = vld [vmem:[%s3 + $0x28] sm:$0xff]
  %v565 = vld [vmem:[%s3 + $0x30] sm:$0xff]
  %v566 = vld [vmem:[%s3 + $0x38] sm:$0xff]
  %v567 = vld [vmem:[%s3 + $0x40] sm:$0xff]
  %v568 = vld [vmem:[%s3 + $0x48] sm:$0xff]
  %v569 = vld [vmem:[%s3 + $0x50] sm:$0xff]
  %v570 = vld [vmem:[%s3 + $0x58] sm:$0xff]
  %v571 = vld [vmem:[%s3 + $0x60] sm:$0xff]
  %v572 = vld [vmem:[%s3 + $0x68] sm:$0xff]
  %v573 = vld [vmem:[%s3 + $0x70] sm:$0xff]
  %v574 = vld [vmem:[%s3 + $0x78] sm:$0xff]
  %v575 = vld [vmem:[%s3 + $0x80] sm:$0xff]
  %v576 = vld [vmem:[%s3 + $0x88] sm:$0xff]
  %v577 = vld [vmem:[%s3 + $0x90] sm:$0xff]
  %v578 = vld [vmem:[%s3 + $0x98] sm:$0xff]
  %v579 = vld [vmem:[%s3 + $0xa0] sm:$0xff]
  %v580 = vld [vmem:[%s3 + $0xa8] sm:$0xff]
  %v581 = vld [vmem:[%s3 + $0xb0] sm:$0xff]
  %v582 = vld [vmem:[%s3 + $0xb8] sm:$0xff]
  %v583 = vld [vmem:[%s3 + $0xc0] sm:$0xff]
  %v584 = vld [vmem:[%s3 + $0xc8] sm:$0xff]
  %v585 = vld [vmem:[%s3 + $0xd0] sm:$0xff]
  %v586 = vld [vmem:[%s3 + $0xd8] sm:$0xff]
  %v587 = vld [vmem:[%s3 + $0xe0] sm:$0xff]
  %v588 = vld [vmem:[%s3 + $0xe8] sm:$0xff]
  %v589 = vld [vmem:[%s3 + $0xf0] sm:$0xff]
  %v590 = vld [vmem:[%s3 + $0xf8] sm:$0xff]
  %v591 = vld [vmem:[%s3 + $0x100] sm:$0xff]
  %v592 = vld [vmem:[%s3 + $0x108] sm:$0xff]
  %v593 = vld [vmem:[%s3 + $0x110] sm:$0xff]
  %v594 = vld [vmem:[%s3 + $0x118] sm:$0xff]
  %v595 = vld [vmem:[%s3 + $0x120] sm:$0xff]
  %v596 = vld [vmem:[%s3 + $0x128] sm:$0xff]
  %v597 = vld [vmem:[%s3 + $0x130] sm:$0xff]
  %v598 = vld [vmem:[%s3 + $0x138] sm:$0xff]
  %v599 = vld [vmem:[%s3 + $0x140] sm:$0xff]
  %v600 = vld [vmem:[%s3 + $0x148] sm:$0xff]
  %v601 = vld [vmem:[%s3 + $0x150] sm:$0xff]
  %v602 = vld [vmem:[%s3 + $0x158] sm:$0xff]
  %v603 = vld [vmem:[%s3 + $0x160] sm:$0xff]
  %v604 = vld [vmem:[%s3 + $0x168] sm:$0xff]
  %v605 = vld [vmem:[%s3 + $0x170] sm:$0xff]
  %v606 = vld [vmem:[%s3 + $0x178] sm:$0xff]
  %v607 = vld [vmem:[%s3 + $0x180] sm:$0xff]
  %v608 = vld [vmem:[%s3 + $0x188] sm:$0xff]
  %v609 = vld [vmem:[%s3 + $0x190] sm:$0xff]
  %v610 = vld [vmem:[%s3 + $0x198] sm:$0xff]
  %v611 = vld [vmem:[%s3 + $0x1a0] sm:$0xff]
  %v612 = vld [vmem:[%s3 + $0x1a8] sm:$0xff]
  %v613 = vld [vmem:[%s3 + $0x1b0] sm:$0xff]
  %v614 = vld [vmem:[%s3 + $0x1b8] sm:$0xff]
  %v615 = vld [vmem:[%s3 + $0x1c0] sm:$0xff]
  %v616 = vld [vmem:[%s3 + $0x1c8] sm:$0xff]
  %v617 = vld [vmem:[%s3 + $0x1d0] sm:$0xff]
  %v618 = vld [vmem:[%s3 + $0x1d8] sm:$0xff]
  %v619 = vld [vmem:[%s3 + $0x1e0] sm:$0xff]
  %v620 = vld [vmem:[%s3 + $0x1e8] sm:$0xff]
  %v621 = vld [vmem:[%s3 + $0x1f0] sm:$0xff]
  %v622 = vld [vmem:[%s3 + $0x1f8] sm:$0xff]
  %v623 = vld [vmem:[%s4] sm:$0x3]
  %v625 = vlaneseq
  %v626 = vshrl.u32 %v625, 7
  %v627 = vsub.s32 0, %v626
  %v628 = vrot.slane %v623, %v627
  %v629 = vlaneseq
  %v630 = vshrl.u32 %v629, 7
  %v631 = vsub.s32 1, %v630
  %v632 = vrot.slane %v623, %v631
  %v699 = vunpack.c.l.b16 %v559
  %v700 = vunpack.c.h.b16 %v559
  %v701 = vunpack.c.l.b16 %v560
  %v702 = vunpack.c.h.b16 %v560
  %v703 = vunpack.c.l.b16 %v561
  %v704 = vunpack.c.h.b16 %v561
  %v705 = vunpack.c.l.b16 %v562
  %v706 = vunpack.c.h.b16 %v562
  %v707 = vunpack.c.l.b16 %v563
  %v708 = vunpack.c.h.b16 %v563
  %v709 = vunpack.c.l.b16 %v564
  %v710 = vunpack.c.h.b16 %v564
  %v711 = vunpack.c.l.b16 %v565
  %v712 = vunpack.c.h.b16 %v565
  %v713 = vunpack.c.l.b16 %v566
  %v714 = vunpack.c.h.b16 %v566
  %v715 = vunpack.c.l.b16 %v567
  %v716 = vunpack.c.h.b16 %v567
  %v717 = vunpack.c.l.b16 %v568
  %v718 = vunpack.c.h.b16 %v568
  %v719 = vunpack.c.l.b16 %v569
  %v720 = vunpack.c.h.b16 %v569
  %v721 = vunpack.c.l.b16 %v570
  %v722 = vunpack.c.h.b16 %v570
  %v723 = vunpack.c.l.b16 %v571
  %v724 = vunpack.c.h.b16 %v571
  %v725 = vunpack.c.l.b16 %v572
  %v726 = vunpack.c.h.b16 %v572
  %v727 = vunpack.c.l.b16 %v573
  %v728 = vunpack.c.h.b16 %v573
  %v729 = vunpack.c.l.b16 %v574
  %v730 = vunpack.c.h.b16 %v574
  %v731 = vunpack.c.l.b16 %v575
  %v732 = vunpack.c.h.b16 %v575
  %v733 = vunpack.c.l.b16 %v576
  %v734 = vunpack.c.h.b16 %v576
  %v735 = vunpack.c.l.b16 %v577
  %v736 = vunpack.c.h.b16 %v577
  %v737 = vunpack.c.l.b16 %v578
  %v738 = vunpack.c.h.b16 %v578
  %v739 = vunpack.c.l.b16 %v579
  %v740 = vunpack.c.h.b16 %v579
  %v741 = vunpack.c.l.b16 %v580
  %v742 = vunpack.c.h.b16 %v580
  %v743 = vunpack.c.l.b16 %v581
  %v744 = vunpack.c.h.b16 %v581
  %v745 = vunpack.c.l.b16 %v582
  %v746 = vunpack.c.h.b16 %v582
  %v747 = vunpack.c.l.b16 %v583
  %v748 = vunpack.c.h.b16 %v583
  %v749 = vunpack.c.l.b16 %v584
  %v750 = vunpack.c.h.b16 %v584
  %v751 = vunpack.c.l.b16 %v585
  %v752 = vunpack.c.h.b16 %v585
  %v753 = vunpack.c.l.b16 %v586
  %v754 = vunpack.c.h.b16 %v586
  %v755 = vunpack.c.l.b16 %v587
  %v756 = vunpack.c.h.b16 %v587
  %v757 = vunpack.c.l.b16 %v588
  %v758 = vunpack.c.h.b16 %v588
  %v759 = vunpack.c.l.b16 %v589
  %v760 = vunpack.c.h.b16 %v589
  %v761 = vunpack.c.l.b16 %v590
  %v762 = vunpack.c.h.b16 %v590
  %v763 = vunpack.c.l.b16 %v591
  %v764 = vunpack.c.h.b16 %v591
  %v765 = vunpack.c.l.b16 %v592
  %v766 = vunpack.c.h.b16 %v592
  %v767 = vunpack.c.l.b16 %v593
  %v768 = vunpack.c.h.b16 %v593
  %v769 = vunpack.c.l.b16 %v594
  %v770 = vunpack.c.h.b16 %v594
  %v771 = vunpack.c.l.b16 %v595
  %v772 = vunpack.c.h.b16 %v595
  %v773 = vunpack.c.l.b16 %v596
  %v774 = vunpack.c.h.b16 %v596
  %v775 = vunpack.c.l.b16 %v597
  %v776 = vunpack.c.h.b16 %v597
  %v777 = vunpack.c.l.b16 %v598
  %v778 = vunpack.c.h.b16 %v598
  %v779 = vunpack.c.l.b16 %v599
  %v780 = vunpack.c.h.b16 %v599
  %v781 = vunpack.c.l.b16 %v600
  %v782 = vunpack.c.h.b16 %v600
  %v783 = vunpack.c.l.b16 %v601
  %v784 = vunpack.c.h.b16 %v601
  %v785 = vunpack.c.l.b16 %v602
  %v786 = vunpack.c.h.b16 %v602
  %v787 = vunpack.c.l.b16 %v603
  %v788 = vunpack.c.h.b16 %v603
  %v789 = vunpack.c.l.b16 %v604
  %v790 = vunpack.c.h.b16 %v604
  %v791 = vunpack.c.l.b16 %v605
  %v792 = vunpack.c.h.b16 %v605
  %v793 = vunpack.c.l.b16 %v606
  %v794 = vunpack.c.h.b16 %v606
  %v795 = vunpack.c.l.b16 %v607
  %v796 = vunpack.c.h.b16 %v607
  %v797 = vunpack.c.l.b16 %v608
  %v798 = vunpack.c.h.b16 %v608
  %v799 = vunpack.c.l.b16 %v609
  %v800 = vunpack.c.h.b16 %v609
  %v801 = vunpack.c.l.b16 %v610
  %v802 = vunpack.c.h.b16 %v610
  %v803 = vunpack.c.l.b16 %v611
  %v804 = vunpack.c.h.b16 %v611
  %v805 = vunpack.c.l.b16 %v612
  %v806 = vunpack.c.h.b16 %v612
  %v807 = vunpack.c.l.b16 %v613
  %v808 = vunpack.c.h.b16 %v613
  %v809 = vunpack.c.l.b16 %v614
  %v810 = vunpack.c.h.b16 %v614
  %v811 = vunpack.c.l.b16 %v615
  %v812 = vunpack.c.h.b16 %v615
  %v813 = vunpack.c.l.b16 %v616
  %v814 = vunpack.c.h.b16 %v616
  %v815 = vunpack.c.l.b16 %v617
  %v816 = vunpack.c.h.b16 %v617
  %v817 = vunpack.c.l.b16 %v618
  %v818 = vunpack.c.h.b16 %v618
  %v819 = vunpack.c.l.b16 %v619
  %v820 = vunpack.c.h.b16 %v619
  %v821 = vunpack.c.l.b16 %v620
  %v822 = vunpack.c.h.b16 %v620
  %v823 = vunpack.c.l.b16 %v621
  %v824 = vunpack.c.h.b16 %v621
  %v825 = vunpack.c.l.b16 %v622
  %v826 = vunpack.c.h.b16 %v622
  %v827 = vpack.c.b16 %v701, %v699
  %v828 = vpack.c.b16 %v702, %v700
  %v829 = vpack.c.b16 %v705, %v703
  %v830 = vpack.c.b16 %v706, %v704
  %v831 = vpack.c.b16 %v709, %v707
  %v832 = vpack.c.b16 %v710, %v708
  %v833 = vpack.c.b16 %v713, %v711
  %v834 = vpack.c.b16 %v714, %v712
  %v835 = vpack.c.b16 %v717, %v715
  %v836 = vpack.c.b16 %v718, %v716
  %v837 = vpack.c.b16 %v721, %v719
  %v838 = vpack.c.b16 %v722, %v720
  %v839 = vpack.c.b16 %v725, %v723
  %v840 = vpack.c.b16 %v726, %v724
  %v841 = vpack.c.b16 %v729, %v727
  %v842 = vpack.c.b16 %v730, %v728
  %v843 = vpack.c.b16 %v733, %v731
  %v844 = vpack.c.b16 %v734, %v732
  %v845 = vpack.c.b16 %v737, %v735
  %v846 = vpack.c.b16 %v738, %v736
  %v847 = vpack.c.b16 %v741, %v739
  %v848 = vpack.c.b16 %v742, %v740
  %v849 = vpack.c.b16 %v745, %v743
  %v850 = vpack.c.b16 %v746, %v744
  %v851 = vpack.c.b16 %v749, %v747
  %v852 = vpack.c.b16 %v750, %v748
  %v853 = vpack.c.b16 %v753, %v751
  %v854 = vpack.c.b16 %v754, %v752
  %v855 = vpack.c.b16 %v757, %v755
  %v856 = vpack.c.b16 %v758, %v756
  %v857 = vpack.c.b16 %v761, %v759
  %v858 = vpack.c.b16 %v762, %v760
  %v859 = vpack.c.b16 %v765, %v763
  %v860 = vpack.c.b16 %v766, %v764
  %v861 = vpack.c.b16 %v769, %v767
  %v862 = vpack.c.b16 %v770, %v768
  %v863 = vpack.c.b16 %v773, %v771
  %v864 = vpack.c.b16 %v774, %v772
  %v865 = vpack.c.b16 %v777, %v775
  %v866 = vpack.c.b16 %v778, %v776
  %v867 = vpack.c.b16 %v781, %v779
  %v868 = vpack.c.b16 %v782, %v780
  %v869 = vpack.c.b16 %v785, %v783
  %v870 = vpack.c.b16 %v786, %v784
  %v871 = vpack.c.b16 %v789, %v787
  %v872 = vpack.c.b16 %v790, %v788
  %v873 = vpack.c.b16 %v793, %v791
  %v874 = vpack.c.b16 %v794, %v792
  %v875 = vpack.c.b16 %v797, %v795
  %v876 = vpack.c.b16 %v798, %v796
  %v877 = vpack.c.b16 %v801, %v799
  %v878 = vpack.c.b16 %v802, %v800
  %v879 = vpack.c.b16 %v805, %v803
  %v880 = vpack.c.b16 %v806, %v804
  %v881 = vpack.c.b16 %v809, %v807
  %v882 = vpack.c.b16 %v810, %v808
  %v883 = vpack.c.b16 %v813, %v811
  %v884 = vpack.c.b16 %v814, %v812
  %v885 = vpack.c.b16 %v817, %v815
  %v886 = vpack.c.b16 %v818, %v816
  %v887 = vpack.c.b16 %v821, %v819
  %v888 = vpack.c.b16 %v822, %v820
  %v889 = vpack.c.b16 %v825, %v823
  %v890 = vpack.c.b16 %v826, %v824
  %955 = vmatprep.subr.bf16.mxu0 %v828
  %956 = vmatpush1.bf16.msra.mxu0 %v827
  %957 = vmatprep.subr.bf16.mxu0 %v830
  %958 = vmatpush1.bf16.msra.mxu0 %v829
  %959 = vmatprep.subr.bf16.mxu0 %v832
  %960 = vmatpush1.bf16.msra.mxu0 %v831
  %961 = vmatprep.subr.bf16.mxu0 %v834
  %962 = vmatpush1.bf16.msra.mxu0 %v833
  %963 = vmatprep.subr.bf16.mxu0 %v836
  %964 = vmatpush1.bf16.msra.mxu0 %v835
  %965 = vmatprep.subr.bf16.mxu0 %v838
  %966 = vmatpush1.bf16.msra.mxu0 %v837
  %967 = vmatprep.subr.bf16.mxu0 %v840
  %968 = vmatpush1.bf16.msra.mxu0 %v839
  %969 = vmatprep.subr.bf16.mxu0 %v842
  %970 = vmatpush1.bf16.msra.mxu0 %v841
  %971 = vmatprep.subr.bf16.mxu0 %v844
  %972 = vmatpush1.bf16.msra.mxu0 %v843
  %973 = vmatprep.subr.bf16.mxu0 %v846
  %974 = vmatpush1.bf16.msra.mxu0 %v845
  %975 = vmatprep.subr.bf16.mxu0 %v848
  %976 = vmatpush1.bf16.msra.mxu0 %v847
  %977 = vmatprep.subr.bf16.mxu0 %v850
  %978 = vmatpush1.bf16.msra.mxu0 %v849
  %979 = vmatprep.subr.bf16.mxu0 %v852
  %980 = vmatpush1.bf16.msra.mxu0 %v851
  %981 = vmatprep.subr.bf16.mxu0 %v854
  %982 = vmatpush1.bf16.msra.mxu0 %v853
  %983 = vmatprep.subr.bf16.mxu0 %v856
  %984 = vmatpush1.bf16.msra.mxu0 %v855
  %985 = vmatprep.subr.bf16.mxu0 %v858
  %986 = vmatpush1.bf16.msra.mxu0 %v857
  %987 = vmatprep.mubr.bf16.mxu0 %v556
  %988 = vmatmul.mubr.bf16.gmra.mrb[0].mxu0 %v555
  %v989 = vpop.f32.mrb[0].mxu0
  %v990 = vadd.f32 %v628, %v989
  %v991 = vpop.f32.mrb[0].mxu0
  %v992 = vadd.f32 %v632, %v991
  %v993 = vpop.f32.mrb[0].mxu0
  %v994 = vadd.f32 %v628, %v993
  %v995 = vpop.f32.mrb[0].mxu0
  %v996 = vadd.f32 %v632, %v995
  %997 = vdwg.mxu0
  %998 = vmatprep.subr.bf16.mxu0 %v860
  %999 = vmatpush1.bf16.msra.mxu0 %v859
  %1000 = vmatprep.subr.bf16.mxu0 %v862
  %1001 = vmatpush1.bf16.msra.mxu0 %v861
  %1002 = vmatprep.subr.bf16.mxu0 %v864
  %1003 = vmatpush1.bf16.msra.mxu0 %v863
  %1004 = vmatprep.subr.bf16.mxu0 %v866
  %1005 = vmatpush1.bf16.msra.mxu0 %v865
  %1006 = vmatprep.subr.bf16.mxu0 %v868
  %1007 = vmatpush1.bf16.msra.mxu0 %v867
  %1008 = vmatprep.subr.bf16.mxu0 %v870
  %1009 = vmatpush1.bf16.msra.mxu0 %v869
  %1010 = vmatprep.subr.bf16.mxu0 %v872
  %1011 = vmatpush1.bf16.msra.mxu0 %v871
  %1012 = vmatprep.subr.bf16.mxu0 %v874
  %1013 = vmatpush1.bf16.msra.mxu0 %v873
  %1014 = vmatprep.subr.bf16.mxu0 %v876
  %1015 = vmatpush1.bf16.msra.mxu0 %v875
  %1016 = vmatprep.subr.bf16.mxu0 %v878
  %1017 = vmatpush1.bf16.msra.mxu0 %v877
  %1018 = vmatprep.subr.bf16.mxu0 %v880
  %1019 = vmatpush1.bf16.msra.mxu0 %v879
  %1020 = vmatprep.subr.bf16.mxu0 %v882
  %1021 = vmatpush1.bf16.msra.mxu0 %v881
  %1022 = vmatprep.subr.bf16.mxu0 %v884
  %1023 = vmatpush1.bf16.msra.mxu0 %v883
  %1024 = vmatprep.subr.bf16.mxu0 %v886
  %1025 = vmatpush1.bf16.msra.mxu0 %v885
  %1026 = vmatprep.subr.bf16.mxu0 %v888
  %1027 = vmatpush1.bf16.msra.mxu0 %v887
  %1028 = vmatprep.subr.bf16.mxu0 %v890
  %1029 = vmatpush1.bf16.msra.mxu0 %v889
  %1030 = vmatprep.mubr.bf16.mxu0 %v558
  %1031 = vmatmul.mubr.bf16.gmra.mrb[0].mxu0 %v557
  %v1032 = vpop.f32.mrb[0].mxu0
  %v1033 = vadd.f32 %v990, %v1032
  %v1034 = vpop.f32.mrb[0].mxu0
  %v1035 = vadd.f32 %v992, %v1034
  %v1036 = vpop.f32.mrb[0].mxu0
  %v1037 = vadd.f32 %v994, %v1036
  %v1038 = vpop.f32.mrb[0].mxu0
  %v1039 = vadd.f32 %v996, %v1038
  %1040 = vdwg.mxu0
  %vm1041 = vcmp.ge.f32.partialorder %v1033, 0.0
  %vm1042 = vcmp.ge.f32.partialorder %v1035, 0.0
  %vm1043 = vcmp.ge.f32.partialorder %v1037, 0.0
  %vm1044 = vcmp.ge.f32.partialorder %v1039, 0.0
  %v1045 = vmul.f32 %v1033, 0.01
  %v1046 = vmul.f32 %v1035, 0.01
  %v1047 = vmul.f32 %v1037, 0.01
  %v1048 = vmul.f32 %v1039, 0.01
  %v1049 = vsel %vm1041, %v1033, %v1045
  %v1050 = vsel %vm1042, %v1035, %v1046
  %v1051 = vsel %vm1043, %v1037, %v1047
  %v1052 = vsel %vm1044, %v1039, %v1048
  %v1053 = vpack.c.bf16 %v1051, %v1049
  %v1054 = vpack.c.bf16 %v1052, %v1050
  %v1055 = vld [vmem:[%s5] sm:$0xf]
  %v1056 = vld [vmem:[%s5 + $0x4] sm:$0xf]
  %v1057 = vld [vmem:[%s5 + $0x8] sm:$0xf]
  %v1058 = vld [vmem:[%s5 + $0xc] sm:$0xf]
  %v1059 = vld [vmem:[%s5 + $0x10] sm:$0xf]
  %v1060 = vld [vmem:[%s5 + $0x14] sm:$0xf]
  %v1061 = vld [vmem:[%s5 + $0x18] sm:$0xf]
  %v1062 = vld [vmem:[%s5 + $0x1c] sm:$0xf]
  %v1063 = vld [vmem:[%s5 + $0x20] sm:$0xf]
  %v1064 = vld [vmem:[%s5 + $0x24] sm:$0xf]
  %v1065 = vld [vmem:[%s5 + $0x28] sm:$0xf]
  %v1066 = vld [vmem:[%s5 + $0x2c] sm:$0xf]
  %v1067 = vld [vmem:[%s5 + $0x30] sm:$0xf]
  %v1068 = vld [vmem:[%s5 + $0x34] sm:$0xf]
  %v1069 = vld [vmem:[%s5 + $0x38] sm:$0xf]
  %v1070 = vld [vmem:[%s5 + $0x3c] sm:$0xf]
  %v1071 = vld [vmem:[%s5 + $0x40] sm:$0xf]
  %v1072 = vld [vmem:[%s5 + $0x44] sm:$0xf]
  %v1073 = vld [vmem:[%s5 + $0x48] sm:$0xf]
  %v1074 = vld [vmem:[%s5 + $0x4c] sm:$0xf]
  %v1075 = vld [vmem:[%s5 + $0x50] sm:$0xf]
  %v1076 = vld [vmem:[%s5 + $0x54] sm:$0xf]
  %v1077 = vld [vmem:[%s5 + $0x58] sm:$0xf]
  %v1078 = vld [vmem:[%s5 + $0x5c] sm:$0xf]
  %v1079 = vld [vmem:[%s5 + $0x60] sm:$0xf]
  %v1080 = vld [vmem:[%s5 + $0x64] sm:$0xf]
  %v1081 = vld [vmem:[%s5 + $0x68] sm:$0xf]
  %v1082 = vld [vmem:[%s5 + $0x6c] sm:$0xf]
  %v1083 = vld [vmem:[%s5 + $0x70] sm:$0xf]
  %v1084 = vld [vmem:[%s5 + $0x74] sm:$0xf]
  %v1085 = vld [vmem:[%s5 + $0x78] sm:$0xf]
  %v1086 = vld [vmem:[%s5 + $0x7c] sm:$0xf]
  %v1087 = vld [vmem:[%s6] sm:$0x1]
  %v1089 = vlaneseq
  %v1090 = vshrl.u32 %v1089, 7
  %v1091 = vsub.s32 0, %v1090
  %v1092 = vrot.slane %v1087, %v1091
  %v1126 = vunpack.c.l.b16 %v1055
  %v1127 = vunpack.c.l.b16 %v1056
  %v1128 = vunpack.c.l.b16 %v1057
  %v1129 = vunpack.c.l.b16 %v1058
  %v1130 = vunpack.c.l.b16 %v1059
  %v1131 = vunpack.c.l.b16 %v1060
  %v1132 = vunpack.c.l.b16 %v1061
  %v1133 = vunpack.c.l.b16 %v1062
  %v1134 = vunpack.c.l.b16 %v1063
  %v1135 = vunpack.c.l.b16 %v1064
  %v1136 = vunpack.c.l.b16 %v1065
  %v1137 = vunpack.c.l.b16 %v1066
  %v1138 = vunpack.c.l.b16 %v1067
  %v1139 = vunpack.c.l.b16 %v1068
  %v1140 = vunpack.c.l.b16 %v1069
  %v1141 = vunpack.c.l.b16 %v1070
  %v1142 = vunpack.c.l.b16 %v1071
  %v1143 = vunpack.c.l.b16 %v1072
  %v1144 = vunpack.c.l.b16 %v1073
  %v1145 = vunpack.c.l.b16 %v1074
  %v1146 = vunpack.c.l.b16 %v1075
  %v1147 = vunpack.c.l.b16 %v1076
  %v1148 = vunpack.c.l.b16 %v1077
  %v1149 = vunpack.c.l.b16 %v1078
  %v1150 = vunpack.c.l.b16 %v1079
  %v1151 = vunpack.c.l.b16 %v1080
  %v1152 = vunpack.c.l.b16 %v1081
  %v1153 = vunpack.c.l.b16 %v1082
  %v1154 = vunpack.c.l.b16 %v1083
  %v1155 = vunpack.c.l.b16 %v1084
  %v1156 = vunpack.c.l.b16 %v1085
  %v1157 = vunpack.c.l.b16 %v1086
  %v1158 = vpack.c.b16 %v1127, %v1126
  %v1159 = vpack.c.b16 %v1129, %v1128
  %v1160 = vpack.c.b16 %v1131, %v1130
  %v1161 = vpack.c.b16 %v1133, %v1132
  %v1162 = vpack.c.b16 %v1135, %v1134
  %v1163 = vpack.c.b16 %v1137, %v1136
  %v1164 = vpack.c.b16 %v1139, %v1138
  %v1165 = vpack.c.b16 %v1141, %v1140
  %v1166 = vpack.c.b16 %v1143, %v1142
  %v1167 = vpack.c.b16 %v1145, %v1144
  %v1168 = vpack.c.b16 %v1147, %v1146
  %v1169 = vpack.c.b16 %v1149, %v1148
  %v1170 = vpack.c.b16 %v1151, %v1150
  %v1171 = vpack.c.b16 %v1153, %v1152
  %v1172 = vpack.c.b16 %v1155, %v1154
  %v1173 = vpack.c.b16 %v1157, %v1156
  %1190 = vmatprep.subr.bf16.mxu0 0
  %1191 = vmatpush1.bf16.msra.mxu0 %v1158
  %1192 = vmatprep.subr.bf16.mxu0 0
  %1193 = vmatpush1.bf16.msra.mxu0 %v1159
  %1194 = vmatprep.subr.bf16.mxu0 0
  %1195 = vmatpush1.bf16.msra.mxu0 %v1160
  %1196 = vmatprep.subr.bf16.mxu0 0
  %1197 = vmatpush1.bf16.msra.mxu0 %v1161
  %1198 = vmatprep.subr.bf16.mxu0 0
  %1199 = vmatpush1.bf16.msra.mxu0 %v1162
  %1200 = vmatprep.subr.bf16.mxu0 0
  %1201 = vmatpush1.bf16.msra.mxu0 %v1163
  %1202 = vmatprep.subr.bf16.mxu0 0
  %1203 = vmatpush1.bf16.msra.mxu0 %v1164
  %1204 = vmatprep.subr.bf16.mxu0 0
  %1205 = vmatpush1.bf16.msra.mxu0 %v1165
  %1206 = vmatprep.subr.bf16.mxu0 0
  %1207 = vmatpush1.bf16.msra.mxu0 %v1166
  %1208 = vmatprep.subr.bf16.mxu0 0
  %1209 = vmatpush1.bf16.msra.mxu0 %v1167
  %1210 = vmatprep.subr.bf16.mxu0 0
  %1211 = vmatpush1.bf16.msra.mxu0 %v1168
  %1212 = vmatprep.subr.bf16.mxu0 0
  %1213 = vmatpush1.bf16.msra.mxu0 %v1169
  %1214 = vmatprep.subr.bf16.mxu0 0
  %1215 = vmatpush1.bf16.msra.mxu0 %v1170
  %1216 = vmatprep.subr.bf16.mxu0 0
  %1217 = vmatpush1.bf16.msra.mxu0 %v1171
  %1218 = vmatprep.subr.bf16.mxu0 0
  %1219 = vmatpush1.bf16.msra.mxu0 %v1172
  %1220 = vmatprep.subr.bf16.mxu0 0
  %1221 = vmatpush1.bf16.msra.mxu0 %v1173
  %1222 = vmatprep.mubr.bf16.mxu0 %v1054
  %1223 = vmatmul.mubr.bf16.gmra.mrb[0].mxu0 %v1053
  %v1224 = vpop.f32.mrb[0].mxu0
  %v1225 = vadd.f32 %v1092, %v1224
  %v1226 = vpop.f32.mrb[0].mxu0
  %v1227 = vpop.f32.mrb[0].mxu0
  %v1228 = vadd.f32 %v1092, %v1227
  %v1229 = vpop.f32.mrb[0].mxu0
  %1230 = vdwg.mxu0
  %1231 = vst [vmem:[%s7] sm:$0xff] %v1225
  %1232 = vst [vmem:[%s7 + $0x8] sm:$0xff] %v1228
  // Predicated region
  $region30: #{forward.13} parent=0 // pred_check
    _
  $region31: #{forward.13} parent=0 // pred_check_branch
    %1234 = sbr.rel (0) target = $region33
  $region32: #{forward.13} parent=0 // pred_region
    _
  $region33: #{forward.13} parent=0 // pred_fallthru
    _
  // Predicated region
  $region34: #{forward.13} parent=0 // pred_check
    _
  $region35: #{forward.13} parent=0 // pred_check_branch
    %1236 = sbr.rel (0) target = $region37
  $region36: #{forward.13} parent=0 // pred_region
    _
  $region37: #{forward.13} parent=0 // pred_fallthru
    _

</llo_original>
